<compile_context>
chip_gen: v7x
topology: tpu7x:2x2x1
jax: 0.10.0
libtpu: 0.0.40
codegen_flags: <defaults>
</compile_context>

<pallas_src>
import functools

import jax
import jax.numpy as jnp
from jax import lax
from jax.experimental import pallas as pl
from jax.experimental.pallas import tpu as pltpu


def _round_up(x, m):
    return (x + m - 1) // m * m


def _make_bilstm_kernel(ndl, Tc, Bp, nIn, Hp, nOutp, cdt, unroll):
    """Kernel factory.

    ndl = directions handled per grid invocation:
      1 -> direction is a megacore-parallel grid axis (one direction per TensorCore).
      2 -> both directions interleaved in one invocation (single-TC chips).
    """

    def kernel(*refs):
        pos = 0
        x_refs = refs[pos:pos + ndl]; pos += ndl
        wih_ref, whh_ref, bias_ref, wemb_ref, bemb_ref = refs[pos:pos + 5]; pos += 5
        out_refs = refs[pos:pos + ndl]; pos += ndl
        scr = refs[pos:]
        zx_refs = [scr[4 * j + 0] for j in range(ndl)]
        rec_refs = [scr[4 * j + 1] for j in range(ndl)]
        h_refs = [scr[4 * j + 2] for j in range(ndl)]
        c_refs = [scr[4 * j + 3] for j in range(ndl)]

        grp = pl.program_id(0)       # direction group (size 2 // ndl)
        tc = pl.program_id(1)        # time chunk; h/c carries persist across it

        # ---- 1) Hoisted input projection for this chunk: one (Tc*Bp, nIn)@(nIn, 4Hp)
        #         MXU matmul per direction, bias folded in, off the serial path.
        for j in range(ndl):
            x2d = x_refs[j][...].reshape(Tc * Bp, nIn)
            zx = jnp.dot(x2d, wih_ref[j], preferred_element_type=jnp.float32)
            zx = zx + bias_ref[j]
            zx_refs[j][...] = zx.reshape(Tc, Bp, 4 * Hp).astype(cdt)

        # ---- 2) (Re)initialize the recurrent carries at the first time chunk.
        @pl.when(tc == 0)
        def _():
            for j in range(ndl):
                h_refs[j][...] = jnp.zeros_like(h_refs[j])
                c_refs[j][...] = jnp.zeros_like(c_refs[j])

        # ---- 3) Serial recurrence over this chunk; only (Bp, Hp)@(Hp, 4Hp) is on the
        #         critical path.  With ndl == 2 the two independent direction chains
        #         share the loop body so their work fills each other's bubbles.
        def step(s, carry):
            hs, cs = carry
            new_h, new_c = [], []
            for j in range(ndl):
                if ndl == 2:
                    t_loc = s if j == 0 else Tc - 1 - s        # static per chain
                else:
                    t_loc = s + grp * (Tc - 1 - 2 * s)         # fwd / reversed time
                z = zx_refs[j][t_loc].astype(jnp.float32) + jnp.dot(
                    hs[j], whh_ref[j], preferred_element_type=jnp.float32)
                # Gate slices are whole 128-lane vregs (Hp is a multiple of 128).
                i = jax.nn.sigmoid(z[:, 0 * Hp:1 * Hp])
                f = jax.nn.sigmoid(z[:, 1 * Hp:2 * Hp])
                gg = jnp.tanh(z[:, 2 * Hp:3 * Hp])
                o = jax.nn.sigmoid(z[:, 3 * Hp:4 * Hp])
                c_new = f * cs[j] + i * gg                     # cell state stays f32
                h_new = (o * jnp.tanh(c_new)).astype(cdt)      # h carried in bf16/f32
                rec_refs[j][t_loc] = h_new                     # lane-dense Hp store
                new_h.append(h_new)
                new_c.append(c_new)
            return tuple(new_h), tuple(new_c)

        init = (tuple(h_refs[j][...] for j in range(ndl)),
                tuple(c_refs[j][...] for j in range(ndl)))
        h_fin, c_fin = lax.fori_loop(0, Tc, step, init, unroll=unroll)
        for j in range(ndl):
            h_refs[j][...] = h_fin[j]
            c_refs[j][...] = c_fin[j]

        # ---- 4) This chunk's share of the output projection (per direction).
        #         Per-chunk emission keeps rec scratch O(Tc) and lets the writeback
        #         DMA overlap the next chunk's recurrence.
        for j in range(ndl):
            rec2d = rec_refs[j][...].reshape(Tc * Bp, Hp)
            out = jnp.dot(rec2d, wemb_ref[j], preferred_element_type=jnp.float32)
            out = out + bemb_ref[j]            # all-zero for the backward partial
            out_refs[j][...] = out.reshape(Tc, Bp, nOutp)

    return kernel


def bidirectional_lstm(x, params, *, compute_dtype=jnp.bfloat16, time_chunk=64,
                       direction_parallel=False):
    """x: (T, B, nIn) f32 -> (T, B, nOut) f32.  Matches nn.LSTM(bidirectional=True)+Linear."""
    T, B, nIn = x.shape
    H = params["whh_f"].shape[0]
    nOut = params["wemb"].shape[1]

    Hp = _round_up(H, 128)         # gate slices become whole 128-lane vregs
    Bp = _round_up(B, 8)           # fill the 8 sublanes / MXU rows
    nOutp = _round_up(nOut, 128)   # lane-dense output stores
    cdt = compute_dtype

    # Time chunking: Tc must divide T so the backward carry never sees padded steps.
    Tc = max(1, min(int(time_chunk), T))
    while T % Tc:
        Tc -= 1
    nTc = T // Tc
    # TODO(synk): for T with no divisor near the target chunk, pad T and mask the
    # ragged tail chunk with dynamic per-chunk loop bounds instead of shrinking Tc.

    ndl = 1 if direction_parallel else 2     # directions handled per grid invocation
    n_grp = 2 // ndl                         # size of the direction grid axis

    def pad_gate_cols(w):
        # (..., 4H) -> (..., 4Hp): zero-pad each PyTorch gate block [i|f|g|o] separately.
        lead = w.shape[:-1]
        w4 = w.reshape(lead + (4, H))
        w4 = jnp.pad(w4, [(0, 0)] * len(lead) + [(0, 0), (0, Hp - H)])
        return w4.reshape(lead + (4 * Hp,))

    def prep_dir(wih, whh, bias):
        wih_p = pad_gate_cols(wih)                                   # (nIn, 4Hp)
        whh_p = pad_gate_cols(jnp.pad(whh, ((0, Hp - H), (0, 0))))   # (Hp, 4Hp)
        bias_p = pad_gate_cols(bias)                                 # (1, 4Hp)
        return wih_p, whh_p, bias_p

    wih_f, whh_f, bias_f = prep_dir(params["wih_f"], params["whh_f"], params["bias_f"])
    wih_b, whh_b, bias_b = prep_dir(params["wih_b"], params["whh_b"], params["bias_b"])

    wemb = params["wemb"]                                            # (2H, nOut)
    wemb_f = jnp.pad(wemb[:H], ((0, Hp - H), (0, nOutp - nOut)))     # (Hp, nOutp)
    wemb_b = jnp.pad(wemb[H:], ((0, Hp - H), (0, nOutp - nOut)))
    bemb = jnp.pad(params["bemb"], ((0, 0), (0, nOutp - nOut)))      # (1, nOutp)

    x_p = jnp.pad(x, ((0, 0), (0, Bp - B), (0, 0))).astype(cdt)      # (T, Bp, nIn)
    wih_s = jnp.stack([wih_f, wih_b]).astype(cdt)                    # (2, nIn, 4Hp)
    whh_s = jnp.stack([whh_f, whh_b]).astype(cdt)                    # (2, Hp, 4Hp)
    bias_s = jnp.stack([bias_f, bias_b]).astype(jnp.float32)         # (2, 1, 4Hp)
    wemb_s = jnp.stack([wemb_f, wemb_b]).astype(cdt)                 # (2, Hp, nOutp)
    bemb_s = jnp.stack([bemb, jnp.zeros_like(bemb)]).astype(jnp.float32)

    # Forward direction reads/writes chunk tc; backward reads/writes chunk nTc-1-tc.
    def x_map(j):
        if ndl == 2:
            return (lambda g, t: (t, 0, 0)) if j == 0 else (lambda g, t: (nTc - 1 - t, 0, 0))
        return lambda g, t: (t + g * (nTc - 1 - 2 * t), 0, 0)

    def out_map(j):
        if ndl == 2:
            return (lambda g, t: (0, t, 0, 0)) if j == 0 else (lambda g, t: (0, nTc - 1 - t, 0, 0))
        return lambda g, t: (g, t + g * (nTc - 1 - 2 * t), 0, 0)

    wmap = lambda g, t: (g, 0, 0)    # per-direction-group weight slice, time-invariant

    in_specs = (
        [pl.BlockSpec((Tc, Bp, nIn), x_map(j)) for j in range(ndl)] + [
            pl.BlockSpec((ndl, nIn, 4 * Hp), wmap),     # W_ih^T  (per direction)
            pl.BlockSpec((ndl, Hp, 4 * Hp), wmap),      # W_hh^T  (per direction)
            pl.BlockSpec((ndl, 1, 4 * Hp), wmap),       # b_ih + b_hh
            pl.BlockSpec((ndl, Hp, nOutp), wmap),       # Linear half
            pl.BlockSpec((ndl, 1, nOutp), wmap),        # Linear bias (fwd only)
        ])
    out_specs = tuple(pl.BlockSpec((None, Tc, Bp, nOutp), out_map(j)) for j in range(ndl))
    out_shape = tuple(jax.ShapeDtypeStruct((n_grp, T, Bp, nOutp), jnp.float32)
                      for _ in range(ndl))

    scratch = []
    for _ in range(ndl):
        scratch += [pltpu.VMEM((Tc, Bp, 4 * Hp), cdt),       # zx: chunk x-projection
                    pltpu.VMEM((Tc, Bp, Hp), cdt),           # rec: chunk hidden states
                    pltpu.VMEM((Bp, Hp), cdt),               # h carry across chunks
                    pltpu.VMEM((Bp, Hp), jnp.float32)]       # c carry across chunks

    # Size the VMEM request from actual usage (weights + scratch + double-buffered
    # x/out chunks) with headroom; never request all of v7x's 64 MiB per TC.
    cb = jnp.dtype(cdt).itemsize
    w_blk = ndl * (((nIn + Hp) * 4 * Hp + Hp * nOutp) * cb + (4 * Hp + nOutp) * 4)
    io_blk = ndl * (Tc * Bp * nIn * cb + Tc * Bp * nOutp * 4)
    scr_b = ndl * ((Tc * Bp * (4 * Hp + Hp) + Bp * Hp) * cb + Bp * Hp * 4)
    need = 2 * (w_blk + io_blk) + scr_b
    vmem_limit = min(max(int(need * 1.25) + (4 << 20), 24 << 20), 56 << 20)

    unroll = Tc if Tc <= 8 else (4 if Tc % 4 == 0 else (2 if Tc % 2 == 0 else 1))
    kernel = _make_bilstm_kernel(ndl, Tc, Bp, nIn, Hp, nOutp, cdt, unroll)

    grid_spec = pltpu.PrefetchScalarGridSpec(
        num_scalar_prefetch=0,
        grid=(n_grp, nTc),                        # (direction group, time chunk)
        in_specs=in_specs,
        out_specs=out_specs,
        scratch_shapes=scratch,
    )

    parts = pl.pallas_call(
        kernel,
        out_shape=out_shape,
        grid_spec=grid_spec,
        compiler_params=pltpu.CompilerParams(
            dimension_semantics=("parallel", "arbitrary"),
            vmem_limit_bytes=vmem_limit,
        ),
    )(*([x_p] * ndl), wih_s, whh_s, bias_s, wemb_s, bemb_s)

    # Tiny epilogue: sum direction partials, strip batch / output padding.
    total = parts[0].sum(axis=0)
    for p in parts[1:]:
        total = total + p.sum(axis=0)
    return total[:, :B, :nOut]


def init_params(key, nIn, nHidden, nOut):
    """Deterministic PyTorch-style init (uniform(-1/sqrt(fan), 1/sqrt(fan)))."""
    k_lstm = 1.0 / float(jnp.sqrt(jnp.float32(nHidden)))
    k_lin = 1.0 / float(jnp.sqrt(jnp.float32(2 * nHidden)))
    keys = jax.random.split(key, 12)

    def u(k, shape, bound):
        return jax.random.uniform(k, shape, jnp.float32, -bound, bound)

    # PyTorch stores weight_ih_l0 as (4H, nIn); we keep the transposed layout.
    wih_f = u(keys[0], (nIn, 4 * nHidden), k_lstm)
    whh_f = u(keys[1], (nHidden, 4 * nHidden), k_lstm)
    bias_f = u(keys[2], (1, 4 * nHidden), k_lstm) + u(keys[3], (1, 4 * nHidden), k_lstm)
    wih_b = u(keys[4], (nIn, 4 * nHidden), k_lstm)
    whh_b = u(keys[5], (nHidden, 4 * nHidden), k_lstm)
    bias_b = u(keys[6], (1, 4 * nHidden), k_lstm) + u(keys[7], (1, 4 * nHidden), k_lstm)
    wemb = u(keys[8], (2 * nHidden, nOut), k_lin)   # nn.Linear(2H, nOut).weight^T
    bemb = u(keys[9], (1, nOut), k_lin)
    return dict(wih_f=wih_f, whh_f=whh_f, bias_f=bias_f,
                wih_b=wih_b, whh_b=whh_b, bias_b=bias_b,
                wemb=wemb, bemb=bemb)


def reference(x, params):
    """Pure-JAX f32 reference of the PyTorch forward pass (HIGHEST matmul precision)."""
    T, B, _ = x.shape
    H = params["whh_f"].shape[0]
    nOut = params["wemb"].shape[1]
    hp = functools.partial(jnp.dot, precision=lax.Precision.HIGHEST)

    def run(x_seq, wih, whh, bias):
        def step(carry, x_t):
            h, c = carry
            z = hp(x_t, wih) + hp(h, whh) + bias
            i = jax.nn.sigmoid(z[:, 0 * H:1 * H])
            f = jax.nn.sigmoid(z[:, 1 * H:2 * H])
            g = jnp.tanh(z[:, 2 * H:3 * H])
            o = jax.nn.sigmoid(z[:, 3 * H:4 * H])
            c = f * c + i * g
            h = o * jnp.tanh(c)
            return (h, c), h
        init = (jnp.zeros((B, H), jnp.float32), jnp.zeros((B, H), jnp.float32))
        _, hs = lax.scan(step, init, x_seq)
        return hs

    h_f = run(x, params["wih_f"], params["whh_f"], params["bias_f"])
    h_b = run(x[::-1], params["wih_b"], params["whh_b"], params["bias_b"])[::-1]
    rec = jnp.concatenate([h_f, h_b], axis=-1)                 # (T, B, 2H)
    out = hp(rec.reshape(T * B, 2 * H), params["wemb"]) + params["bemb"]
    return out.reshape(T, B, nOut)


if __name__ == "__main__":
    T, B, nIn, nHidden, nOut = 16, 2, 32, 32, 16
    key = jax.random.PRNGKey(0)
    kx, kp = jax.random.split(key)
    x = jax.random.normal(kx, (T, B, nIn), jnp.float32)
    params = init_params(kp, nIn, nHidden, nOut)

    ref = reference(x, params)

    # f32 MXU path, interleaved directions, 4 time chunks: tight layout/semantics check.
    f32_fn = jax.jit(functools.partial(bidirectional_lstm, compute_dtype=jnp.float32,
                                       time_chunk=4, direction_parallel=False))
    out_f32 = jax.block_until_ready(f32_fn(x, params))
    assert out_f32.shape == (T, B, nOut)
    assert out_f32.dtype == jnp.float32
    assert float(jnp.max(jnp.abs(out_f32 - ref))) < 5e-3

    # bf16 path (default, fast), interleaved directions (v5e/v6e layout).
    bf16_fn = jax.jit(functools.partial(bidirectional_lstm, time_chunk=4))
    out_bf16 = jax.block_until_ready(bf16_fn(x, params))
    assert out_bf16.shape == (T, B, nOut)
    assert out_bf16.dtype == jnp.float32
    assert float(jnp.max(jnp.abs(out_bf16 - ref))) < 1e-1

    # bf16 path with direction as a megacore-parallel grid axis (v7x layout).
    par_fn = jax.jit(functools.partial(bidirectional_lstm, time_chunk=4,
                                       direction_parallel=True))
    out_par = jax.block_until_ready(par_fn(x, params))
    assert out_par.shape == (T, B, nOut)
    assert float(jnp.max(jnp.abs(out_par - ref))) < 1e-1

    print("KERNEL_OK")
</pallas_src>

<mosaic_0001>
module attributes {stable_mosaic.version = 11 : i64} {
  func.func @kernel(%arg0: i32, %arg1: i32, %arg2: memref<4x8x32xf32, #tpu.memory_space<vmem>>, %arg3: memref<4x8x32xf32, #tpu.memory_space<vmem>>, %arg4: memref<2x32x512xf32, #tpu.memory_space<vmem>>, %arg5: memref<2x128x512xf32, #tpu.memory_space<vmem>>, %arg6: memref<2x1x512xf32, #tpu.memory_space<vmem>>, %arg7: memref<2x128x128xf32, #tpu.memory_space<vmem>>, %arg8: memref<2x1x128xf32, #tpu.memory_space<vmem>>, %arg9: memref<1x4x8x128xf32, #tpu.memory_space<vmem>>, %arg10: memref<1x4x8x128xf32, #tpu.memory_space<vmem>>, %arg11: memref<4x8x512xf32, #tpu.memory_space<vmem>>, %arg12: memref<4x8x128xf32, #tpu.memory_space<vmem>>, %arg13: memref<8x128xf32, #tpu.memory_space<vmem>>, %arg14: memref<8x128xf32, #tpu.memory_space<vmem>>, %arg15: memref<4x8x512xf32, #tpu.memory_space<vmem>>, %arg16: memref<4x8x128xf32, #tpu.memory_space<vmem>>, %arg17: memref<8x128xf32, #tpu.memory_space<vmem>>, %arg18: memref<8x128xf32, #tpu.memory_space<vmem>>) attributes {dimension_semantics = [#tpu.dimension_semantics<parallel>, #tpu.dimension_semantics<arbitrary>], iteration_bounds = array<i64: 1, 4>, scalar_prefetch = 0 : i64, scratch_operands = 8 : i64, tpu.core_type = #tpu.core_type<tc>, window_params = [{transform_indices = @transform_0, window_bounds = array<i64: 4, 8, 32>}, {transform_indices = @transform_1, window_bounds = array<i64: 4, 8, 32>}, {transform_indices = @transform_2, window_bounds = array<i64: 2, 32, 512>}, {transform_indices = @transform_3, window_bounds = array<i64: 2, 128, 512>}, {transform_indices = @transform_4, window_bounds = array<i64: 2, 1, 512>}, {transform_indices = @transform_5, window_bounds = array<i64: 2, 128, 128>}, {transform_indices = @transform_6, window_bounds = array<i64: 2, 1, 128>}, {transform_indices = @transform_7, window_bounds = array<i64: 1, 4, 8, 128>}, {transform_indices = @transform_8, window_bounds = array<i64: 1, 4, 8, 128>}]} {
    %c0 = arith.constant 0 : index
    %c0_0 = arith.constant 0 : index
    %c0_1 = arith.constant 0 : index
    %0 = vector.load %arg2[%c0, %c0_0, %c0_1] : memref<4x8x32xf32, #tpu.memory_space<vmem>>, vector<4x8x32xf32>
    %1 = vector.shape_cast %0 : vector<4x8x32xf32> to vector<32x32xf32>
    %c0_2 = arith.constant 0 : index
    %c0_3 = arith.constant 0 : index
    %c0_4 = arith.constant 0 : index
    %2 = vector.load %arg4[%c0_2, %c0_3, %c0_4] : memref<2x32x512xf32, #tpu.memory_space<vmem>>, vector<1x32x512xf32>
    %3 = vector.shape_cast %2 : vector<1x32x512xf32> to vector<32x512xf32>
    %cst = arith.constant dense<0.000000e+00> : vector<32x512xf32>
    %4 = tpu.matmul %1, %3, %cst {dimension_numbers = #tpu.dot_dimension_numbers<[1], [0], [0], [1], [0, 0, 1, 1], [], []>} : vector<32x32xf32>, vector<32x512xf32>, vector<32x512xf32> -> vector<32x512xf32>
    %c0_5 = arith.constant 0 : index
    %c0_6 = arith.constant 0 : index
    %c0_7 = arith.constant 0 : index
    %5 = vector.load %arg6[%c0_5, %c0_6, %c0_7] : memref<2x1x512xf32, #tpu.memory_space<vmem>>, vector<1x1x512xf32>
    %6 = vector.shape_cast %5 : vector<1x1x512xf32> to vector<1x512xf32>
    %7 = vector.broadcast %6 : vector<1x512xf32> to vector<32x512xf32>
    %8 = arith.addf %4, %7 : vector<32x512xf32>
    %9 = vector.shape_cast %8 : vector<32x512xf32> to vector<4x8x512xf32>
    %c0_8 = arith.constant 0 : index
    %c0_9 = arith.constant 0 : index
    %c0_10 = arith.constant 0 : index
    %10 = vector.load %arg11[%c0_8, %c0_9, %c0_10] : memref<4x8x512xf32, #tpu.memory_space<vmem>>, vector<4x8x512xf32>
    tpu.vector_store %arg11[%c0_8, %c0_9, %c0_10], %9 {strides = array<i32>} : memref<4x8x512xf32, #tpu.memory_space<vmem>>, vector<4x8x512xf32>,
    %c0_11 = arith.constant 0 : index
    %c0_12 = arith.constant 0 : index
    %c0_13 = arith.constant 0 : index
    %11 = vector.load %arg3[%c0_11, %c0_12, %c0_13] : memref<4x8x32xf32, #tpu.memory_space<vmem>>, vector<4x8x32xf32>
    %12 = vector.shape_cast %11 : vector<4x8x32xf32> to vector<32x32xf32>
    %c1 = arith.constant 1 : index
    %c0_14 = arith.constant 0 : index
    %c0_15 = arith.constant 0 : index
    %13 = vector.load %arg4[%c1, %c0_14, %c0_15] : memref<2x32x512xf32, #tpu.memory_space<vmem>>, vector<1x32x512xf32>
    %14 = vector.shape_cast %13 : vector<1x32x512xf32> to vector<32x512xf32>
    %cst_16 = arith.constant dense<0.000000e+00> : vector<32x512xf32>
    %15 = tpu.matmul %12, %14, %cst_16 {dimension_numbers = #tpu.dot_dimension_numbers<[1], [0], [0], [1], [0, 0, 1, 1], [], []>} : vector<32x32xf32>, vector<32x512xf32>, vector<32x512xf32> -> vector<32x512xf32>
    %c1_17 = arith.constant 1 : index
    %c0_18 = arith.constant 0 : index
    %c0_19 = arith.constant 0 : index
    %16 = vector.load %arg6[%c1_17, %c0_18, %c0_19] : memref<2x1x512xf32, #tpu.memory_space<vmem>>, vector<1x1x512xf32>
    %17 = vector.shape_cast %16 : vector<1x1x512xf32> to vector<1x512xf32>
    %18 = vector.broadcast %17 : vector<1x512xf32> to vector<32x512xf32>
    %19 = arith.addf %15, %18 : vector<32x512xf32>
    %20 = vector.shape_cast %19 : vector<32x512xf32> to vector<4x8x512xf32>
    %c0_20 = arith.constant 0 : index
    %c0_21 = arith.constant 0 : index
    %c0_22 = arith.constant 0 : index
    %21 = vector.load %arg15[%c0_20, %c0_21, %c0_22] : memref<4x8x512xf32, #tpu.memory_space<vmem>>, vector<4x8x512xf32>
    tpu.vector_store %arg15[%c0_20, %c0_21, %c0_22], %20 {strides = array<i32>} : memref<4x8x512xf32, #tpu.memory_space<vmem>>, vector<4x8x512xf32>,
    %c0_i32 = arith.constant 0 : i32
    %22 = arith.cmpi eq, %arg1, %c0_i32 : i32
    %23 = arith.extui %22 : i1 to i32
    %c0_i32_23 = arith.constant 0 : i32
    %24 = arith.cmpi ne, %23, %c0_i32_23 : i32
    scf.if %24 {
      %cst_161 = arith.constant 0.000000e+00 : f32
      %351 = vector.broadcast %cst_161 : f32 to vector<8x128xf32>
      %c0_162 = arith.constant 0 : index
      %c0_163 = arith.constant 0 : index
      %352 = vector.load %arg13[%c0_162, %c0_163] : memref<8x128xf32, #tpu.memory_space<vmem>>, vector<8x128xf32>
      tpu.vector_store %arg13[%c0_162, %c0_163], %351 {strides = array<i32>} : memref<8x128xf32, #tpu.memory_space<vmem>>, vector<8x128xf32>,
      %cst_164 = arith.constant 0.000000e+00 : f32
      %353 = vector.broadcast %cst_164 : f32 to vector<8x128xf32>
      %c0_165 = arith.constant 0 : index
      %c0_166 = arith.constant 0 : index
      %354 = vector.load %arg14[%c0_165, %c0_166] : memref<8x128xf32, #tpu.memory_space<vmem>>, vector<8x128xf32>
      tpu.vector_store %arg14[%c0_165, %c0_166], %353 {strides = array<i32>} : memref<8x128xf32, #tpu.memory_space<vmem>>, vector<8x128xf32>,
      %cst_167 = arith.constant 0.000000e+00 : f32
      %355 = vector.broadcast %cst_167 : f32 to vector<8x128xf32>
      %c0_168 = arith.constant 0 : index
      %c0_169 = arith.constant 0 : index
      %356 = vector.load %arg17[%c0_168, %c0_169] : memref<8x128xf32, #tpu.memory_space<vmem>>, vector<8x128xf32>
      tpu.vector_store %arg17[%c0_168, %c0_169], %355 {strides = array<i32>} : memref<8x128xf32, #tpu.memory_space<vmem>>, vector<8x128xf32>,
      %cst_170 = arith.constant 0.000000e+00 : f32
      %357 = vector.broadcast %cst_170 : f32 to vector<8x128xf32>
      %c0_171 = arith.constant 0 : index
      %c0_172 = arith.constant 0 : index
      %358 = vector.load %arg18[%c0_171, %c0_172] : memref<8x128xf32, #tpu.memory_space<vmem>>, vector<8x128xf32>
      tpu.vector_store %arg18[%c0_171, %c0_172], %357 {strides = array<i32>} : memref<8x128xf32, #tpu.memory_space<vmem>>, vector<8x128xf32>,
    } else {
    }
    %c0_24 = arith.constant 0 : index
    %c0_25 = arith.constant 0 : index
    %25 = vector.load %arg13[%c0_24, %c0_25] : memref<8x128xf32, #tpu.memory_space<vmem>>, vector<8x128xf32>
    %c0_26 = arith.constant 0 : index
    %c0_27 = arith.constant 0 : index
    %26 = vector.load %arg17[%c0_26, %c0_27] : memref<8x128xf32, #tpu.memory_space<vmem>>, vector<8x128xf32>
    %c0_28 = arith.constant 0 : index
    %c0_29 = arith.constant 0 : index
    %27 = vector.load %arg14[%c0_28, %c0_29] : memref<8x128xf32, #tpu.memory_space<vmem>>, vector<8x128xf32>
    %c0_30 = arith.constant 0 : index
    %c0_31 = arith.constant 0 : index
    %28 = vector.load %arg18[%c0_30, %c0_31] : memref<8x128xf32, #tpu.memory_space<vmem>>, vector<8x128xf32>
    %c0_i32_32 = arith.constant 0 : i32
    %29 = arith.index_cast %c0_i32_32 : i32 to index
    %c0_33 = arith.constant 0 : index
    %c0_34 = arith.constant 0 : index
    %30 = vector.load %arg11[%29, %c0_33, %c0_34] : memref<4x8x512xf32, #tpu.memory_space<vmem>>, vector<1x8x512xf32>
    %31 = vector.shape_cast %30 : vector<1x8x512xf32> to vector<8x512xf32>
    %c0_35 = arith.constant 0 : index
    %c0_36 = arith.constant 0 : index
    %c0_37 = arith.constant 0 : index
    %32 = vector.load %arg5[%c0_35, %c0_36, %c0_37] : memref<2x128x512xf32, #tpu.memory_space<vmem>>, vector<1x128x512xf32>
    %33 = vector.shape_cast %32 : vector<1x128x512xf32> to vector<128x512xf32>
    %cst_38 = arith.constant dense<0.000000e+00> : vector<8x512xf32>
    %34 = tpu.matmul %25, %33, %cst_38 {dimension_numbers = #tpu.dot_dimension_numbers<[1], [0], [0], [1], [0, 0, 1, 1], [], []>} : vector<8x128xf32>, vector<128x512xf32>, vector<8x512xf32> -> vector<8x512xf32>
    %35 = arith.addf %31, %34 : vector<8x512xf32>
    %36 = vector.extract_strided_slice %35 {offsets = [0, 0], sizes = [8, 128], strides = [1, 1]} : vector<8x512xf32> to vector<8x128xf32>
    %37 = arith.negf %36 : vector<8x128xf32>
    %38 = math.exp %37 : vector<8x128xf32>
    %cst_39 = arith.constant 1.000000e+00 : f32
    %39 = vector.broadcast %cst_39 : f32 to vector<8x128xf32>
    %40 = arith.addf %39, %38 : vector<8x128xf32>
    %41 = arith.divf %39, %40 : vector<8x128xf32>
    %42 = vector.extract_strided_slice %35 {offsets = [0, 128], sizes = [8, 128], strides = [1, 1]} : vector<8x512xf32> to vector<8x128xf32>
    %43 = arith.negf %42 : vector<8x128xf32>
    %44 = math.exp %43 : vector<8x128xf32>
    %cst_40 = arith.constant 1.000000e+00 : f32
    %45 = vector.broadcast %cst_40 : f32 to vector<8x128xf32>
    %46 = arith.addf %45, %44 : vector<8x128xf32>
    %47 = arith.divf %45, %46 : vector<8x128xf32>
    %48 = vector.extract_strided_slice %35 {offsets = [0, 256], sizes = [8, 128], strides = [1, 1]} : vector<8x512xf32> to vector<8x128xf32>
    %49 = math.tanh %48 : vector<8x128xf32>
    %50 = vector.extract_strided_slice %35 {offsets = [0, 384], sizes = [8, 128], strides = [1, 1]} : vector<8x512xf32> to vector<8x128xf32>
    %51 = arith.negf %50 : vector<8x128xf32>
    %52 = math.exp %51 : vector<8x128xf32>
    %cst_41 = arith.constant 1.000000e+00 : f32
    %53 = vector.broadcast %cst_41 : f32 to vector<8x128xf32>
    %54 = arith.addf %53, %52 : vector<8x128xf32>
    %55 = arith.divf %53, %54 : vector<8x128xf32>
    %56 = arith.mulf %47, %27 : vector<8x128xf32>
    %57 = arith.mulf %41, %49 : vector<8x128xf32>
    %58 = arith.addf %56, %57 : vector<8x128xf32>
    %59 = math.tanh %58 : vector<8x128xf32>
    %60 = arith.mulf %55, %59 : vector<8x128xf32>
    %61 = arith.index_cast %c0_i32_32 : i32 to index
    %c0_42 = arith.constant 0 : index
    %c0_43 = arith.constant 0 : index
    %62 = vector.load %arg12[%61, %c0_42, %c0_43] : memref<4x8x128xf32, #tpu.memory_space<vmem>>, vector<1x8x128xf32>
    %63 = vector.shape_cast %62 : vector<1x8x128xf32> to vector<8x128xf32>
    %64 = vector.shape_cast %60 : vector<8x128xf32> to vector<1x8x128xf32>
    tpu.vector_store %arg12[%61, %c0_42, %c0_43], %64 {strides = array<i32>} : memref<4x8x128xf32, #tpu.memory_space<vmem>>, vector<1x8x128xf32>,
    %c3_i32 = arith.constant 3 : i32
    %65 = arith.subi %c3_i32, %c0_i32_32 : i32
    %66 = arith.index_cast %65 : i32 to index
    %c0_44 = arith.constant 0 : index
    %c0_45 = arith.constant 0 : index
    %67 = vector.load %arg15[%66, %c0_44, %c0_45] : memref<4x8x512xf32, #tpu.memory_space<vmem>>, vector<1x8x512xf32>
    %68 = vector.shape_cast %67 : vector<1x8x512xf32> to vector<8x512xf32>
    %c1_46 = arith.constant 1 : index
    %c0_47 = arith.constant 0 : index
    %c0_48 = arith.constant 0 : index
    %69 = vector.load %arg5[%c1_46, %c0_47, %c0_48] : memref<2x128x512xf32, #tpu.memory_space<vmem>>, vector<1x128x512xf32>
    %70 = vector.shape_cast %69 : vector<1x128x512xf32> to vector<128x512xf32>
    %cst_49 = arith.constant dense<0.000000e+00> : vector<8x512xf32>
    %71 = tpu.matmul %26, %70, %cst_49 {dimension_numbers = #tpu.dot_dimension_numbers<[1], [0], [0], [1], [0, 0, 1, 1], [], []>} : vector<8x128xf32>, vector<128x512xf32>, vector<8x512xf32> -> vector<8x512xf32>
    %72 = arith.addf %68, %71 : vector<8x512xf32>
    %73 = vector.extract_strided_slice %72 {offsets = [0, 0], sizes = [8, 128], strides = [1, 1]} : vector<8x512xf32> to vector<8x128xf32>
    %74 = arith.negf %73 : vector<8x128xf32>
    %75 = math.exp %74 : vector<8x128xf32>
    %cst_50 = arith.constant 1.000000e+00 : f32
    %76 = vector.broadcast %cst_50 : f32 to vector<8x128xf32>
    %77 = arith.addf %76, %75 : vector<8x128xf32>
    %78 = arith.divf %76, %77 : vector<8x128xf32>
    %79 = vector.extract_strided_slice %72 {offsets = [0, 128], sizes = [8, 128], strides = [1, 1]} : vector<8x512xf32> to vector<8x128xf32>
    %80 = arith.negf %79 : vector<8x128xf32>
    %81 = math.exp %80 : vector<8x128xf32>
    %cst_51 = arith.constant 1.000000e+00 : f32
    %82 = vector.broadcast %cst_51 : f32 to vector<8x128xf32>
    %83 = arith.addf %82, %81 : vector<8x128xf32>
    %84 = arith.divf %82, %83 : vector<8x128xf32>
    %85 = vector.extract_strided_slice %72 {offsets = [0, 256], sizes = [8, 128], strides = [1, 1]} : vector<8x512xf32> to vector<8x128xf32>
    %86 = math.tanh %85 : vector<8x128xf32>
    %87 = vector.extract_strided_slice %72 {offsets = [0, 384], sizes = [8, 128], strides = [1, 1]} : vector<8x512xf32> to vector<8x128xf32>
    %88 = arith.negf %87 : vector<8x128xf32>
    %89 = math.exp %88 : vector<8x128xf32>
    %cst_52 = arith.constant 1.000000e+00 : f32
    %90 = vector.broadcast %cst_52 : f32 to vector<8x128xf32>
    %91 = arith.addf %90, %89 : vector<8x128xf32>
    %92 = arith.divf %90, %91 : vector<8x128xf32>
    %93 = arith.mulf %84, %28 : vector<8x128xf32>
    %94 = arith.mulf %78, %86 : vector<8x128xf32>
    %95 = arith.addf %93, %94 : vector<8x128xf32>
    %96 = math.tanh %95 : vector<8x128xf32>
    %97 = arith.mulf %92, %96 : vector<8x128xf32>
    %98 = arith.index_cast %65 : i32 to index
    %c0_53 = arith.constant 0 : index
    %c0_54 = arith.constant 0 : index
    %99 = vector.load %arg16[%98, %c0_53, %c0_54] : memref<4x8x128xf32, #tpu.memory_space<vmem>>, vector<1x8x128xf32>
    %100 = vector.shape_cast %99 : vector<1x8x128xf32> to vector<8x128xf32>
    %101 = vector.shape_cast %97 : vector<8x128xf32> to vector<1x8x128xf32>
    tpu.vector_store %arg16[%98, %c0_53, %c0_54], %101 {strides = array<i32>} : memref<4x8x128xf32, #tpu.memory_space<vmem>>, vector<1x8x128xf32>,
    %c1_i32 = arith.constant 1 : i32
    %102 = arith.index_cast %c1_i32 : i32 to index
    %c0_55 = arith.constant 0 : index
    %c0_56 = arith.constant 0 : index
    %103 = vector.load %arg11[%102, %c0_55, %c0_56] : memref<4x8x512xf32, #tpu.memory_space<vmem>>, vector<1x8x512xf32>
    %104 = vector.shape_cast %103 : vector<1x8x512xf32> to vector<8x512xf32>
    %c0_57 = arith.constant 0 : index
    %c0_58 = arith.constant 0 : index
    %c0_59 = arith.constant 0 : index
    %105 = vector.load %arg5[%c0_57, %c0_58, %c0_59] : memref<2x128x512xf32, #tpu.memory_space<vmem>>, vector<1x128x512xf32>
    %106 = vector.shape_cast %105 : vector<1x128x512xf32> to vector<128x512xf32>
    %cst_60 = arith.constant dense<0.000000e+00> : vector<8x512xf32>
    %107 = tpu.matmul %60, %106, %cst_60 {dimension_numbers = #tpu.dot_dimension_numbers<[1], [0], [0], [1], [0, 0, 1, 1], [], []>} : vector<8x128xf32>, vector<128x512xf32>, vector<8x512xf32> -> vector<8x512xf32>
    %108 = arith.addf %104, %107 : vector<8x512xf32>
    %109 = vector.extract_strided_slice %108 {offsets = [0, 0], sizes = [8, 128], strides = [1, 1]} : vector<8x512xf32> to vector<8x128xf32>
    %110 = arith.negf %109 : vector<8x128xf32>
    %111 = math.exp %110 : vector<8x128xf32>
    %cst_61 = arith.constant 1.000000e+00 : f32
    %112 = vector.broadcast %cst_61 : f32 to vector<8x128xf32>
    %113 = arith.addf %112, %111 : vector<8x128xf32>
    %114 = arith.divf %112, %113 : vector<8x128xf32>
    %115 = vector.extract_strided_slice %108 {offsets = [0, 128], sizes = [8, 128], strides = [1, 1]} : vector<8x512xf32> to vector<8x128xf32>
    %116 = arith.negf %115 : vector<8x128xf32>
    %117 = math.exp %116 : vector<8x128xf32>
    %cst_62 = arith.constant 1.000000e+00 : f32
    %118 = vector.broadcast %cst_62 : f32 to vector<8x128xf32>
    %119 = arith.addf %118, %117 : vector<8x128xf32>
    %120 = arith.divf %118, %119 : vector<8x128xf32>
    %121 = vector.extract_strided_slice %108 {offsets = [0, 256], sizes = [8, 128], strides = [1, 1]} : vector<8x512xf32> to vector<8x128xf32>
    %122 = math.tanh %121 : vector<8x128xf32>
    %123 = vector.extract_strided_slice %108 {offsets = [0, 384], sizes = [8, 128], strides = [1, 1]} : vector<8x512xf32> to vector<8x128xf32>
    %124 = arith.negf %123 : vector<8x128xf32>
    %125 = math.exp %124 : vector<8x128xf32>
    %cst_63 = arith.constant 1.000000e+00 : f32
    %126 = vector.broadcast %cst_63 : f32 to vector<8x128xf32>
    %127 = arith.addf %126, %125 : vector<8x128xf32>
    %128 = arith.divf %126, %127 : vector<8x128xf32>
    %129 = arith.mulf %120, %58 : vector<8x128xf32>
    %130 = arith.mulf %114, %122 : vector<8x128xf32>
    %131 = arith.addf %129, %130 : vector<8x128xf32>
    %132 = math.tanh %131 : vector<8x128xf32>
    %133 = arith.mulf %128, %132 : vector<8x128xf32>
    %134 = arith.index_cast %c1_i32 : i32 to index
    %c0_64 = arith.constant 0 : index
    %c0_65 = arith.constant 0 : index
    %135 = vector.load %arg12[%134, %c0_64, %c0_65] : memref<4x8x128xf32, #tpu.memory_space<vmem>>, vector<1x8x128xf32>
    %136 = vector.shape_cast %135 : vector<1x8x128xf32> to vector<8x128xf32>
    %137 = vector.shape_cast %133 : vector<8x128xf32> to vector<1x8x128xf32>
    tpu.vector_store %arg12[%134, %c0_64, %c0_65], %137 {strides = array<i32>} : memref<4x8x128xf32, #tpu.memory_space<vmem>>, vector<1x8x128xf32>,
    %c3_i32_66 = arith.constant 3 : i32
    %138 = arith.subi %c3_i32_66, %c1_i32 : i32
    %139 = arith.index_cast %138 : i32 to index
    %c0_67 = arith.constant 0 : index
    %c0_68 = arith.constant 0 : index
    %140 = vector.load %arg15[%139, %c0_67, %c0_68] : memref<4x8x512xf32, #tpu.memory_space<vmem>>, vector<1x8x512xf32>
    %141 = vector.shape_cast %140 : vector<1x8x512xf32> to vector<8x512xf32>
    %c1_69 = arith.constant 1 : index
    %c0_70 = arith.constant 0 : index
    %c0_71 = arith.constant 0 : index
    %142 = vector.load %arg5[%c1_69, %c0_70, %c0_71] : memref<2x128x512xf32, #tpu.memory_space<vmem>>, vector<1x128x512xf32>
    %143 = vector.shape_cast %142 : vector<1x128x512xf32> to vector<128x512xf32>
    %cst_72 = arith.constant dense<0.000000e+00> : vector<8x512xf32>
    %144 = tpu.matmul %97, %143, %cst_72 {dimension_numbers = #tpu.dot_dimension_numbers<[1], [0], [0], [1], [0, 0, 1, 1], [], []>} : vector<8x128xf32>, vector<128x512xf32>, vector<8x512xf32> -> vector<8x512xf32>
    %145 = arith.addf %141, %144 : vector<8x512xf32>
    %146 = vector.extract_strided_slice %145 {offsets = [0, 0], sizes = [8, 128], strides = [1, 1]} : vector<8x512xf32> to vector<8x128xf32>
    %147 = arith.negf %146 : vector<8x128xf32>
    %148 = math.exp %147 : vector<8x128xf32>
    %cst_73 = arith.constant 1.000000e+00 : f32
    %149 = vector.broadcast %cst_73 : f32 to vector<8x128xf32>
    %150 = arith.addf %149, %148 : vector<8x128xf32>
    %151 = arith.divf %149, %150 : vector<8x128xf32>
    %152 = vector.extract_strided_slice %145 {offsets = [0, 128], sizes = [8, 128], strides = [1, 1]} : vector<8x512xf32> to vector<8x128xf32>
    %153 = arith.negf %152 : vector<8x128xf32>
    %154 = math.exp %153 : vector<8x128xf32>
    %cst_74 = arith.constant 1.000000e+00 : f32
    %155 = vector.broadcast %cst_74 : f32 to vector<8x128xf32>
    %156 = arith.addf %155, %154 : vector<8x128xf32>
    %157 = arith.divf %155, %156 : vector<8x128xf32>
    %158 = vector.extract_strided_slice %145 {offsets = [0, 256], sizes = [8, 128], strides = [1, 1]} : vector<8x512xf32> to vector<8x128xf32>
    %159 = math.tanh %158 : vector<8x128xf32>
    %160 = vector.extract_strided_slice %145 {offsets = [0, 384], sizes = [8, 128], strides = [1, 1]} : vector<8x512xf32> to vector<8x128xf32>
    %161 = arith.negf %160 : vector<8x128xf32>
    %162 = math.exp %161 : vector<8x128xf32>
    %cst_75 = arith.constant 1.000000e+00 : f32
    %163 = vector.broadcast %cst_75 : f32 to vector<8x128xf32>
    %164 = arith.addf %163, %162 : vector<8x128xf32>
    %165 = arith.divf %163, %164 : vector<8x128xf32>
    %166 = arith.mulf %157, %95 : vector<8x128xf32>
    %167 = arith.mulf %151, %159 : vector<8x128xf32>
    %168 = arith.addf %166, %167 : vector<8x128xf32>
    %169 = math.tanh %168 : vector<8x128xf32>
    %170 = arith.mulf %165, %169 : vector<8x128xf32>
    %171 = arith.index_cast %138 : i32 to index
    %c0_76 = arith.constant 0 : index
    %c0_77 = arith.constant 0 : index
    %172 = vector.load %arg16[%171, %c0_76, %c0_77] : memref<4x8x128xf32, #tpu.memory_space<vmem>>, vector<1x8x128xf32>
    %173 = vector.shape_cast %172 : vector<1x8x128xf32> to vector<8x128xf32>
    %174 = vector.shape_cast %170 : vector<8x128xf32> to vector<1x8x128xf32>
    tpu.vector_store %arg16[%171, %c0_76, %c0_77], %174 {strides = array<i32>} : memref<4x8x128xf32, #tpu.memory_space<vmem>>, vector<1x8x128xf32>,
    %c2_i32 = arith.constant 2 : i32
    %175 = arith.index_cast %c2_i32 : i32 to index
    %c0_78 = arith.constant 0 : index
    %c0_79 = arith.constant 0 : index
    %176 = vector.load %arg11[%175, %c0_78, %c0_79] : memref<4x8x512xf32, #tpu.memory_space<vmem>>, vector<1x8x512xf32>
    %177 = vector.shape_cast %176 : vector<1x8x512xf32> to vector<8x512xf32>
    %c0_80 = arith.constant 0 : index
    %c0_81 = arith.constant 0 : index
    %c0_82 = arith.constant 0 : index
    %178 = vector.load %arg5[%c0_80, %c0_81, %c0_82] : memref<2x128x512xf32, #tpu.memory_space<vmem>>, vector<1x128x512xf32>
    %179 = vector.shape_cast %178 : vector<1x128x512xf32> to vector<128x512xf32>
    %cst_83 = arith.constant dense<0.000000e+00> : vector<8x512xf32>
    %180 = tpu.matmul %133, %179, %cst_83 {dimension_numbers = #tpu.dot_dimension_numbers<[1], [0], [0], [1], [0, 0, 1, 1], [], []>} : vector<8x128xf32>, vector<128x512xf32>, vector<8x512xf32> -> vector<8x512xf32>
    %181 = arith.addf %177, %180 : vector<8x512xf32>
    %182 = vector.extract_strided_slice %181 {offsets = [0, 0], sizes = [8, 128], strides = [1, 1]} : vector<8x512xf32> to vector<8x128xf32>
    %183 = arith.negf %182 : vector<8x128xf32>
    %184 = math.exp %183 : vector<8x128xf32>
    %cst_84 = arith.constant 1.000000e+00 : f32
    %185 = vector.broadcast %cst_84 : f32 to vector<8x128xf32>
    %186 = arith.addf %185, %184 : vector<8x128xf32>
    %187 = arith.divf %185, %186 : vector<8x128xf32>
    %188 = vector.extract_strided_slice %181 {offsets = [0, 128], sizes = [8, 128], strides = [1, 1]} : vector<8x512xf32> to vector<8x128xf32>
    %189 = arith.negf %188 : vector<8x128xf32>
    %190 = math.exp %189 : vector<8x128xf32>
    %cst_85 = arith.constant 1.000000e+00 : f32
    %191 = vector.broadcast %cst_85 : f32 to vector<8x128xf32>
    %192 = arith.addf %191, %190 : vector<8x128xf32>
    %193 = arith.divf %191, %192 : vector<8x128xf32>
    %194 = vector.extract_strided_slice %181 {offsets = [0, 256], sizes = [8, 128], strides = [1, 1]} : vector<8x512xf32> to vector<8x128xf32>
    %195 = math.tanh %194 : vector<8x128xf32>
    %196 = vector.extract_strided_slice %181 {offsets = [0, 384], sizes = [8, 128], strides = [1, 1]} : vector<8x512xf32> to vector<8x128xf32>
    %197 = arith.negf %196 : vector<8x128xf32>
    %198 = math.exp %197 : vector<8x128xf32>
    %cst_86 = arith.constant 1.000000e+00 : f32
    %199 = vector.broadcast %cst_86 : f32 to vector<8x128xf32>
    %200 = arith.addf %199, %198 : vector<8x128xf32>
    %201 = arith.divf %199, %200 : vector<8x128xf32>
    %202 = arith.mulf %193, %131 : vector<8x128xf32>
    %203 = arith.mulf %187, %195 : vector<8x128xf32>
    %204 = arith.addf %202, %203 : vector<8x128xf32>
    %205 = math.tanh %204 : vector<8x128xf32>
    %206 = arith.mulf %201, %205 : vector<8x128xf32>
    %207 = arith.index_cast %c2_i32 : i32 to index
    %c0_87 = arith.constant 0 : index
    %c0_88 = arith.constant 0 : index
    %208 = vector.load %arg12[%207, %c0_87, %c0_88] : memref<4x8x128xf32, #tpu.memory_space<vmem>>, vector<1x8x128xf32>
    %209 = vector.shape_cast %208 : vector<1x8x128xf32> to vector<8x128xf32>
    %210 = vector.shape_cast %206 : vector<8x128xf32> to vector<1x8x128xf32>
    tpu.vector_store %arg12[%207, %c0_87, %c0_88], %210 {strides = array<i32>} : memref<4x8x128xf32, #tpu.memory_space<vmem>>, vector<1x8x128xf32>,
    %c3_i32_89 = arith.constant 3 : i32
    %211 = arith.subi %c3_i32_89, %c2_i32 : i32
    %212 = arith.index_cast %211 : i32 to index
    %c0_90 = arith.constant 0 : index
    %c0_91 = arith.constant 0 : index
    %213 = vector.load %arg15[%212, %c0_90, %c0_91] : memref<4x8x512xf32, #tpu.memory_space<vmem>>, vector<1x8x512xf32>
    %214 = vector.shape_cast %213 : vector<1x8x512xf32> to vector<8x512xf32>
    %c1_92 = arith.constant 1 : index
    %c0_93 = arith.constant 0 : index
    %c0_94 = arith.constant 0 : index
    %215 = vector.load %arg5[%c1_92, %c0_93, %c0_94] : memref<2x128x512xf32, #tpu.memory_space<vmem>>, vector<1x128x512xf32>
    %216 = vector.shape_cast %215 : vector<1x128x512xf32> to vector<128x512xf32>
    %cst_95 = arith.constant dense<0.000000e+00> : vector<8x512xf32>
    %217 = tpu.matmul %170, %216, %cst_95 {dimension_numbers = #tpu.dot_dimension_numbers<[1], [0], [0], [1], [0, 0, 1, 1], [], []>} : vector<8x128xf32>, vector<128x512xf32>, vector<8x512xf32> -> vector<8x512xf32>
    %218 = arith.addf %214, %217 : vector<8x512xf32>
    %219 = vector.extract_strided_slice %218 {offsets = [0, 0], sizes = [8, 128], strides = [1, 1]} : vector<8x512xf32> to vector<8x128xf32>
    %220 = arith.negf %219 : vector<8x128xf32>
    %221 = math.exp %220 : vector<8x128xf32>
    %cst_96 = arith.constant 1.000000e+00 : f32
    %222 = vector.broadcast %cst_96 : f32 to vector<8x128xf32>
    %223 = arith.addf %222, %221 : vector<8x128xf32>
    %224 = arith.divf %222, %223 : vector<8x128xf32>
    %225 = vector.extract_strided_slice %218 {offsets = [0, 128], sizes = [8, 128], strides = [1, 1]} : vector<8x512xf32> to vector<8x128xf32>
    %226 = arith.negf %225 : vector<8x128xf32>
    %227 = math.exp %226 : vector<8x128xf32>
    %cst_97 = arith.constant 1.000000e+00 : f32
    %228 = vector.broadcast %cst_97 : f32 to vector<8x128xf32>
    %229 = arith.addf %228, %227 : vector<8x128xf32>
    %230 = arith.divf %228, %229 : vector<8x128xf32>
    %231 = vector.extract_strided_slice %218 {offsets = [0, 256], sizes = [8, 128], strides = [1, 1]} : vector<8x512xf32> to vector<8x128xf32>
    %232 = math.tanh %231 : vector<8x128xf32>
    %233 = vector.extract_strided_slice %218 {offsets = [0, 384], sizes = [8, 128], strides = [1, 1]} : vector<8x512xf32> to vector<8x128xf32>
    %234 = arith.negf %233 : vector<8x128xf32>
    %235 = math.exp %234 : vector<8x128xf32>
    %cst_98 = arith.constant 1.000000e+00 : f32
    %236 = vector.broadcast %cst_98 : f32 to vector<8x128xf32>
    %237 = arith.addf %236, %235 : vector<8x128xf32>
    %238 = arith.divf %236, %237 : vector<8x128xf32>
    %239 = arith.mulf %230, %168 : vector<8x128xf32>
    %240 = arith.mulf %224, %232 : vector<8x128xf32>
    %241 = arith.addf %239, %240 : vector<8x128xf32>
    %242 = math.tanh %241 : vector<8x128xf32>
    %243 = arith.mulf %238, %242 : vector<8x128xf32>
    %244 = arith.index_cast %211 : i32 to index
    %c0_99 = arith.constant 0 : index
    %c0_100 = arith.constant 0 : index
    %245 = vector.load %arg16[%244, %c0_99, %c0_100] : memref<4x8x128xf32, #tpu.memory_space<vmem>>, vector<1x8x128xf32>
    %246 = vector.shape_cast %245 : vector<1x8x128xf32> to vector<8x128xf32>
    %247 = vector.shape_cast %243 : vector<8x128xf32> to vector<1x8x128xf32>
    tpu.vector_store %arg16[%244, %c0_99, %c0_100], %247 {strides = array<i32>} : memref<4x8x128xf32, #tpu.memory_space<vmem>>, vector<1x8x128xf32>,
    %c3_i32_101 = arith.constant 3 : i32
    %248 = arith.index_cast %c3_i32_101 : i32 to index
    %c0_102 = arith.constant 0 : index
    %c0_103 = arith.constant 0 : index
    %249 = vector.load %arg11[%248, %c0_102, %c0_103] : memref<4x8x512xf32, #tpu.memory_space<vmem>>, vector<1x8x512xf32>
    %250 = vector.shape_cast %249 : vector<1x8x512xf32> to vector<8x512xf32>
    %c0_104 = arith.constant 0 : index
    %c0_105 = arith.constant 0 : index
    %c0_106 = arith.constant 0 : index
    %251 = vector.load %arg5[%c0_104, %c0_105, %c0_106] : memref<2x128x512xf32, #tpu.memory_space<vmem>>, vector<1x128x512xf32>
    %252 = vector.shape_cast %251 : vector<1x128x512xf32> to vector<128x512xf32>
    %cst_107 = arith.constant dense<0.000000e+00> : vector<8x512xf32>
    %253 = tpu.matmul %206, %252, %cst_107 {dimension_numbers = #tpu.dot_dimension_numbers<[1], [0], [0], [1], [0, 0, 1, 1], [], []>} : vector<8x128xf32>, vector<128x512xf32>, vector<8x512xf32> -> vector<8x512xf32>
    %254 = arith.addf %250, %253 : vector<8x512xf32>
    %255 = vector.extract_strided_slice %254 {offsets = [0, 0], sizes = [8, 128], strides = [1, 1]} : vector<8x512xf32> to vector<8x128xf32>
    %256 = arith.negf %255 : vector<8x128xf32>
    %257 = math.exp %256 : vector<8x128xf32>
    %cst_108 = arith.constant 1.000000e+00 : f32
    %258 = vector.broadcast %cst_108 : f32 to vector<8x128xf32>
    %259 = arith.addf %258, %257 : vector<8x128xf32>
    %260 = arith.divf %258, %259 : vector<8x128xf32>
    %261 = vector.extract_strided_slice %254 {offsets = [0, 128], sizes = [8, 128], strides = [1, 1]} : vector<8x512xf32> to vector<8x128xf32>
    %262 = arith.negf %261 : vector<8x128xf32>
    %263 = math.exp %262 : vector<8x128xf32>
    %cst_109 = arith.constant 1.000000e+00 : f32
    %264 = vector.broadcast %cst_109 : f32 to vector<8x128xf32>
    %265 = arith.addf %264, %263 : vector<8x128xf32>
    %266 = arith.divf %264, %265 : vector<8x128xf32>
    %267 = vector.extract_strided_slice %254 {offsets = [0, 256], sizes = [8, 128], strides = [1, 1]} : vector<8x512xf32> to vector<8x128xf32>
    %268 = math.tanh %267 : vector<8x128xf32>
    %269 = vector.extract_strided_slice %254 {offsets = [0, 384], sizes = [8, 128], strides = [1, 1]} : vector<8x512xf32> to vector<8x128xf32>
    %270 = arith.negf %269 : vector<8x128xf32>
    %271 = math.exp %270 : vector<8x128xf32>
    %cst_110 = arith.constant 1.000000e+00 : f32
    %272 = vector.broadcast %cst_110 : f32 to vector<8x128xf32>
    %273 = arith.addf %272, %271 : vector<8x128xf32>
    %274 = arith.divf %272, %273 : vector<8x128xf32>
    %275 = arith.mulf %266, %204 : vector<8x128xf32>
    %276 = arith.mulf %260, %268 : vector<8x128xf32>
    %277 = arith.addf %275, %276 : vector<8x128xf32>
    %278 = math.tanh %277 : vector<8x128xf32>
    %279 = arith.mulf %274, %278 : vector<8x128xf32>
    %280 = arith.index_cast %c3_i32_101 : i32 to index
    %c0_111 = arith.constant 0 : index
    %c0_112 = arith.constant 0 : index
    %281 = vector.load %arg12[%280, %c0_111, %c0_112] : memref<4x8x128xf32, #tpu.memory_space<vmem>>, vector<1x8x128xf32>
    %282 = vector.shape_cast %281 : vector<1x8x128xf32> to vector<8x128xf32>
    %283 = vector.shape_cast %279 : vector<8x128xf32> to vector<1x8x128xf32>
    tpu.vector_store %arg12[%280, %c0_111, %c0_112], %283 {strides = array<i32>} : memref<4x8x128xf32, #tpu.memory_space<vmem>>, vector<1x8x128xf32>,
    %c3_i32_113 = arith.constant 3 : i32
    %284 = arith.subi %c3_i32_113, %c3_i32_101 : i32
    %285 = arith.index_cast %284 : i32 to index
    %c0_114 = arith.constant 0 : index
    %c0_115 = arith.constant 0 : index
    %286 = vector.load %arg15[%285, %c0_114, %c0_115] : memref<4x8x512xf32, #tpu.memory_space<vmem>>, vector<1x8x512xf32>
    %287 = vector.shape_cast %286 : vector<1x8x512xf32> to vector<8x512xf32>
    %c1_116 = arith.constant 1 : index
    %c0_117 = arith.constant 0 : index
    %c0_118 = arith.constant 0 : index
    %288 = vector.load %arg5[%c1_116, %c0_117, %c0_118] : memref<2x128x512xf32, #tpu.memory_space<vmem>>, vector<1x128x512xf32>
    %289 = vector.shape_cast %288 : vector<1x128x512xf32> to vector<128x512xf32>
    %cst_119 = arith.constant dense<0.000000e+00> : vector<8x512xf32>
    %290 = tpu.matmul %243, %289, %cst_119 {dimension_numbers = #tpu.dot_dimension_numbers<[1], [0], [0], [1], [0, 0, 1, 1], [], []>} : vector<8x128xf32>, vector<128x512xf32>, vector<8x512xf32> -> vector<8x512xf32>
    %291 = arith.addf %287, %290 : vector<8x512xf32>
    %292 = vector.extract_strided_slice %291 {offsets = [0, 0], sizes = [8, 128], strides = [1, 1]} : vector<8x512xf32> to vector<8x128xf32>
    %293 = arith.negf %292 : vector<8x128xf32>
    %294 = math.exp %293 : vector<8x128xf32>
    %cst_120 = arith.constant 1.000000e+00 : f32
    %295 = vector.broadcast %cst_120 : f32 to vector<8x128xf32>
    %296 = arith.addf %295, %294 : vector<8x128xf32>
    %297 = arith.divf %295, %296 : vector<8x128xf32>
    %298 = vector.extract_strided_slice %291 {offsets = [0, 128], sizes = [8, 128], strides = [1, 1]} : vector<8x512xf32> to vector<8x128xf32>
    %299 = arith.negf %298 : vector<8x128xf32>
    %300 = math.exp %299 : vector<8x128xf32>
    %cst_121 = arith.constant 1.000000e+00 : f32
    %301 = vector.broadcast %cst_121 : f32 to vector<8x128xf32>
    %302 = arith.addf %301, %300 : vector<8x128xf32>
    %303 = arith.divf %301, %302 : vector<8x128xf32>
    %304 = vector.extract_strided_slice %291 {offsets = [0, 256], sizes = [8, 128], strides = [1, 1]} : vector<8x512xf32> to vector<8x128xf32>
    %305 = math.tanh %304 : vector<8x128xf32>
    %306 = vector.extract_strided_slice %291 {offsets = [0, 384], sizes = [8, 128], strides = [1, 1]} : vector<8x512xf32> to vector<8x128xf32>
    %307 = arith.negf %306 : vector<8x128xf32>
    %308 = math.exp %307 : vector<8x128xf32>
    %cst_122 = arith.constant 1.000000e+00 : f32
    %309 = vector.broadcast %cst_122 : f32 to vector<8x128xf32>
    %310 = arith.addf %309, %308 : vector<8x128xf32>
    %311 = arith.divf %309, %310 : vector<8x128xf32>
    %312 = arith.mulf %303, %241 : vector<8x128xf32>
    %313 = arith.mulf %297, %305 : vector<8x128xf32>
    %314 = arith.addf %312, %313 : vector<8x128xf32>
    %315 = math.tanh %314 : vector<8x128xf32>
    %316 = arith.mulf %311, %315 : vector<8x128xf32>
    %317 = arith.index_cast %284 : i32 to index
    %c0_123 = arith.constant 0 : index
    %c0_124 = arith.constant 0 : index
    %318 = vector.load %arg16[%317, %c0_123, %c0_124] : memref<4x8x128xf32, #tpu.memory_space<vmem>>, vector<1x8x128xf32>
    %319 = vector.shape_cast %318 : vector<1x8x128xf32> to vector<8x128xf32>
    %320 = vector.shape_cast %316 : vector<8x128xf32> to vector<1x8x128xf32>
    tpu.vector_store %arg16[%317, %c0_123, %c0_124], %320 {strides = array<i32>} : memref<4x8x128xf32, #tpu.memory_space<vmem>>, vector<1x8x128xf32>,
    %c4_i32 = arith.constant 4 : i32
    %c0_125 = arith.constant 0 : index
    %c0_126 = arith.constant 0 : index
    %321 = vector.load %arg13[%c0_125, %c0_126] : memref<8x128xf32, #tpu.memory_space<vmem>>, vector<8x128xf32>
    tpu.vector_store %arg13[%c0_125, %c0_126], %279 {strides = array<i32>} : memref<8x128xf32, #tpu.memory_space<vmem>>, vector<8x128xf32>,
    %c0_127 = arith.constant 0 : index
    %c0_128 = arith.constant 0 : index
    %322 = vector.load %arg14[%c0_127, %c0_128] : memref<8x128xf32, #tpu.memory_space<vmem>>, vector<8x128xf32>
    tpu.vector_store %arg14[%c0_127, %c0_128], %277 {strides = array<i32>} : memref<8x128xf32, #tpu.memory_space<vmem>>, vector<8x128xf32>,
    %c0_129 = arith.constant 0 : index
    %c0_130 = arith.constant 0 : index
    %323 = vector.load %arg17[%c0_129, %c0_130] : memref<8x128xf32, #tpu.memory_space<vmem>>, vector<8x128xf32>
    tpu.vector_store %arg17[%c0_129, %c0_130], %316 {strides = array<i32>} : memref<8x128xf32, #tpu.memory_space<vmem>>, vector<8x128xf32>,
    %c0_131 = arith.constant 0 : index
    %c0_132 = arith.constant 0 : index
    %324 = vector.load %arg18[%c0_131, %c0_132] : memref<8x128xf32, #tpu.memory_space<vmem>>, vector<8x128xf32>
    tpu.vector_store %arg18[%c0_131, %c0_132], %314 {strides = array<i32>} : memref<8x128xf32, #tpu.memory_space<vmem>>, vector<8x128xf32>,
    %c0_133 = arith.constant 0 : index
    %c0_134 = arith.constant 0 : index
    %c0_135 = arith.constant 0 : index
    %325 = vector.load %arg12[%c0_133, %c0_134, %c0_135] : memref<4x8x128xf32, #tpu.memory_space<vmem>>, vector<4x8x128xf32>
    %326 = vector.shape_cast %325 : vector<4x8x128xf32> to vector<32x128xf32>
    %c0_136 = arith.constant 0 : index
    %c0_137 = arith.constant 0 : index
    %c0_138 = arith.constant 0 : index
    %327 = vector.load %arg7[%c0_136, %c0_137, %c0_138] : memref<2x128x128xf32, #tpu.memory_space<vmem>>, vector<1x128x128xf32>
    %328 = vector.shape_cast %327 : vector<1x128x128xf32> to vector<128x128xf32>
    %cst_139 = arith.constant dense<0.000000e+00> : vector<32x128xf32>
    %329 = tpu.matmul %326, %328, %cst_139 {dimension_numbers = #tpu.dot_dimension_numbers<[1], [0], [0], [1], [0, 0, 1, 1], [], []>} : vector<32x128xf32>, vector<128x128xf32>, vector<32x128xf32> -> vector<32x128xf32>
    %c0_140 = arith.constant 0 : index
    %c0_141 = arith.constant 0 : index
    %c0_142 = arith.constant 0 : index
    %330 = vector.load %arg8[%c0_140, %c0_141, %c0_142] : memref<2x1x128xf32, #tpu.memory_space<vmem>>, vector<1x1x128xf32>
    %331 = vector.shape_cast %330 : vector<1x1x128xf32> to vector<1x128xf32>
    %332 = vector.broadcast %331 : vector<1x128xf32> to vector<32x128xf32>
    %333 = arith.addf %329, %332 : vector<32x128xf32>
    %334 = vector.shape_cast %333 : vector<32x128xf32> to vector<4x8x128xf32>
    %c0_143 = arith.constant 0 : index
    %c0_144 = arith.constant 0 : index
    %c0_145 = arith.constant 0 : index
    %c0_146 = arith.constant 0 : index
    %335 = vector.load %arg9[%c0_143, %c0_144, %c0_145, %c0_146] : memref<1x4x8x128xf32, #tpu.memory_space<vmem>>, vector<1x4x8x128xf32>
    %336 = vector.shape_cast %335 : vector<1x4x8x128xf32> to vector<4x8x128xf32>
    %337 = vector.shape_cast %334 : vector<4x8x128xf32> to vector<1x4x8x128xf32>
    tpu.vector_store %arg9[%c0_143, %c0_144, %c0_145, %c0_146], %337 {strides = array<i32>} : memref<1x4x8x128xf32, #tpu.memory_space<vmem>>, vector<1x4x8x128xf32>,
    %c0_147 = arith.constant 0 : index
    %c0_148 = arith.constant 0 : index
    %c0_149 = arith.constant 0 : index
    %338 = vector.load %arg16[%c0_147, %c0_148, %c0_149] : memref<4x8x128xf32, #tpu.memory_space<vmem>>, vector<4x8x128xf32>
    %339 = vector.shape_cast %338 : vector<4x8x128xf32> to vector<32x128xf32>
    %c1_150 = arith.constant 1 : index
    %c0_151 = arith.constant 0 : index
    %c0_152 = arith.constant 0 : index
    %340 = vector.load %arg7[%c1_150, %c0_151, %c0_152] : memref<2x128x128xf32, #tpu.memory_space<vmem>>, vector<1x128x128xf32>
    %341 = vector.shape_cast %340 : vector<1x128x128xf32> to vector<128x128xf32>
    %cst_153 = arith.constant dense<0.000000e+00> : vector<32x128xf32>
    %342 = tpu.matmul %339, %341, %cst_153 {dimension_numbers = #tpu.dot_dimension_numbers<[1], [0], [0], [1], [0, 0, 1, 1], [], []>} : vector<32x128xf32>, vector<128x128xf32>, vector<32x128xf32> -> vector<32x128xf32>
    %c1_154 = arith.constant 1 : index
    %c0_155 = arith.constant 0 : index
    %c0_156 = arith.constant 0 : index
    %343 = vector.load %arg8[%c1_154, %c0_155, %c0_156] : memref<2x1x128xf32, #tpu.memory_space<vmem>>, vector<1x1x128xf32>
    %344 = vector.shape_cast %343 : vector<1x1x128xf32> to vector<1x128xf32>
    %345 = vector.broadcast %344 : vector<1x128xf32> to vector<32x128xf32>
    %346 = arith.addf %342, %345 : vector<32x128xf32>
    %347 = vector.shape_cast %346 : vector<32x128xf32> to vector<4x8x128xf32>
    %c0_157 = arith.constant 0 : index
    %c0_158 = arith.constant 0 : index
    %c0_159 = arith.constant 0 : index
    %c0_160 = arith.constant 0 : index
    %348 = vector.load %arg10[%c0_157, %c0_158, %c0_159, %c0_160] : memref<1x4x8x128xf32, #tpu.memory_space<vmem>>, vector<1x4x8x128xf32>
    %349 = vector.shape_cast %348 : vector<1x4x8x128xf32> to vector<4x8x128xf32>
    %350 = vector.shape_cast %347 : vector<4x8x128xf32> to vector<1x4x8x128xf32>
    tpu.vector_store %arg10[%c0_157, %c0_158, %c0_159, %c0_160], %350 {strides = array<i32>} : memref<1x4x8x128xf32, #tpu.memory_space<vmem>>, vector<1x4x8x128xf32>,
    return
  }
  func.func @transform_0(%arg0: i32, %arg1: i32) -> (i32, i32, i32) {
    %c0_i32 = arith.constant 0 : i32
    %c0_i32_0 = arith.constant 0 : i32
    %c0_i32_1 = arith.constant 0 : i32
    return %arg1, %c0_i32, %c0_i32_0 : i32, i32, i32
  }
  func.func @transform_1(%arg0: i32, %arg1: i32) -> (i32, i32, i32) {
    %c3_i32 = arith.constant 3 : i32
    %0 = arith.subi %c3_i32, %arg1 : i32
    %c0_i32 = arith.constant 0 : i32
    %c0_i32_0 = arith.constant 0 : i32
    %c0_i32_1 = arith.constant 0 : i32
    return %0, %c0_i32, %c0_i32_0 : i32, i32, i32
  }
  func.func @transform_2(%arg0: i32, %arg1: i32) -> (i32, i32, i32) {
    %c0_i32 = arith.constant 0 : i32
    %c0_i32_0 = arith.constant 0 : i32
    %c0_i32_1 = arith.constant 0 : i32
    return %arg0, %c0_i32, %c0_i32_0 : i32, i32, i32
  }
  func.func @transform_3(%arg0: i32, %arg1: i32) -> (i32, i32, i32) {
    %c0_i32 = arith.constant 0 : i32
    %c0_i32_0 = arith.constant 0 : i32
    %c0_i32_1 = arith.constant 0 : i32
    return %arg0, %c0_i32, %c0_i32_0 : i32, i32, i32
  }
  func.func @transform_4(%arg0: i32, %arg1: i32) -> (i32, i32, i32) {
    %c0_i32 = arith.constant 0 : i32
    %c0_i32_0 = arith.constant 0 : i32
    %c0_i32_1 = arith.constant 0 : i32
    return %arg0, %c0_i32, %c0_i32_0 : i32, i32, i32
  }
  func.func @transform_5(%arg0: i32, %arg1: i32) -> (i32, i32, i32) {
    %c0_i32 = arith.constant 0 : i32
    %c0_i32_0 = arith.constant 0 : i32
    %c0_i32_1 = arith.constant 0 : i32
    return %arg0, %c0_i32, %c0_i32_0 : i32, i32, i32
  }
  func.func @transform_6(%arg0: i32, %arg1: i32) -> (i32, i32, i32) {
    %c0_i32 = arith.constant 0 : i32
    %c0_i32_0 = arith.constant 0 : i32
    %c0_i32_1 = arith.constant 0 : i32
    return %arg0, %c0_i32, %c0_i32_0 : i32, i32, i32
  }
  func.func @transform_7(%arg0: i32, %arg1: i32) -> (i32, i32, i32, i32) {
    %c0_i32 = arith.constant 0 : i32
    %c0_i32_0 = arith.constant 0 : i32
    %c0_i32_1 = arith.constant 0 : i32
    %c0_i32_2 = arith.constant 0 : i32
    return %c0_i32, %arg1, %c0_i32_0, %c0_i32_1 : i32, i32, i32, i32
  }
  func.func @transform_8(%arg0: i32, %arg1: i32) -> (i32, i32, i32, i32) {
    %c3_i32 = arith.constant 3 : i32
    %0 = arith.subi %c3_i32, %arg1 : i32
    %c0_i32 = arith.constant 0 : i32
    %c0_i32_0 = arith.constant 0 : i32
    %c0_i32_1 = arith.constant 0 : i32
    %c0_i32_2 = arith.constant 0 : i32
    return %c0_i32, %0, %c0_i32_0, %c0_i32_1 : i32, i32, i32, i32
  }
}

</mosaic_0001>

<llo_original>
// kernel: bidirectional_lstm.1
$region0: #{bidirectional_lstm.1}
  #allocation0 [shape = 'u32[]', space=smem, size = 0x4, offset = 0x4, fixed_abs, tag = 'smem constant byte address 0x4 - core index']
  #allocation1 [shape = 'u32[144,128]{1,0:T(1,128)}', space=vmem, size = 0x12000, scoped, tag = 'internal scratch']
  #allocation2 [shape = 'f32[4,8,512]{2,1,0:T(8,128)}', space=vmem, size = 0x10000, scoped, tag = 'scratch operand']
  #allocation3 [shape = 'f32[4,8,128]{2,1,0:T(8,128)}', space=vmem, size = 0x4000, scoped, tag = 'scratch operand']
  #allocation4 [shape = 'f32[8,128]{1,0:T(8,128)}', space=vmem, size = 0x1000, scoped, tag = 'scratch operand']
  #allocation5 [shape = 'f32[8,128]{1,0:T(8,128)}', space=vmem, size = 0x1000, scoped, tag = 'scratch operand']
  #allocation6 [shape = 'f32[4,8,512]{2,1,0:T(8,128)}', space=vmem, size = 0x10000, scoped, tag = 'scratch operand']
  #allocation7 [shape = 'f32[4,8,128]{2,1,0:T(8,128)}', space=vmem, size = 0x4000, scoped, tag = 'scratch operand']
  #allocation8 [shape = 'f32[8,128]{1,0:T(8,128)}', space=vmem, size = 0x1000, scoped, tag = 'scratch operand']
  #allocation9 [shape = 'f32[8,128]{1,0:T(8,128)}', space=vmem, size = 0x1000, scoped, tag = 'scratch operand']
  %s0 = inlined_call_operand.vmem [shape: f32[16,8,32], index: 0, kind: input, shape index: {}, may-alias: {0,1}]
  %s1 = inlined_call_operand.vmem [shape: f32[16,8,32], index: 1, kind: input, shape index: {}, may-alias: {0,1}]
  %s2 = inlined_call_operand.vmem [shape: f32[2,32,512], index: 2, kind: input, shape index: {}]
  %s3 = inlined_call_operand.vmem [shape: f32[2,128,512], index: 3, kind: input, shape index: {}]
  %s4 = inlined_call_operand.vmem [shape: f32[2,1,512], index: 4, kind: input, shape index: {}]
  %s5 = inlined_call_operand.vmem [shape: f32[2,128,128], index: 5, kind: input, shape index: {}]
  %s6 = inlined_call_operand.vmem [shape: f32[2,1,128], index: 6, kind: input, shape index: {}]
  %s7 = inlined_call_operand.vmem [shape: f32[1,16,8,128], index: 7, kind: output, shape index: {0}]
  %s8 = inlined_call_operand.vmem [shape: f32[1,16,8,128], index: 8, kind: output, shape index: {1}]
  %9 = xla_tuple %s7, %s8
  %s10 = sld [smem:[#allocation0]]
  $region73: #{bidirectional_lstm.1} parent=0
    _
  %s12 = ssub.s32 1, %s10
  %s13 = scalar_select 0, %s12, %s10
  loop: start=0, step=1, limit=6
  $region2: #{bidirectional_lstm.1} parent=0 // loop_pre_header
    _
  $region3: #{bidirectional_lstm.1} parent=0 // loop_header
    %s15 = sphi 0, %s19
    %p16 = scmp.ge.s32.totalorder %s15, 6
    %s22 = sphi 0, %s34
    %s23 = sphi 0, %s30
    %s24 = sphi 0, %s22
    %s25 = sphi 0, %s23
    %s26 = sphi 0, %s24
    %s27 = sphi 0, %s25
    %s37 = sphi 0, %s39
    %s40 = sphi 0, %s37
    %s41 = sphi 0, %s40
    %s57 = sphi 0, %s41
    %s65 = sphi 0, %s67
    %s68 = sphi 0, %s65
    %s69 = sphi 0, %s68
    %s85 = sphi 0, %s69
    %s91 = sphi 0, %s93
    %s94 = sphi 0, %s91
    %s95 = sphi 0, %s94
    %s111 = sphi 0, %s95
    %s117 = sphi 0, %s119
    %s120 = sphi 0, %s117
    %s121 = sphi 0, %s120
    %s137 = sphi 0, %s121
    %s143 = sphi 0, %s145
    %s146 = sphi 0, %s143
    %s147 = sphi 0, %s146
    %s163 = sphi 0, %s147
    %s169 = sphi 0, %s171
    %s172 = sphi 0, %s169
    %s173 = sphi 0, %s172
    %s189 = sphi 0, %s173
    %s195 = sphi 0, %s197
    %s198 = sphi 0, %s195
    %s199 = sphi 0, %s198
    %s215 = sphi 0, %s199
    %s221 = sphi 0, %s223
    %s224 = sphi 0, %s221
    %s225 = sphi 0, %s224
    %s241 = sphi 0, %s225
    %s249 = sphi 0, %s251
    %s252 = sphi 0, %s249
    %s253 = sphi 0, %s252
    %s269 = sphi 0, %s253
  $region4: #{bidirectional_lstm.1} parent=0 // loop_header_branch
    %18 = sbr.rel (%p16) target = $region8
  $region5: #{bidirectional_lstm.1} parent=0 // loop_body
    %s20 = ssub.s32 %s15, 1
    %s21 = ssub.s32 %s15, 2
    %s28 = sadd.s32 1, %s23
    %p29 = scmp.ge.s32.totalorder %s28, 4
    %s30 = scalar_select %p29, 0, %s28
    %s31 = sadd.s32 1, %s22
    %s32 = scalar_select %p29, %s31, %s22
    %p33 = scmp.ge.s32.totalorder %s32, 1
    %s34 = scalar_select %p33, 0, %s32
    %s35 = ssub.s32 %s23, %s30
    %p36 = scmp.eq.s32.totalorder %s35, 0
    %s38 = sadd.s32 %s37, 1
    %s39 = scalar_select %p36, %s37, %s38
    %p42 = pneg %p36
    %p43 = scmp.eq.s32.totalorder %s15, 3
    %p44 = por %p42, %p43
    %p45 = scmp.ne.s32.totalorder %s37, %s40
    %p46 = scmp.eq.s32.totalorder %s15, 0
    %p47 = por %p45, %p46
    %p48 = scmp.ne.s32.totalorder %s37, %s40
    %p49 = scmp.eq.s32.totalorder %s20, 3
    %p50 = por %p48, %p49
    %p51 = scmp.ne.s32.totalorder %s40, %s41
    %p52 = scmp.eq.s32.totalorder %s20, 0
    %p53 = por %p51, %p52
    %p54 = scmp.ne.s32.totalorder %s40, %s41
    %p55 = scmp.eq.s32.totalorder %s21, 3
    %p56 = por %p54, %p55
    %p58 = scmp.ne.s32.totalorder %s41, %s57
    %p59 = scmp.eq.s32.totalorder %s21, 0
    %p60 = por %p58, %p59
    %s61 = ssub.s32 3, %s23
    %s62 = ssub.s32 3, %s30
    %s63 = ssub.s32 %s61, %s62
    %p64 = scmp.eq.s32.totalorder %s63, 0
    %s66 = sadd.s32 %s65, 1
    %s67 = scalar_select %p64, %s65, %s66
    %p70 = pneg %p64
    %p71 = scmp.eq.s32.totalorder %s15, 3
    %p72 = por %p70, %p71
    %p73 = scmp.ne.s32.totalorder %s65, %s68
    %p74 = scmp.eq.s32.totalorder %s15, 0
    %p75 = por %p73, %p74
    %p76 = scmp.ne.s32.totalorder %s65, %s68
    %p77 = scmp.eq.s32.totalorder %s20, 3
    %p78 = por %p76, %p77
    %p79 = scmp.ne.s32.totalorder %s68, %s69
    %p80 = scmp.eq.s32.totalorder %s20, 0
    %p81 = por %p79, %p80
    %p82 = scmp.ne.s32.totalorder %s68, %s69
    %p83 = scmp.eq.s32.totalorder %s21, 3
    %p84 = por %p82, %p83
    %p86 = scmp.ne.s32.totalorder %s69, %s85
    %p87 = scmp.eq.s32.totalorder %s21, 0
    %p88 = por %p86, %p87
    %s89 = ssub.s32 %s22, %s34
    %p90 = scmp.eq.s32.totalorder %s89, 0
    %s92 = sadd.s32 %s91, 1
    %s93 = scalar_select %p90, %s91, %s92
    %p96 = pneg %p90
    %p97 = scmp.eq.s32.totalorder %s15, 3
    %p98 = por %p96, %p97
    %p99 = scmp.ne.s32.totalorder %s91, %s94
    %p100 = scmp.eq.s32.totalorder %s15, 0
    %p101 = por %p99, %p100
    %p102 = scmp.ne.s32.totalorder %s91, %s94
    %p103 = scmp.eq.s32.totalorder %s20, 3
    %p104 = por %p102, %p103
    %p105 = scmp.ne.s32.totalorder %s94, %s95
    %p106 = scmp.eq.s32.totalorder %s20, 0
    %p107 = por %p105, %p106
    %p108 = scmp.ne.s32.totalorder %s94, %s95
    %p109 = scmp.eq.s32.totalorder %s21, 3
    %p110 = por %p108, %p109
    %p112 = scmp.ne.s32.totalorder %s95, %s111
    %p113 = scmp.eq.s32.totalorder %s21, 0
    %p114 = por %p112, %p113
    %s115 = ssub.s32 %s22, %s34
    %p116 = scmp.eq.s32.totalorder %s115, 0
    %s118 = sadd.s32 %s117, 1
    %s119 = scalar_select %p116, %s117, %s118
    %p122 = pneg %p116
    %p123 = scmp.eq.s32.totalorder %s15, 3
    %p124 = por %p122, %p123
    %p125 = scmp.ne.s32.totalorder %s117, %s120
    %p126 = scmp.eq.s32.totalorder %s15, 0
    %p127 = por %p125, %p126
    %p128 = scmp.ne.s32.totalorder %s117, %s120
    %p129 = scmp.eq.s32.totalorder %s20, 3
    %p130 = por %p128, %p129
    %p131 = scmp.ne.s32.totalorder %s120, %s121
    %p132 = scmp.eq.s32.totalorder %s20, 0
    %p133 = por %p131, %p132
    %p134 = scmp.ne.s32.totalorder %s120, %s121
    %p135 = scmp.eq.s32.totalorder %s21, 3
    %p136 = por %p134, %p135
    %p138 = scmp.ne.s32.totalorder %s121, %s137
    %p139 = scmp.eq.s32.totalorder %s21, 0
    %p140 = por %p138, %p139
    %s141 = ssub.s32 %s22, %s34
    %p142 = scmp.eq.s32.totalorder %s141, 0
    %s144 = sadd.s32 %s143, 1
    %s145 = scalar_select %p142, %s143, %s144
    %p148 = pneg %p142
    %p149 = scmp.eq.s32.totalorder %s15, 3
    %p150 = por %p148, %p149
    %p151 = scmp.ne.s32.totalorder %s143, %s146
    %p152 = scmp.eq.s32.totalorder %s15, 0
    %p153 = por %p151, %p152
    %p154 = scmp.ne.s32.totalorder %s143, %s146
    %p155 = scmp.eq.s32.totalorder %s20, 3
    %p156 = por %p154, %p155
    %p157 = scmp.ne.s32.totalorder %s146, %s147
    %p158 = scmp.eq.s32.totalorder %s20, 0
    %p159 = por %p157, %p158
    %p160 = scmp.ne.s32.totalorder %s146, %s147
    %p161 = scmp.eq.s32.totalorder %s21, 3
    %p162 = por %p160, %p161
    %p164 = scmp.ne.s32.totalorder %s147, %s163
    %p165 = scmp.eq.s32.totalorder %s21, 0
    %p166 = por %p164, %p165
    %s167 = ssub.s32 %s22, %s34
    %p168 = scmp.eq.s32.totalorder %s167, 0
    %s170 = sadd.s32 %s169, 1
    %s171 = scalar_select %p168, %s169, %s170
    %p174 = pneg %p168
    %p175 = scmp.eq.s32.totalorder %s15, 3
    %p176 = por %p174, %p175
    %p177 = scmp.ne.s32.totalorder %s169, %s172
    %p178 = scmp.eq.s32.totalorder %s15, 0
    %p179 = por %p177, %p178
    %p180 = scmp.ne.s32.totalorder %s169, %s172
    %p181 = scmp.eq.s32.totalorder %s20, 3
    %p182 = por %p180, %p181
    %p183 = scmp.ne.s32.totalorder %s172, %s173
    %p184 = scmp.eq.s32.totalorder %s20, 0
    %p185 = por %p183, %p184
    %p186 = scmp.ne.s32.totalorder %s172, %s173
    %p187 = scmp.eq.s32.totalorder %s21, 3
    %p188 = por %p186, %p187
    %p190 = scmp.ne.s32.totalorder %s173, %s189
    %p191 = scmp.eq.s32.totalorder %s21, 0
    %p192 = por %p190, %p191
    %s193 = ssub.s32 %s22, %s34
    %p194 = scmp.eq.s32.totalorder %s193, 0
    %s196 = sadd.s32 %s195, 1
    %s197 = scalar_select %p194, %s195, %s196
    %p200 = pneg %p194
    %p201 = scmp.eq.s32.totalorder %s15, 3
    %p202 = por %p200, %p201
    %p203 = scmp.ne.s32.totalorder %s195, %s198
    %p204 = scmp.eq.s32.totalorder %s15, 0
    %p205 = por %p203, %p204
    %p206 = scmp.ne.s32.totalorder %s195, %s198
    %p207 = scmp.eq.s32.totalorder %s20, 3
    %p208 = por %p206, %p207
    %p209 = scmp.ne.s32.totalorder %s198, %s199
    %p210 = scmp.eq.s32.totalorder %s20, 0
    %p211 = por %p209, %p210
    %p212 = scmp.ne.s32.totalorder %s198, %s199
    %p213 = scmp.eq.s32.totalorder %s21, 3
    %p214 = por %p212, %p213
    %p216 = scmp.ne.s32.totalorder %s199, %s215
    %p217 = scmp.eq.s32.totalorder %s21, 0
    %p218 = por %p216, %p217
    %s219 = ssub.s32 %s23, %s30
    %p220 = scmp.eq.s32.totalorder %s219, 0
    %s222 = sadd.s32 %s221, 1
    %s223 = scalar_select %p220, %s221, %s222
    %p226 = pneg %p220
    %p227 = scmp.eq.s32.totalorder %s15, 3
    %p228 = por %p226, %p227
    %p229 = scmp.ne.s32.totalorder %s221, %s224
    %p230 = scmp.eq.s32.totalorder %s15, 0
    %p231 = por %p229, %p230
    %p232 = scmp.ne.s32.totalorder %s221, %s224
    %p233 = scmp.eq.s32.totalorder %s20, 3
    %p234 = por %p232, %p233
    %p235 = scmp.ne.s32.totalorder %s224, %s225
    %p236 = scmp.eq.s32.totalorder %s20, 0
    %p237 = por %p235, %p236
    %p238 = scmp.ne.s32.totalorder %s224, %s225
    %p239 = scmp.eq.s32.totalorder %s21, 3
    %p240 = por %p238, %p239
    %p242 = scmp.ne.s32.totalorder %s225, %s241
    %p243 = scmp.eq.s32.totalorder %s21, 0
    %p244 = por %p242, %p243
    %s245 = ssub.s32 3, %s23
    %s246 = ssub.s32 3, %s30
    %s247 = ssub.s32 %s245, %s246
    %p248 = scmp.eq.s32.totalorder %s247, 0
    %s250 = sadd.s32 %s249, 1
    %s251 = scalar_select %p248, %s249, %s250
    %p254 = pneg %p248
    %p255 = scmp.eq.s32.totalorder %s15, 3
    %p256 = por %p254, %p255
    %p257 = scmp.ne.s32.totalorder %s249, %s252
    %p258 = scmp.eq.s32.totalorder %s15, 0
    %p259 = por %p257, %p258
    %p260 = scmp.ne.s32.totalorder %s249, %s252
    %p261 = scmp.eq.s32.totalorder %s20, 3
    %p262 = por %p260, %p261
    %p263 = scmp.ne.s32.totalorder %s252, %s253
    %p264 = scmp.eq.s32.totalorder %s20, 0
    %p265 = por %p263, %p264
    %p266 = scmp.ne.s32.totalorder %s252, %s253
    %p267 = scmp.eq.s32.totalorder %s21, 3
    %p268 = por %p266, %p267
    %p270 = scmp.ne.s32.totalorder %s253, %s269
    %p271 = scmp.eq.s32.totalorder %s21, 0
    %p272 = por %p270, %p271
    %p273 = scmp.le.s32.totalorder 1, %s15
    %p274 = scmp.lt.s32.totalorder %s15, 5
    %p275 = pnand %p273, %p274
    %p276 = pneg %p275
    // Predicated region
    $region9: #{bidirectional_lstm.1} parent=5 // pred_check
      _
    $region10: #{bidirectional_lstm.1} parent=5 // pred_check_branch
      %278 = sbr.rel (%p275) target = $region12
    $region11: #{bidirectional_lstm.1} parent=5 // pred_region
      %s279 = ssub.s32 %s15, 1
      // Predicated region
      $region13: #{bidirectional_lstm.1} parent=11 // pred_check
        %p280 = pneg %p107
      $region14: #{bidirectional_lstm.1} parent=11 // pred_check_branch
        %282 = sbr.rel (%p280) target = $region16
      $region15: #{bidirectional_lstm.1} parent=11 // pred_region
        %s283 = smul.u32 2, %s24
        %p284 = scmp.lt.s32.totalorder %s283, 1
        %s285 = scalar_select %p284, %s283, 1
        %s286 = smul.addr %s285, 16
        %s287 = smul.addr %s286, 8
        %s288 = scalar_lea.vmem %s2, %s287
        %s289 = smul.u32 2, %s24
      $region16: #{bidirectional_lstm.1} parent=11 // pred_fallthru
        _
      // Predicated region
      $region17: #{bidirectional_lstm.1} parent=11 // pred_check
        %p290 = pneg %p133
      $region18: #{bidirectional_lstm.1} parent=11 // pred_check_branch
        %292 = sbr.rel (%p290) target = $region20
      $region19: #{bidirectional_lstm.1} parent=11 // pred_region
        %s293 = smul.u32 2, %s24
        %p294 = scmp.lt.s32.totalorder %s293, 1
        %s295 = scalar_select %p294, %s293, 1
        %s296 = smul.addr %s295, 64
        %s297 = smul.addr %s296, 8
        %s298 = scalar_lea.vmem %s3, %s297
        %s299 = smul.u32 2, %s24
      $region20: #{bidirectional_lstm.1} parent=11 // pred_fallthru
        _
      // Predicated region
      $region21: #{bidirectional_lstm.1} parent=11 // pred_check
        %p300 = pneg %p159
      $region22: #{bidirectional_lstm.1} parent=11 // pred_check_branch
        %302 = sbr.rel (%p300) target = $region24
      $region23: #{bidirectional_lstm.1} parent=11 // pred_region
        %s303 = smul.u32 2, %s24
        %p304 = scmp.lt.s32.totalorder %s303, 1
        %s305 = scalar_select %p304, %s303, 1
        %s306 = smul.addr %s305, 4
        %s307 = scalar_lea.vmem %s4, %s306
        %s308 = smul.u32 2, %s24
      $region24: #{bidirectional_lstm.1} parent=11 // pred_fallthru
        _
      // Predicated region
      $region25: #{bidirectional_lstm.1} parent=11 // pred_check
        %p309 = pneg %p185
      $region26: #{bidirectional_lstm.1} parent=11 // pred_check_branch
        %311 = sbr.rel (%p309) target = $region28
      $region27: #{bidirectional_lstm.1} parent=11 // pred_region
        %s312 = smul.u32 2, %s24
        %p313 = scmp.lt.s32.totalorder %s312, 1
        %s314 = scalar_select %p313, %s312, 1
        %s315 = smul.addr %s314, 16
        %s316 = smul.addr %s315, 8
        %s317 = scalar_lea.vmem %s5, %s316
        %s318 = smul.u32 2, %s24
      $region28: #{bidirectional_lstm.1} parent=11 // pred_fallthru
        _
      // Predicated region
      $region29: #{bidirectional_lstm.1} parent=11 // pred_check
        %p319 = pneg %p211
      $region30: #{bidirectional_lstm.1} parent=11 // pred_check_branch
        %321 = sbr.rel (%p319) target = $region32
      $region31: #{bidirectional_lstm.1} parent=11 // pred_region
        %s322 = smul.u32 2, %s24
        %p323 = scmp.lt.s32.totalorder %s322, 1
        %s324 = scalar_select %p323, %s322, 1
        %s325 = scalar_lea.vmem %s6, %s324
        %s326 = smul.u32 2, %s24
      $region32: #{bidirectional_lstm.1} parent=11 // pred_fallthru
        _
    $region12: #{bidirectional_lstm.1} parent=5 // pred_fallthru
      _
    %p327 = scmp.lt.s32.totalorder %s15, 4
    // Predicated region
    $region33: #{bidirectional_lstm.1} parent=5 // pred_check
      %p328 = pneg %p327
    $region34: #{bidirectional_lstm.1} parent=5 // pred_check_branch
      %330 = sbr.rel (%p328) target = $region36
    $region35: #{bidirectional_lstm.1} parent=5 // pred_region
      // Predicated region
      $region37: #{bidirectional_lstm.1} parent=35 // pred_check
        %p331 = pneg %p47
      $region38: #{bidirectional_lstm.1} parent=35 // pred_check_branch
        %333 = sbr.rel (%p331) target = $region40
      $region39: #{bidirectional_lstm.1} parent=35 // pred_region
        %s334 = smul.u32 4, %s23
        %p335 = scmp.lt.s32.totalorder %s334, 15
        %s336 = scalar_select %p335, %s334, 15
        %s337 = smul.addr %s336, 8
        %s338 = scalar_lea.vmem %s0, %s337
        %s339 = smul.u32 4, %s23
      $region40: #{bidirectional_lstm.1} parent=35 // pred_fallthru
        _
      // Predicated region
      $region41: #{bidirectional_lstm.1} parent=35 // pred_check
        %p340 = pneg %p75
      $region42: #{bidirectional_lstm.1} parent=35 // pred_check_branch
        %342 = sbr.rel (%p340) target = $region44
      $region43: #{bidirectional_lstm.1} parent=35 // pred_region
        %s343 = ssub.s32 3, %s23
        %s344 = smul.u32 4, %s343
        %p345 = scmp.lt.s32.totalorder %s344, 15
        %s346 = scalar_select %p345, %s344, 15
        %s347 = smul.addr %s346, 8
        %s348 = scalar_lea.vmem %s1, %s347
        %s349 = ssub.s32 3, %s23
        %s350 = smul.u32 4, %s349
      $region44: #{bidirectional_lstm.1} parent=35 // pred_fallthru
        _
    $region36: #{bidirectional_lstm.1} parent=5 // pred_fallthru
      _
    %p351 = scmp.le.s32.totalorder 1, %s15
    %p352 = scmp.lt.s32.totalorder %s15, 5
    %p353 = pnand %p351, %p352
    %p354 = pneg %p353
    // Predicated region
    $region45: #{bidirectional_lstm.1} parent=5 // pred_check
      _
    $region46: #{bidirectional_lstm.1} parent=5 // pred_check_branch
      %356 = sbr.rel (%p353) target = $region48
    $region47: #{bidirectional_lstm.1} parent=5 // pred_region
      %s357 = ssub.s32 %s15, 1
      %s358 = smul.u32 4, %s25
      %p359 = scmp.lt.s32.totalorder %s358, 15
      %s360 = scalar_select %p359, %s358, 15
      %s361 = smul.addr %s360, 8
      %s362 = scalar_lea.vmem %s0, %s361
      %p363 = pneg %p53
      %p364 = pneg %p50
      %s365 = ssub.s32 3, %s25
      %s366 = smul.u32 4, %s365
      %p367 = scmp.lt.s32.totalorder %s366, 15
      %s368 = scalar_select %p367, %s366, 15
      %s369 = smul.addr %s368, 8
      %s370 = scalar_lea.vmem %s1, %s369
      %p371 = pneg %p81
      %p372 = pneg %p78
      %s373 = smul.u32 2, %s24
      %p374 = scmp.lt.s32.totalorder %s373, 1
      %s375 = scalar_select %p374, %s373, 1
      %s376 = smul.addr %s375, 16
      %s377 = smul.addr %s376, 8
      %s378 = scalar_lea.vmem %s2, %s377
      %p379 = pneg %p107
      %p380 = pneg %p104
      %s381 = smul.u32 2, %s24
      %p382 = scmp.lt.s32.totalorder %s381, 1
      %s383 = scalar_select %p382, %s381, 1
      %s384 = smul.addr %s383, 64
      %s385 = smul.addr %s384, 8
      %s386 = scalar_lea.vmem %s3, %s385
      %p387 = pneg %p133
      %p388 = pneg %p130
      %s389 = smul.u32 2, %s24
      %p390 = scmp.lt.s32.totalorder %s389, 1
      %s391 = scalar_select %p390, %s389, 1
      %s392 = smul.addr %s391, 4
      %s393 = scalar_lea.vmem %s4, %s392
      %p394 = pneg %p159
      %p395 = pneg %p156
      %s396 = smul.u32 2, %s24
      %p397 = scmp.lt.s32.totalorder %s396, 1
      %s398 = scalar_select %p397, %s396, 1
      %s399 = smul.addr %s398, 16
      %s400 = smul.addr %s399, 8
      %s401 = scalar_lea.vmem %s5, %s400
      %p402 = pneg %p185
      %p403 = pneg %p182
      %s404 = smul.u32 2, %s24
      %p405 = scmp.lt.s32.totalorder %s404, 1
      %s406 = scalar_select %p405, %s404, 1
      %s407 = scalar_lea.vmem %s6, %s406
      %p408 = pneg %p211
      %p409 = pneg %p208
      %p410 = pneg %p237
      %p411 = pneg %p234
      %s412 = smul.u32 4, %s25
      %p413 = scmp.lt.s32.totalorder %s412, 15
      %s414 = scalar_select %p413, %s412, 15
      %s415 = smul.addr %s414, 8
      %s416 = scalar_lea.vmem %s7, %s415
      %p417 = pneg %p265
      %p418 = pneg %p262
      %s419 = ssub.s32 3, %s25
      %s420 = smul.u32 4, %s419
      %p421 = scmp.lt.s32.totalorder %s420, 15
      %s422 = scalar_select %p421, %s420, 15
      %s423 = smul.addr %s422, 8
      %s424 = scalar_lea.vmem %s8, %s423
      %s425 = smul.u32 4, %s25
      %p426 = scmp.lt.s32.totalorder %s425, 15
      %s427 = scalar_select %p426, %s425, 15
      %s428 = smul.addr %s427, 8
      %s429 = scalar_lea.vmem %s0, %s428
      %s430 = smul.u32 4, %s25
      %s431 = ssub.s32 3, %s25
      %s432 = smul.u32 4, %s431
      %p433 = scmp.lt.s32.totalorder %s432, 15
      %s434 = scalar_select %p433, %s432, 15
      %s435 = smul.addr %s434, 8
      %s436 = scalar_lea.vmem %s1, %s435
      %s437 = ssub.s32 3, %s25
      %s438 = smul.u32 4, %s437
      %s439 = smul.u32 2, %s24
      %p440 = scmp.lt.s32.totalorder %s439, 1
      %s441 = scalar_select %p440, %s439, 1
      %s442 = smul.addr %s441, 16
      %s443 = smul.addr %s442, 8
      %s444 = scalar_lea.vmem %s2, %s443
      %s445 = smul.u32 2, %s24
      %s446 = smul.u32 2, %s24
      %p447 = scmp.lt.s32.totalorder %s446, 1
      %s448 = scalar_select %p447, %s446, 1
      %s449 = smul.addr %s448, 64
      %s450 = smul.addr %s449, 8
      %s451 = scalar_lea.vmem %s3, %s450
      %s452 = smul.u32 2, %s24
      %s453 = smul.u32 2, %s24
      %p454 = scmp.lt.s32.totalorder %s453, 1
      %s455 = scalar_select %p454, %s453, 1
      %s456 = smul.addr %s455, 4
      %s457 = scalar_lea.vmem %s4, %s456
      %s458 = smul.u32 2, %s24
      %s459 = smul.u32 2, %s24
      %p460 = scmp.lt.s32.totalorder %s459, 1
      %s461 = scalar_select %p460, %s459, 1
      %s462 = smul.addr %s461, 16
      %s463 = smul.addr %s462, 8
      %s464 = scalar_lea.vmem %s5, %s463
      %s465 = smul.u32 2, %s24
      %s466 = smul.u32 2, %s24
      %p467 = scmp.lt.s32.totalorder %s466, 1
      %s468 = scalar_select %p467, %s466, 1
      %s469 = scalar_lea.vmem %s6, %s468
      %s470 = smul.u32 2, %s24
      %s471 = smul.u32 4, %s25
      %p472 = scmp.lt.s32.totalorder %s471, 15
      %s473 = scalar_select %p472, %s471, 15
      %s474 = smul.addr %s473, 8
      %s475 = scalar_lea.vmem %s7, %s474
      %s476 = smul.u32 4, %s25
      %s477 = ssub.s32 3, %s25
      %s478 = smul.u32 4, %s477
      %p479 = scmp.lt.s32.totalorder %s478, 15
      %s480 = scalar_select %p479, %s478, 15
      %s481 = smul.addr %s480, 8
      %s482 = scalar_lea.vmem %s8, %s481
      %s483 = ssub.s32 3, %s25
      %s484 = smul.u32 4, %s483
      %v485 = vld [vmem:[%s429] sm:$0xff]
      %v486 = vld [vmem:[%s429 + $0x8] sm:$0xff]
      %v487 = vld [vmem:[%s429 + $0x10] sm:$0xff]
      %v488 = vld [vmem:[%s429 + $0x18] sm:$0xff]
      %v489 = vld [vmem:[%s444] sm:$0xff]
      %v490 = vld [vmem:[%s444 + $0x8] sm:$0xff]
      %v491 = vld [vmem:[%s444 + $0x10] sm:$0xff]
      %v492 = vld [vmem:[%s444 + $0x18] sm:$0xff]
      %v493 = vld [vmem:[%s444 + $0x20] sm:$0xff]
      %v494 = vld [vmem:[%s444 + $0x28] sm:$0xff]
      %v495 = vld [vmem:[%s444 + $0x30] sm:$0xff]
      %v496 = vld [vmem:[%s444 + $0x38] sm:$0xff]
      %v497 = vld [vmem:[%s444 + $0x40] sm:$0xff]
      %v498 = vld [vmem:[%s444 + $0x48] sm:$0xff]
      %v499 = vld [vmem:[%s444 + $0x50] sm:$0xff]
      %v500 = vld [vmem:[%s444 + $0x58] sm:$0xff]
      %v501 = vld [vmem:[%s444 + $0x60] sm:$0xff]
      %v502 = vld [vmem:[%s444 + $0x68] sm:$0xff]
      %v503 = vld [vmem:[%s444 + $0x70] sm:$0xff]
      %v504 = vld [vmem:[%s444 + $0x78] sm:$0xff]
      %v505 = vld [vmem:[%s457] sm:$0xf]
      %v507 = vlaneseq
      %v508 = vshrl.u32 %v507, 7
      %v509 = vsub.s32 0, %v508
      %v510 = vrot.slane %v505, %v509
      %v511 = vlaneseq
      %v512 = vshrl.u32 %v511, 7
      %v513 = vsub.s32 1, %v512
      %v514 = vrot.slane %v505, %v513
      %v515 = vlaneseq
      %v516 = vshrl.u32 %v515, 7
      %v517 = vsub.s32 2, %v516
      %v518 = vrot.slane %v505, %v517
      %v519 = vlaneseq
      %v520 = vshrl.u32 %v519, 7
      %v521 = vsub.s32 3, %v520
      %v522 = vrot.slane %v505, %v521
      %vm527 = vcmask 261120
      %v529 = vsel %vm527, %v485, 0
      %v532 = vsel %vm527, %v486, 0
      %v535 = vsel %vm527, %v487, 0
      %v538 = vsel %vm527, %v488, 0
      %540 = vmatprep.subr.mxu0 %v490
      %541 = vmatpush1.msra.mxu0 %v489
      %542 = vmatprep.subr.mxu0 %v494
      %543 = vmatpush1.msra.mxu0 %v493
      %544 = vmatprep.subr.mxu0 %v498
      %545 = vmatpush1.msra.mxu0 %v497
      %546 = vmatprep.subr.mxu0 %v502
      %547 = vmatpush1.msra.mxu0 %v501
      %548 = vmatprep.subr.mxu0 0.0
      %549 = vmatpush1.msra.mxu0 0.0
      %550 = vmatprep.subr.mxu0 0.0
      %551 = vmatpush1.msra.mxu0 0.0
      %552 = vmatprep.subr.mxu0 0.0
      %553 = vmatpush1.msra.mxu0 0.0
      %554 = vmatprep.subr.mxu0 0.0
      %555 = vmatpush1.msra.mxu0 0.0
      %556 = vmatprep.subr.mxu0 0.0
      %557 = vmatpush1.msra.mxu0 0.0
      %558 = vmatprep.subr.mxu0 0.0
      %559 = vmatpush1.msra.mxu0 0.0
      %560 = vmatprep.subr.mxu0 0.0
      %561 = vmatpush1.msra.mxu0 0.0
      %562 = vmatprep.subr.mxu0 0.0
      %563 = vmatpush1.msra.mxu0 0.0
      %564 = vmatprep.subr.mxu0 0.0
      %565 = vmatpush1.msra.mxu0 0.0
      %566 = vmatprep.subr.mxu0 0.0
      %567 = vmatpush1.msra.mxu0 0.0
      %568 = vmatprep.subr.mxu0 0.0
      %569 = vmatpush1.msra.mxu0 0.0
      %570 = vmatprep.subr.mxu0 0.0
      %571 = vmatpush1.msra.mxu0 0.0
      %572 = vmatprep.subr.mxu0 0.0
      %573 = vmatpush1.msra.mxu0 0.0
      %574 = vmatprep.subr.mxu0 0.0
      %575 = vmatpush1.msra.mxu0 0.0
      %576 = vmatprep.subr.mxu0 0.0
      %577 = vmatpush1.msra.mxu0 0.0
      %578 = vmatprep.subr.mxu0 0.0
      %579 = vmatpush1.msra.mxu0 0.0
      %580 = vmatprep.subr.mxu0 0.0
      %581 = vmatpush1.msra.mxu0 0.0
      %582 = vmatprep.subr.mxu0 0.0
      %583 = vmatpush1.msra.mxu0 0.0
      %584 = vmatprep.subr.mxu0 0.0
      %585 = vmatpush1.msra.mxu0 0.0
      %586 = vmatprep.subr.mxu0 0.0
      %587 = vmatpush1.msra.mxu0 0.0
      %588 = vmatprep.subr.mxu0 0.0
      %589 = vmatpush1.msra.mxu0 0.0
      %590 = vmatprep.subr.mxu0 0.0
      %591 = vmatpush1.msra.mxu0 0.0
      %592 = vmatprep.subr.mxu0 0.0
      %593 = vmatpush1.msra.mxu0 0.0
      %594 = vmatprep.subr.mxu0 0.0
      %595 = vmatpush1.msra.mxu0 0.0
      %596 = vmatprep.subr.mxu0 0.0
      %597 = vmatpush1.msra.mxu0 0.0
      %598 = vmatprep.subr.mxu0 0.0
      %599 = vmatpush1.msra.mxu0 0.0
      %600 = vmatprep.subr.mxu0 0.0
      %601 = vmatpush1.msra.mxu0 0.0
      %602 = vmatprep.subr.mxu0 0.0
      %603 = vmatpush1.msra.mxu0 0.0
      %604 = vmatprep.mubr.f32.mxu0 0.0
      %605 = vmatmul.mubr.f32.gmra.mrb[0].mxu0 %v529
      %v606 = vpop.f32.mrb[0].mxu0
      %v607 = vadd.f32 %v510, %v606
      %v608 = vpop.f32.mrb[0].mxu0
      %v609 = vadd.f32 %v514, %v608
      %610 = vmatprep.mubr.f32.mxu0 0.0
      %611 = vmatmul.mubr.f32.gmra.mrb[0].mxu0 %v532
      %v612 = vpop.f32.mrb[0].mxu0
      %v613 = vadd.f32 %v510, %v612
      %v614 = vpop.f32.mrb[0].mxu0
      %v615 = vadd.f32 %v514, %v614
      %616 = vmatprep.mubr.f32.mxu0 0.0
      %617 = vmatmul.mubr.f32.gmra.mrb[0].mxu0 %v535
      %v618 = vpop.f32.mrb[0].mxu0
      %v619 = vadd.f32 %v510, %v618
      %v620 = vpop.f32.mrb[0].mxu0
      %v621 = vadd.f32 %v514, %v620
      %622 = vmatprep.mubr.f32.mxu0 0.0
      %623 = vmatmul.mubr.f32.gmra.mrb[0].mxu0 %v538
      %v624 = vpop.f32.mrb[0].mxu0
      %v625 = vadd.f32 %v510, %v624
      %v626 = vpop.f32.mrb[0].mxu0
      %v627 = vadd.f32 %v514, %v626
      %628 = vdwg.mxu0
      %629 = vmatprep.subr.mxu0 %v492
      %630 = vmatpush1.msra.mxu0 %v491
      %631 = vmatprep.subr.mxu0 %v496
      %632 = vmatpush1.msra.mxu0 %v495
      %633 = vmatprep.subr.mxu0 %v500
      %634 = vmatpush1.msra.mxu0 %v499
      %635 = vmatprep.subr.mxu0 %v504
      %636 = vmatpush1.msra.mxu0 %v503
      %637 = vmatprep.subr.mxu0 0.0
      %638 = vmatpush1.msra.mxu0 0.0
      %639 = vmatprep.subr.mxu0 0.0
      %640 = vmatpush1.msra.mxu0 0.0
      %641 = vmatprep.subr.mxu0 0.0
      %642 = vmatpush1.msra.mxu0 0.0
      %643 = vmatprep.subr.mxu0 0.0
      %644 = vmatpush1.msra.mxu0 0.0
      %645 = vmatprep.subr.mxu0 0.0
      %646 = vmatpush1.msra.mxu0 0.0
      %647 = vmatprep.subr.mxu0 0.0
      %648 = vmatpush1.msra.mxu0 0.0
      %649 = vmatprep.subr.mxu0 0.0
      %650 = vmatpush1.msra.mxu0 0.0
      %651 = vmatprep.subr.mxu0 0.0
      %652 = vmatpush1.msra.mxu0 0.0
      %653 = vmatprep.subr.mxu0 0.0
      %654 = vmatpush1.msra.mxu0 0.0
      %655 = vmatprep.subr.mxu0 0.0
      %656 = vmatpush1.msra.mxu0 0.0
      %657 = vmatprep.subr.mxu0 0.0
      %658 = vmatpush1.msra.mxu0 0.0
      %659 = vmatprep.subr.mxu0 0.0
      %660 = vmatpush1.msra.mxu0 0.0
      %661 = vmatprep.subr.mxu0 0.0
      %662 = vmatpush1.msra.mxu0 0.0
      %663 = vmatprep.subr.mxu0 0.0
      %664 = vmatpush1.msra.mxu0 0.0
      %665 = vmatprep.subr.mxu0 0.0
      %666 = vmatpush1.msra.mxu0 0.0
      %667 = vmatprep.subr.mxu0 0.0
      %668 = vmatpush1.msra.mxu0 0.0
      %669 = vmatprep.subr.mxu0 0.0
      %670 = vmatpush1.msra.mxu0 0.0
      %671 = vmatprep.subr.mxu0 0.0
      %672 = vmatpush1.msra.mxu0 0.0
      %673 = vmatprep.subr.mxu0 0.0
      %674 = vmatpush1.msra.mxu0 0.0
      %675 = vmatprep.subr.mxu0 0.0
      %676 = vmatpush1.msra.mxu0 0.0
      %677 = vmatprep.subr.mxu0 0.0
      %678 = vmatpush1.msra.mxu0 0.0
      %679 = vmatprep.subr.mxu0 0.0
      %680 = vmatpush1.msra.mxu0 0.0
      %681 = vmatprep.subr.mxu0 0.0
      %682 = vmatpush1.msra.mxu0 0.0
      %683 = vmatprep.subr.mxu0 0.0
      %684 = vmatpush1.msra.mxu0 0.0
      %685 = vmatprep.subr.mxu0 0.0
      %686 = vmatpush1.msra.mxu0 0.0
      %687 = vmatprep.subr.mxu0 0.0
      %688 = vmatpush1.msra.mxu0 0.0
      %689 = vmatprep.subr.mxu0 0.0
      %690 = vmatpush1.msra.mxu0 0.0
      %691 = vmatprep.subr.mxu0 0.0
      %692 = vmatpush1.msra.mxu0 0.0
      %693 = vmatprep.mubr.f32.mxu0 0.0
      %694 = vmatmul.mubr.f32.gmra.mrb[0].mxu0 %v529
      %v695 = vpop.f32.mrb[0].mxu0
      %v696 = vadd.f32 %v518, %v695
      %v697 = vpop.f32.mrb[0].mxu0
      %v698 = vadd.f32 %v522, %v697
      %699 = vmatprep.mubr.f32.mxu0 0.0
      %700 = vmatmul.mubr.f32.gmra.mrb[0].mxu0 %v532
      %v701 = vpop.f32.mrb[0].mxu0
      %v702 = vadd.f32 %v518, %v701
      %v703 = vpop.f32.mrb[0].mxu0
      %v704 = vadd.f32 %v522, %v703
      %705 = vmatprep.mubr.f32.mxu0 0.0
      %706 = vmatmul.mubr.f32.gmra.mrb[0].mxu0 %v535
      %v707 = vpop.f32.mrb[0].mxu0
      %v708 = vadd.f32 %v518, %v707
      %v709 = vpop.f32.mrb[0].mxu0
      %v710 = vadd.f32 %v522, %v709
      %711 = vmatprep.mubr.f32.mxu0 0.0
      %712 = vmatmul.mubr.f32.gmra.mrb[0].mxu0 %v538
      %v713 = vpop.f32.mrb[0].mxu0
      %v714 = vadd.f32 %v518, %v713
      %v715 = vpop.f32.mrb[0].mxu0
      %v716 = vadd.f32 %v522, %v715
      %717 = vdwg.mxu0
      %718 = vst [vmem:[#allocation2] sm:$0xff] %v607
      %719 = vst [vmem:[#allocation2 + $0x8] sm:$0xff] %v609
      %720 = vst [vmem:[#allocation2 + $0x10] sm:$0xff] %v696
      %721 = vst [vmem:[#allocation2 + $0x18] sm:$0xff] %v698
      %722 = vst [vmem:[#allocation2 + $0x20] sm:$0xff] %v613
      %723 = vst [vmem:[#allocation2 + $0x28] sm:$0xff] %v615
      %724 = vst [vmem:[#allocation2 + $0x30] sm:$0xff] %v702
      %725 = vst [vmem:[#allocation2 + $0x38] sm:$0xff] %v704
      %726 = vst [vmem:[#allocation2 + $0x40] sm:$0xff] %v619
      %727 = vst [vmem:[#allocation2 + $0x48] sm:$0xff] %v621
      %728 = vst [vmem:[#allocation2 + $0x50] sm:$0xff] %v708
      %729 = vst [vmem:[#allocation2 + $0x58] sm:$0xff] %v710
      %730 = vst [vmem:[#allocation2 + $0x60] sm:$0xff] %v625
      %731 = vst [vmem:[#allocation2 + $0x68] sm:$0xff] %v627
      %732 = vst [vmem:[#allocation2 + $0x70] sm:$0xff] %v714
      %733 = vst [vmem:[#allocation2 + $0x78] sm:$0xff] %v716
      %v734 = vld [vmem:[%s436] sm:$0xff]
      %v735 = vld [vmem:[%s436 + $0x8] sm:$0xff]
      %v736 = vld [vmem:[%s436 + $0x10] sm:$0xff]
      %v737 = vld [vmem:[%s436 + $0x18] sm:$0xff]
      %s738 = scalar_lea.vmem %s444, 128
      %v739 = vld [vmem:[%s738] sm:$0xff]
      %v740 = vld [vmem:[%s738 + $0x8] sm:$0xff]
      %v741 = vld [vmem:[%s738 + $0x10] sm:$0xff]
      %v742 = vld [vmem:[%s738 + $0x18] sm:$0xff]
      %v743 = vld [vmem:[%s738 + $0x20] sm:$0xff]
      %v744 = vld [vmem:[%s738 + $0x28] sm:$0xff]
      %v745 = vld [vmem:[%s738 + $0x30] sm:$0xff]
      %v746 = vld [vmem:[%s738 + $0x38] sm:$0xff]
      %v747 = vld [vmem:[%s738 + $0x40] sm:$0xff]
      %v748 = vld [vmem:[%s738 + $0x48] sm:$0xff]
      %v749 = vld [vmem:[%s738 + $0x50] sm:$0xff]
      %v750 = vld [vmem:[%s738 + $0x58] sm:$0xff]
      %v751 = vld [vmem:[%s738 + $0x60] sm:$0xff]
      %v752 = vld [vmem:[%s738 + $0x68] sm:$0xff]
      %v753 = vld [vmem:[%s738 + $0x70] sm:$0xff]
      %v754 = vld [vmem:[%s738 + $0x78] sm:$0xff]
      %s755 = scalar_lea.vmem %s457, 4
      %v756 = vld [vmem:[%s755] sm:$0xf]
      %v758 = vlaneseq
      %v759 = vshrl.u32 %v758, 7
      %v760 = vsub.s32 0, %v759
      %v761 = vrot.slane %v756, %v760
      %v762 = vlaneseq
      %v763 = vshrl.u32 %v762, 7
      %v764 = vsub.s32 1, %v763
      %v765 = vrot.slane %v756, %v764
      %v766 = vlaneseq
      %v767 = vshrl.u32 %v766, 7
      %v768 = vsub.s32 2, %v767
      %v769 = vrot.slane %v756, %v768
      %v770 = vlaneseq
      %v771 = vshrl.u32 %v770, 7
      %v772 = vsub.s32 3, %v771
      %v773 = vrot.slane %v756, %v772
      %v779 = vsel %vm527, %v734, 0
      %v782 = vsel %vm527, %v735, 0
      %v785 = vsel %vm527, %v736, 0
      %v788 = vsel %vm527, %v737, 0
      %790 = vmatprep.subr.mxu0 %v740
      %791 = vmatpush1.msra.mxu0 %v739
      %792 = vmatprep.subr.mxu0 %v744
      %793 = vmatpush1.msra.mxu0 %v743
      %794 = vmatprep.subr.mxu0 %v748
      %795 = vmatpush1.msra.mxu0 %v747
      %796 = vmatprep.subr.mxu0 %v752
      %797 = vmatpush1.msra.mxu0 %v751
      %798 = vmatprep.subr.mxu0 0.0
      %799 = vmatpush1.msra.mxu0 0.0
      %800 = vmatprep.subr.mxu0 0.0
      %801 = vmatpush1.msra.mxu0 0.0
      %802 = vmatprep.subr.mxu0 0.0
      %803 = vmatpush1.msra.mxu0 0.0
      %804 = vmatprep.subr.mxu0 0.0
      %805 = vmatpush1.msra.mxu0 0.0
      %806 = vmatprep.subr.mxu0 0.0
      %807 = vmatpush1.msra.mxu0 0.0
      %808 = vmatprep.subr.mxu0 0.0
      %809 = vmatpush1.msra.mxu0 0.0
      %810 = vmatprep.subr.mxu0 0.0
      %811 = vmatpush1.msra.mxu0 0.0
      %812 = vmatprep.subr.mxu0 0.0
      %813 = vmatpush1.msra.mxu0 0.0
      %814 = vmatprep.subr.mxu0 0.0
      %815 = vmatpush1.msra.mxu0 0.0
      %816 = vmatprep.subr.mxu0 0.0
      %817 = vmatpush1.msra.mxu0 0.0
      %818 = vmatprep.subr.mxu0 0.0
      %819 = vmatpush1.msra.mxu0 0.0
      %820 = vmatprep.subr.mxu0 0.0
      %821 = vmatpush1.msra.mxu0 0.0
      %822 = vmatprep.subr.mxu0 0.0
      %823 = vmatpush1.msra.mxu0 0.0
      %824 = vmatprep.subr.mxu0 0.0
      %825 = vmatpush1.msra.mxu0 0.0
      %826 = vmatprep.subr.mxu0 0.0
      %827 = vmatpush1.msra.mxu0 0.0
      %828 = vmatprep.subr.mxu0 0.0
      %829 = vmatpush1.msra.mxu0 0.0
      %830 = vmatprep.subr.mxu0 0.0
      %831 = vmatpush1.msra.mxu0 0.0
      %832 = vmatprep.subr.mxu0 0.0
      %833 = vmatpush1.msra.mxu0 0.0
      %834 = vmatprep.subr.mxu0 0.0
      %835 = vmatpush1.msra.mxu0 0.0
      %836 = vmatprep.subr.mxu0 0.0
      %837 = vmatpush1.msra.mxu0 0.0
      %838 = vmatprep.subr.mxu0 0.0
      %839 = vmatpush1.msra.mxu0 0.0
      %840 = vmatprep.subr.mxu0 0.0
      %841 = vmatpush1.msra.mxu0 0.0
      %842 = vmatprep.subr.mxu0 0.0
      %843 = vmatpush1.msra.mxu0 0.0
      %844 = vmatprep.subr.mxu0 0.0
      %845 = vmatpush1.msra.mxu0 0.0
      %846 = vmatprep.subr.mxu0 0.0
      %847 = vmatpush1.msra.mxu0 0.0
      %848 = vmatprep.subr.mxu0 0.0
      %849 = vmatpush1.msra.mxu0 0.0
      %850 = vmatprep.subr.mxu0 0.0
      %851 = vmatpush1.msra.mxu0 0.0
      %852 = vmatprep.subr.mxu0 0.0
      %853 = vmatpush1.msra.mxu0 0.0
      %854 = vmatprep.mubr.f32.mxu0 0.0
      %855 = vmatmul.mubr.f32.gmra.mrb[0].mxu0 %v779
      %v856 = vpop.f32.mrb[0].mxu0
      %v857 = vadd.f32 %v761, %v856
      %v858 = vpop.f32.mrb[0].mxu0
      %v859 = vadd.f32 %v765, %v858
      %860 = vmatprep.mubr.f32.mxu0 0.0
      %861 = vmatmul.mubr.f32.gmra.mrb[0].mxu0 %v782
      %v862 = vpop.f32.mrb[0].mxu0
      %v863 = vadd.f32 %v761, %v862
      %v864 = vpop.f32.mrb[0].mxu0
      %v865 = vadd.f32 %v765, %v864
      %866 = vmatprep.mubr.f32.mxu0 0.0
      %867 = vmatmul.mubr.f32.gmra.mrb[0].mxu0 %v785
      %v868 = vpop.f32.mrb[0].mxu0
      %v869 = vadd.f32 %v761, %v868
      %v870 = vpop.f32.mrb[0].mxu0
      %v871 = vadd.f32 %v765, %v870
      %872 = vmatprep.mubr.f32.mxu0 0.0
      %873 = vmatmul.mubr.f32.gmra.mrb[0].mxu0 %v788
      %v874 = vpop.f32.mrb[0].mxu0
      %v875 = vadd.f32 %v761, %v874
      %v876 = vpop.f32.mrb[0].mxu0
      %v877 = vadd.f32 %v765, %v876
      %878 = vdwg.mxu0
      %879 = vmatprep.subr.mxu0 %v742
      %880 = vmatpush1.msra.mxu0 %v741
      %881 = vmatprep.subr.mxu0 %v746
      %882 = vmatpush1.msra.mxu0 %v745
      %883 = vmatprep.subr.mxu0 %v750
      %884 = vmatpush1.msra.mxu0 %v749
      %885 = vmatprep.subr.mxu0 %v754
      %886 = vmatpush1.msra.mxu0 %v753
      %887 = vmatprep.subr.mxu0 0.0
      %888 = vmatpush1.msra.mxu0 0.0
      %889 = vmatprep.subr.mxu0 0.0
      %890 = vmatpush1.msra.mxu0 0.0
      %891 = vmatprep.subr.mxu0 0.0
      %892 = vmatpush1.msra.mxu0 0.0
      %893 = vmatprep.subr.mxu0 0.0
      %894 = vmatpush1.msra.mxu0 0.0
      %895 = vmatprep.subr.mxu0 0.0
      %896 = vmatpush1.msra.mxu0 0.0
      %897 = vmatprep.subr.mxu0 0.0
      %898 = vmatpush1.msra.mxu0 0.0
      %899 = vmatprep.subr.mxu0 0.0
      %900 = vmatpush1.msra.mxu0 0.0
      %901 = vmatprep.subr.mxu0 0.0
      %902 = vmatpush1.msra.mxu0 0.0
      %903 = vmatprep.subr.mxu0 0.0
      %904 = vmatpush1.msra.mxu0 0.0
      %905 = vmatprep.subr.mxu0 0.0
      %906 = vmatpush1.msra.mxu0 0.0
      %907 = vmatprep.subr.mxu0 0.0
      %908 = vmatpush1.msra.mxu0 0.0
      %909 = vmatprep.subr.mxu0 0.0
      %910 = vmatpush1.msra.mxu0 0.0
      %911 = vmatprep.subr.mxu0 0.0
      %912 = vmatpush1.msra.mxu0 0.0
      %913 = vmatprep.subr.mxu0 0.0
      %914 = vmatpush1.msra.mxu0 0.0
      %915 = vmatprep.subr.mxu0 0.0
      %916 = vmatpush1.msra.mxu0 0.0
      %917 = vmatprep.subr.mxu0 0.0
      %918 = vmatpush1.msra.mxu0 0.0
      %919 = vmatprep.subr.mxu0 0.0
      %920 = vmatpush1.msra.mxu0 0.0
      %921 = vmatprep.subr.mxu0 0.0
      %922 = vmatpush1.msra.mxu0 0.0
      %923 = vmatprep.subr.mxu0 0.0
      %924 = vmatpush1.msra.mxu0 0.0
      %925 = vmatprep.subr.mxu0 0.0
      %926 = vmatpush1.msra.mxu0 0.0
      %927 = vmatprep.subr.mxu0 0.0
      %928 = vmatpush1.msra.mxu0 0.0
      %929 = vmatprep.subr.mxu0 0.0
      %930 = vmatpush1.msra.mxu0 0.0
      %931 = vmatprep.subr.mxu0 0.0
      %932 = vmatpush1.msra.mxu0 0.0
      %933 = vmatprep.subr.mxu0 0.0
      %934 = vmatpush1.msra.mxu0 0.0
      %935 = vmatprep.subr.mxu0 0.0
      %936 = vmatpush1.msra.mxu0 0.0
      %937 = vmatprep.subr.mxu0 0.0
      %938 = vmatpush1.msra.mxu0 0.0
      %939 = vmatprep.subr.mxu0 0.0
      %940 = vmatpush1.msra.mxu0 0.0
      %941 = vmatprep.subr.mxu0 0.0
      %942 = vmatpush1.msra.mxu0 0.0
      %943 = vmatprep.mubr.f32.mxu0 0.0
      %944 = vmatmul.mubr.f32.gmra.mrb[0].mxu0 %v779
      %v945 = vpop.f32.mrb[0].mxu0
      %v946 = vadd.f32 %v769, %v945
      %v947 = vpop.f32.mrb[0].mxu0
      %v948 = vadd.f32 %v773, %v947
      %949 = vmatprep.mubr.f32.mxu0 0.0
      %950 = vmatmul.mubr.f32.gmra.mrb[0].mxu0 %v782
      %v951 = vpop.f32.mrb[0].mxu0
      %v952 = vadd.f32 %v769, %v951
      %v953 = vpop.f32.mrb[0].mxu0
      %v954 = vadd.f32 %v773, %v953
      %955 = vmatprep.mubr.f32.mxu0 0.0
      %956 = vmatmul.mubr.f32.gmra.mrb[0].mxu0 %v785
      %v957 = vpop.f32.mrb[0].mxu0
      %v958 = vadd.f32 %v769, %v957
      %v959 = vpop.f32.mrb[0].mxu0
      %v960 = vadd.f32 %v773, %v959
      %961 = vmatprep.mubr.f32.mxu0 0.0
      %962 = vmatmul.mubr.f32.gmra.mrb[0].mxu0 %v788
      %v963 = vpop.f32.mrb[0].mxu0
      %v964 = vadd.f32 %v769, %v963
      %v965 = vpop.f32.mrb[0].mxu0
      %v966 = vadd.f32 %v773, %v965
      %967 = vdwg.mxu0
      %968 = vst [vmem:[#allocation6] sm:$0xff] %v857
      %969 = vst [vmem:[#allocation6 + $0x8] sm:$0xff] %v859
      %970 = vst [vmem:[#allocation6 + $0x10] sm:$0xff] %v946
      %971 = vst [vmem:[#allocation6 + $0x18] sm:$0xff] %v948
      %972 = vst [vmem:[#allocation6 + $0x20] sm:$0xff] %v863
      %973 = vst [vmem:[#allocation6 + $0x28] sm:$0xff] %v865
      %974 = vst [vmem:[#allocation6 + $0x30] sm:$0xff] %v952
      %975 = vst [vmem:[#allocation6 + $0x38] sm:$0xff] %v954
      %976 = vst [vmem:[#allocation6 + $0x40] sm:$0xff] %v869
      %977 = vst [vmem:[#allocation6 + $0x48] sm:$0xff] %v871
      %978 = vst [vmem:[#allocation6 + $0x50] sm:$0xff] %v958
      %979 = vst [vmem:[#allocation6 + $0x58] sm:$0xff] %v960
      %980 = vst [vmem:[#allocation6 + $0x60] sm:$0xff] %v875
      %981 = vst [vmem:[#allocation6 + $0x68] sm:$0xff] %v877
      %982 = vst [vmem:[#allocation6 + $0x70] sm:$0xff] %v964
      %983 = vst [vmem:[#allocation6 + $0x78] sm:$0xff] %v966
      %p984 = scmp.eq.s32.totalorder %s25, 0
      // Predicated region
      $region49: #{bidirectional_lstm.1} parent=47 // pred_check
        %p985 = pneg %p984
      $region50: #{bidirectional_lstm.1} parent=47 // pred_check_branch
        %987 = sbr.rel (%p985) target = $region52
      $region51: #{bidirectional_lstm.1} parent=47 // pred_region
        %988 = vst [vmem:[#allocation4] sm:$0xff] 0.0
        %989 = vst [vmem:[#allocation5] sm:$0xff] 0.0
        %990 = vst [vmem:[#allocation8] sm:$0xff] 0.0
        %991 = vst [vmem:[#allocation9] sm:$0xff] 0.0
      $region52: #{bidirectional_lstm.1} parent=47 // pred_fallthru
        _
      %v992 = vld [vmem:[#allocation4] sm:$0xff]
      %v993 = vld [vmem:[#allocation8] sm:$0xff]
      %v994 = vld [vmem:[#allocation5] sm:$0xff]
      %v995 = vld [vmem:[#allocation9] sm:$0xff]
      %v996 = vld [vmem:[#allocation2] sm:$0xff]
      %v997 = vld [vmem:[#allocation2 + $0x8] sm:$0xff]
      %v998 = vld [vmem:[#allocation2 + $0x10] sm:$0xff]
      %v999 = vld [vmem:[#allocation2 + $0x18] sm:$0xff]
      %v1000 = vld [vmem:[%s451] sm:$0xff]
      %v1001 = vld [vmem:[%s451 + $0x8] sm:$0xff]
      %v1002 = vld [vmem:[%s451 + $0x10] sm:$0xff]
      %v1003 = vld [vmem:[%s451 + $0x18] sm:$0xff]
      %v1004 = vld [vmem:[%s451 + $0x20] sm:$0xff]
      %v1005 = vld [vmem:[%s451 + $0x28] sm:$0xff]
      %v1006 = vld [vmem:[%s451 + $0x30] sm:$0xff]
      %v1007 = vld [vmem:[%s451 + $0x38] sm:$0xff]
      %v1008 = vld [vmem:[%s451 + $0x40] sm:$0xff]
      %v1009 = vld [vmem:[%s451 + $0x48] sm:$0xff]
      %v1010 = vld [vmem:[%s451 + $0x50] sm:$0xff]
      %v1011 = vld [vmem:[%s451 + $0x58] sm:$0xff]
      %v1012 = vld [vmem:[%s451 + $0x60] sm:$0xff]
      %v1013 = vld [vmem:[%s451 + $0x68] sm:$0xff]
      %v1014 = vld [vmem:[%s451 + $0x70] sm:$0xff]
      %v1015 = vld [vmem:[%s451 + $0x78] sm:$0xff]
      %v1016 = vld [vmem:[%s451 + $0x80] sm:$0xff]
      %v1017 = vld [vmem:[%s451 + $0x88] sm:$0xff]
      %v1018 = vld [vmem:[%s451 + $0x90] sm:$0xff]
      %v1019 = vld [vmem:[%s451 + $0x98] sm:$0xff]
      %v1020 = vld [vmem:[%s451 + $0xa0] sm:$0xff]
      %v1021 = vld [vmem:[%s451 + $0xa8] sm:$0xff]
      %v1022 = vld [vmem:[%s451 + $0xb0] sm:$0xff]
      %v1023 = vld [vmem:[%s451 + $0xb8] sm:$0xff]
      %v1024 = vld [vmem:[%s451 + $0xc0] sm:$0xff]
      %v1025 = vld [vmem:[%s451 + $0xc8] sm:$0xff]
      %v1026 = vld [vmem:[%s451 + $0xd0] sm:$0xff]
      %v1027 = vld [vmem:[%s451 + $0xd8] sm:$0xff]
      %v1028 = vld [vmem:[%s451 + $0xe0] sm:$0xff]
      %v1029 = vld [vmem:[%s451 + $0xe8] sm:$0xff]
      %v1030 = vld [vmem:[%s451 + $0xf0] sm:$0xff]
      %v1031 = vld [vmem:[%s451 + $0xf8] sm:$0xff]
      %v1032 = vld [vmem:[%s451 + $0x100] sm:$0xff]
      %v1033 = vld [vmem:[%s451 + $0x108] sm:$0xff]
      %v1034 = vld [vmem:[%s451 + $0x110] sm:$0xff]
      %v1035 = vld [vmem:[%s451 + $0x118] sm:$0xff]
      %v1036 = vld [vmem:[%s451 + $0x120] sm:$0xff]
      %v1037 = vld [vmem:[%s451 + $0x128] sm:$0xff]
      %v1038 = vld [vmem:[%s451 + $0x130] sm:$0xff]
      %v1039 = vld [vmem:[%s451 + $0x138] sm:$0xff]
      %v1040 = vld [vmem:[%s451 + $0x140] sm:$0xff]
      %v1041 = vld [vmem:[%s451 + $0x148] sm:$0xff]
      %v1042 = vld [vmem:[%s451 + $0x150] sm:$0xff]
      %v1043 = vld [vmem:[%s451 + $0x158] sm:$0xff]
      %v1044 = vld [vmem:[%s451 + $0x160] sm:$0xff]
      %v1045 = vld [vmem:[%s451 + $0x168] sm:$0xff]
      %v1046 = vld [vmem:[%s451 + $0x170] sm:$0xff]
      %v1047 = vld [vmem:[%s451 + $0x178] sm:$0xff]
      %v1048 = vld [vmem:[%s451 + $0x180] sm:$0xff]
      %v1049 = vld [vmem:[%s451 + $0x188] sm:$0xff]
      %v1050 = vld [vmem:[%s451 + $0x190] sm:$0xff]
      %v1051 = vld [vmem:[%s451 + $0x198] sm:$0xff]
      %v1052 = vld [vmem:[%s451 + $0x1a0] sm:$0xff]
      %v1053 = vld [vmem:[%s451 + $0x1a8] sm:$0xff]
      %v1054 = vld [vmem:[%s451 + $0x1b0] sm:$0xff]
      %v1055 = vld [vmem:[%s451 + $0x1b8] sm:$0xff]
      %v1056 = vld [vmem:[%s451 + $0x1c0] sm:$0xff]
      %v1057 = vld [vmem:[%s451 + $0x1c8] sm:$0xff]
      %v1058 = vld [vmem:[%s451 + $0x1d0] sm:$0xff]
      %v1059 = vld [vmem:[%s451 + $0x1d8] sm:$0xff]
      %v1060 = vld [vmem:[%s451 + $0x1e0] sm:$0xff]
      %v1061 = vld [vmem:[%s451 + $0x1e8] sm:$0xff]
      %v1062 = vld [vmem:[%s451 + $0x1f0] sm:$0xff]
      %v1063 = vld [vmem:[%s451 + $0x1f8] sm:$0xff]
      %1064 = vmatprep.subr.mxu0 %v1001
      %1065 = vmatpush1.msra.mxu0 %v1000
      %1066 = vmatprep.subr.mxu0 %v1005
      %1067 = vmatpush1.msra.mxu0 %v1004
      %1068 = vmatprep.subr.mxu0 %v1009
      %1069 = vmatpush1.msra.mxu0 %v1008
      %1070 = vmatprep.subr.mxu0 %v1013
      %1071 = vmatpush1.msra.mxu0 %v1012
      %1072 = vmatprep.subr.mxu0 %v1017
      %1073 = vmatpush1.msra.mxu0 %v1016
      %1074 = vmatprep.subr.mxu0 %v1021
      %1075 = vmatpush1.msra.mxu0 %v1020
      %1076 = vmatprep.subr.mxu0 %v1025
      %1077 = vmatpush1.msra.mxu0 %v1024
      %1078 = vmatprep.subr.mxu0 %v1029
      %1079 = vmatpush1.msra.mxu0 %v1028
      %1080 = vmatprep.subr.mxu0 %v1033
      %1081 = vmatpush1.msra.mxu0 %v1032
      %1082 = vmatprep.subr.mxu0 %v1037
      %1083 = vmatpush1.msra.mxu0 %v1036
      %1084 = vmatprep.subr.mxu0 %v1041
      %1085 = vmatpush1.msra.mxu0 %v1040
      %1086 = vmatprep.subr.mxu0 %v1045
      %1087 = vmatpush1.msra.mxu0 %v1044
      %1088 = vmatprep.subr.mxu0 %v1049
      %1089 = vmatpush1.msra.mxu0 %v1048
      %1090 = vmatprep.subr.mxu0 %v1053
      %1091 = vmatpush1.msra.mxu0 %v1052
      %1092 = vmatprep.subr.mxu0 %v1057
      %1093 = vmatpush1.msra.mxu0 %v1056
      %1094 = vmatprep.subr.mxu0 %v1061
      %1095 = vmatpush1.msra.mxu0 %v1060
      %1096 = vmatprep.subr.mxu0 0.0
      %1097 = vmatpush1.msra.mxu0 0.0
      %1098 = vmatprep.subr.mxu0 0.0
      %1099 = vmatpush1.msra.mxu0 0.0
      %1100 = vmatprep.subr.mxu0 0.0
      %1101 = vmatpush1.msra.mxu0 0.0
      %1102 = vmatprep.subr.mxu0 0.0
      %1103 = vmatpush1.msra.mxu0 0.0
      %1104 = vmatprep.subr.mxu0 0.0
      %1105 = vmatpush1.msra.mxu0 0.0
      %1106 = vmatprep.subr.mxu0 0.0
      %1107 = vmatpush1.msra.mxu0 0.0
      %1108 = vmatprep.subr.mxu0 0.0
      %1109 = vmatpush1.msra.mxu0 0.0
      %1110 = vmatprep.subr.mxu0 0.0
      %1111 = vmatpush1.msra.mxu0 0.0
      %1112 = vmatprep.subr.mxu0 0.0
      %1113 = vmatpush1.msra.mxu0 0.0
      %1114 = vmatprep.subr.mxu0 0.0
      %1115 = vmatpush1.msra.mxu0 0.0
      %1116 = vmatprep.subr.mxu0 0.0
      %1117 = vmatpush1.msra.mxu0 0.0
      %1118 = vmatprep.subr.mxu0 0.0
      %1119 = vmatpush1.msra.mxu0 0.0
      %1120 = vmatprep.subr.mxu0 0.0
      %1121 = vmatpush1.msra.mxu0 0.0
      %1122 = vmatprep.subr.mxu0 0.0
      %1123 = vmatpush1.msra.mxu0 0.0
      %1124 = vmatprep.subr.mxu0 0.0
      %1125 = vmatpush1.msra.mxu0 0.0
      %1126 = vmatprep.subr.mxu0 0.0
      %1127 = vmatpush1.msra.mxu0 0.0
      %1128 = vmatprep.mubr.f32.mxu0 0.0
      %1129 = vmatmul.mubr.f32.gmra.mrb[0].mxu0 %v992
      %v1130 = vpop.f32.mrb[0].mxu0
      %v1131 = vadd.f32 0.0, %v1130
      %v1132 = vpop.f32.mrb[0].mxu0
      %v1133 = vadd.f32 0.0, %v1132
      %1134 = vdwg.mxu0
      %1135 = vmatprep.subr.mxu0 %v1003
      %1136 = vmatpush1.msra.mxu0 %v1002
      %1137 = vmatprep.subr.mxu0 %v1007
      %1138 = vmatpush1.msra.mxu0 %v1006
      %1139 = vmatprep.subr.mxu0 %v1011
      %1140 = vmatpush1.msra.mxu0 %v1010
      %1141 = vmatprep.subr.mxu0 %v1015
      %1142 = vmatpush1.msra.mxu0 %v1014
      %1143 = vmatprep.subr.mxu0 %v1019
      %1144 = vmatpush1.msra.mxu0 %v1018
      %1145 = vmatprep.subr.mxu0 %v1023
      %1146 = vmatpush1.msra.mxu0 %v1022
      %1147 = vmatprep.subr.mxu0 %v1027
      %1148 = vmatpush1.msra.mxu0 %v1026
      %1149 = vmatprep.subr.mxu0 %v1031
      %1150 = vmatpush1.msra.mxu0 %v1030
      %1151 = vmatprep.subr.mxu0 %v1035
      %1152 = vmatpush1.msra.mxu0 %v1034
      %1153 = vmatprep.subr.mxu0 %v1039
      %1154 = vmatpush1.msra.mxu0 %v1038
      %1155 = vmatprep.subr.mxu0 %v1043
      %1156 = vmatpush1.msra.mxu0 %v1042
      %1157 = vmatprep.subr.mxu0 %v1047
      %1158 = vmatpush1.msra.mxu0 %v1046
      %1159 = vmatprep.subr.mxu0 %v1051
      %1160 = vmatpush1.msra.mxu0 %v1050
      %1161 = vmatprep.subr.mxu0 %v1055
      %1162 = vmatpush1.msra.mxu0 %v1054
      %1163 = vmatprep.subr.mxu0 %v1059
      %1164 = vmatpush1.msra.mxu0 %v1058
      %1165 = vmatprep.subr.mxu0 %v1063
      %1166 = vmatpush1.msra.mxu0 %v1062
      %1167 = vmatprep.subr.mxu0 0.0
      %1168 = vmatpush1.msra.mxu0 0.0
      %1169 = vmatprep.subr.mxu0 0.0
      %1170 = vmatpush1.msra.mxu0 0.0
      %1171 = vmatprep.subr.mxu0 0.0
      %1172 = vmatpush1.msra.mxu0 0.0
      %1173 = vmatprep.subr.mxu0 0.0
      %1174 = vmatpush1.msra.mxu0 0.0
      %1175 = vmatprep.subr.mxu0 0.0
      %1176 = vmatpush1.msra.mxu0 0.0
      %1177 = vmatprep.subr.mxu0 0.0
      %1178 = vmatpush1.msra.mxu0 0.0
      %1179 = vmatprep.subr.mxu0 0.0
      %1180 = vmatpush1.msra.mxu0 0.0
      %1181 = vmatprep.subr.mxu0 0.0
      %1182 = vmatpush1.msra.mxu0 0.0
      %1183 = vmatprep.subr.mxu0 0.0
      %1184 = vmatpush1.msra.mxu0 0.0
      %1185 = vmatprep.subr.mxu0 0.0
      %1186 = vmatpush1.msra.mxu0 0.0
      %1187 = vmatprep.subr.mxu0 0.0
      %1188 = vmatpush1.msra.mxu0 0.0
      %1189 = vmatprep.subr.mxu0 0.0
      %1190 = vmatpush1.msra.mxu0 0.0
      %1191 = vmatprep.subr.mxu0 0.0
      %1192 = vmatpush1.msra.mxu0 0.0
      %1193 = vmatprep.subr.mxu0 0.0
      %1194 = vmatpush1.msra.mxu0 0.0
      %1195 = vmatprep.subr.mxu0 0.0
      %1196 = vmatpush1.msra.mxu0 0.0
      %1197 = vmatprep.subr.mxu0 0.0
      %1198 = vmatpush1.msra.mxu0 0.0
      %1199 = vmatprep.mubr.f32.mxu0 0.0
      %1200 = vmatmul.mubr.f32.gmra.mrb[0].mxu0 %v992
      %v1201 = vpop.f32.mrb[0].mxu0
      %v1202 = vadd.f32 0.0, %v1201
      %v1203 = vpop.f32.mrb[0].mxu0
      %v1204 = vadd.f32 0.0, %v1203
      %1205 = vdwg.mxu0
      %v1206 = vadd.f32 %v996, %v1131
      %v1207 = vadd.f32 %v997, %v1133
      %v1208 = vadd.f32 %v998, %v1202
      %v1209 = vadd.f32 %v999, %v1204
      %v1210 = vxor.u32 %v1206, 2147483648
      %v1211 = vmul.f32 %v1210, 1.442695
      %v1212 = vpow.pop %v1211
      %v1213 = vadd.f32 %v1212, 1.0
      %v1214 = vrcp.pop %v1213
      %v1215 = vmul.f32 1.0, %v1214
      %v1216 = vxor.u32 %v1207, 2147483648
      %v1217 = vmul.f32 %v1216, 1.442695
      %v1218 = vpow.pop %v1217
      %v1219 = vadd.f32 %v1218, 1.0
      %v1220 = vrcp.pop %v1219
      %v1221 = vmul.f32 1.0, %v1220
      %v1222 = vtanh.pop %v1208
      %v1223 = vxor.u32 %v1209, 2147483648
      %v1224 = vmul.f32 %v1223, 1.442695
      %v1225 = vpow.pop %v1224
      %v1226 = vadd.f32 %v1225, 1.0
      %v1227 = vrcp.pop %v1226
      %v1228 = vmul.f32 1.0, %v1227
      %v1229 = vmul.f32 %v1221, %v994
      %v1230 = vmul.f32 %v1215, %v1222
      %v1231 = vadd.f32 %v1229, %v1230
      %v1232 = vtanh.pop %v1231
      %v1233 = vmul.f32 %v1228, %v1232
      %1234 = vst [vmem:[#allocation3] sm:$0xff] %v1233
      %s1235 = scalar_lea.vmem [#allocation6], 96
      %v1236 = vld [vmem:[%s1235] sm:$0xff]
      %v1237 = vld [vmem:[%s1235 + $0x8] sm:$0xff]
      %v1238 = vld [vmem:[%s1235 + $0x10] sm:$0xff]
      %v1239 = vld [vmem:[%s1235 + $0x18] sm:$0xff]
      %s1240 = scalar_lea.vmem %s451, 512
      %v1241 = vld [vmem:[%s1240] sm:$0xff]
      %v1242 = vld [vmem:[%s1240 + $0x8] sm:$0xff]
      %v1243 = vld [vmem:[%s1240 + $0x10] sm:$0xff]
      %v1244 = vld [vmem:[%s1240 + $0x18] sm:$0xff]
      %v1245 = vld [vmem:[%s1240 + $0x20] sm:$0xff]
      %v1246 = vld [vmem:[%s1240 + $0x28] sm:$0xff]
      %v1247 = vld [vmem:[%s1240 + $0x30] sm:$0xff]
      %v1248 = vld [vmem:[%s1240 + $0x38] sm:$0xff]
      %v1249 = vld [vmem:[%s1240 + $0x40] sm:$0xff]
      %v1250 = vld [vmem:[%s1240 + $0x48] sm:$0xff]
      %v1251 = vld [vmem:[%s1240 + $0x50] sm:$0xff]
      %v1252 = vld [vmem:[%s1240 + $0x58] sm:$0xff]
      %v1253 = vld [vmem:[%s1240 + $0x60] sm:$0xff]
      %v1254 = vld [vmem:[%s1240 + $0x68] sm:$0xff]
      %v1255 = vld [vmem:[%s1240 + $0x70] sm:$0xff]
      %v1256 = vld [vmem:[%s1240 + $0x78] sm:$0xff]
      %v1257 = vld [vmem:[%s1240 + $0x80] sm:$0xff]
      %v1258 = vld [vmem:[%s1240 + $0x88] sm:$0xff]
      %v1259 = vld [vmem:[%s1240 + $0x90] sm:$0xff]
      %v1260 = vld [vmem:[%s1240 + $0x98] sm:$0xff]
      %v1261 = vld [vmem:[%s1240 + $0xa0] sm:$0xff]
      %v1262 = vld [vmem:[%s1240 + $0xa8] sm:$0xff]
      %v1263 = vld [vmem:[%s1240 + $0xb0] sm:$0xff]
      %v1264 = vld [vmem:[%s1240 + $0xb8] sm:$0xff]
      %v1265 = vld [vmem:[%s1240 + $0xc0] sm:$0xff]
      %v1266 = vld [vmem:[%s1240 + $0xc8] sm:$0xff]
      %v1267 = vld [vmem:[%s1240 + $0xd0] sm:$0xff]
      %v1268 = vld [vmem:[%s1240 + $0xd8] sm:$0xff]
      %v1269 = vld [vmem:[%s1240 + $0xe0] sm:$0xff]
      %v1270 = vld [vmem:[%s1240 + $0xe8] sm:$0xff]
      %v1271 = vld [vmem:[%s1240 + $0xf0] sm:$0xff]
      %v1272 = vld [vmem:[%s1240 + $0xf8] sm:$0xff]
      %v1273 = vld [vmem:[%s1240 + $0x100] sm:$0xff]
      %v1274 = vld [vmem:[%s1240 + $0x108] sm:$0xff]
      %v1275 = vld [vmem:[%s1240 + $0x110] sm:$0xff]
      %v1276 = vld [vmem:[%s1240 + $0x118] sm:$0xff]
      %v1277 = vld [vmem:[%s1240 + $0x120] sm:$0xff]
      %v1278 = vld [vmem:[%s1240 + $0x128] sm:$0xff]
      %v1279 = vld [vmem:[%s1240 + $0x130] sm:$0xff]
      %v1280 = vld [vmem:[%s1240 + $0x138] sm:$0xff]
      %v1281 = vld [vmem:[%s1240 + $0x140] sm:$0xff]
      %v1282 = vld [vmem:[%s1240 + $0x148] sm:$0xff]
      %v1283 = vld [vmem:[%s1240 + $0x150] sm:$0xff]
      %v1284 = vld [vmem:[%s1240 + $0x158] sm:$0xff]
      %v1285 = vld [vmem:[%s1240 + $0x160] sm:$0xff]
      %v1286 = vld [vmem:[%s1240 + $0x168] sm:$0xff]
      %v1287 = vld [vmem:[%s1240 + $0x170] sm:$0xff]
      %v1288 = vld [vmem:[%s1240 + $0x178] sm:$0xff]
      %v1289 = vld [vmem:[%s1240 + $0x180] sm:$0xff]
      %v1290 = vld [vmem:[%s1240 + $0x188] sm:$0xff]
      %v1291 = vld [vmem:[%s1240 + $0x190] sm:$0xff]
      %v1292 = vld [vmem:[%s1240 + $0x198] sm:$0xff]
      %v1293 = vld [vmem:[%s1240 + $0x1a0] sm:$0xff]
      %v1294 = vld [vmem:[%s1240 + $0x1a8] sm:$0xff]
      %v1295 = vld [vmem:[%s1240 + $0x1b0] sm:$0xff]
      %v1296 = vld [vmem:[%s1240 + $0x1b8] sm:$0xff]
      %v1297 = vld [vmem:[%s1240 + $0x1c0] sm:$0xff]
      %v1298 = vld [vmem:[%s1240 + $0x1c8] sm:$0xff]
      %v1299 = vld [vmem:[%s1240 + $0x1d0] sm:$0xff]
      %v1300 = vld [vmem:[%s1240 + $0x1d8] sm:$0xff]
      %v1301 = vld [vmem:[%s1240 + $0x1e0] sm:$0xff]
      %v1302 = vld [vmem:[%s1240 + $0x1e8] sm:$0xff]
      %v1303 = vld [vmem:[%s1240 + $0x1f0] sm:$0xff]
      %v1304 = vld [vmem:[%s1240 + $0x1f8] sm:$0xff]
      %1305 = vmatprep.subr.mxu0 %v1242
      %1306 = vmatpush1.msra.mxu0 %v1241
      %1307 = vmatprep.subr.mxu0 %v1246
      %1308 = vmatpush1.msra.mxu0 %v1245
      %1309 = vmatprep.subr.mxu0 %v1250
      %1310 = vmatpush1.msra.mxu0 %v1249
      %1311 = vmatprep.subr.mxu0 %v1254
      %1312 = vmatpush1.msra.mxu0 %v1253
      %1313 = vmatprep.subr.mxu0 %v1258
      %1314 = vmatpush1.msra.mxu0 %v1257
      %1315 = vmatprep.subr.mxu0 %v1262
      %1316 = vmatpush1.msra.mxu0 %v1261
      %1317 = vmatprep.subr.mxu0 %v1266
      %1318 = vmatpush1.msra.mxu0 %v1265
      %1319 = vmatprep.subr.mxu0 %v1270
      %1320 = vmatpush1.msra.mxu0 %v1269
      %1321 = vmatprep.subr.mxu0 %v1274
      %1322 = vmatpush1.msra.mxu0 %v1273
      %1323 = vmatprep.subr.mxu0 %v1278
      %1324 = vmatpush1.msra.mxu0 %v1277
      %1325 = vmatprep.subr.mxu0 %v1282
      %1326 = vmatpush1.msra.mxu0 %v1281
      %1327 = vmatprep.subr.mxu0 %v1286
      %1328 = vmatpush1.msra.mxu0 %v1285
      %1329 = vmatprep.subr.mxu0 %v1290
      %1330 = vmatpush1.msra.mxu0 %v1289
      %1331 = vmatprep.subr.mxu0 %v1294
      %1332 = vmatpush1.msra.mxu0 %v1293
      %1333 = vmatprep.subr.mxu0 %v1298
      %1334 = vmatpush1.msra.mxu0 %v1297
      %1335 = vmatprep.subr.mxu0 %v1302
      %1336 = vmatpush1.msra.mxu0 %v1301
      %1337 = vmatprep.subr.mxu0 0.0
      %1338 = vmatpush1.msra.mxu0 0.0
      %1339 = vmatprep.subr.mxu0 0.0
      %1340 = vmatpush1.msra.mxu0 0.0
      %1341 = vmatprep.subr.mxu0 0.0
      %1342 = vmatpush1.msra.mxu0 0.0
      %1343 = vmatprep.subr.mxu0 0.0
      %1344 = vmatpush1.msra.mxu0 0.0
      %1345 = vmatprep.subr.mxu0 0.0
      %1346 = vmatpush1.msra.mxu0 0.0
      %1347 = vmatprep.subr.mxu0 0.0
      %1348 = vmatpush1.msra.mxu0 0.0
      %1349 = vmatprep.subr.mxu0 0.0
      %1350 = vmatpush1.msra.mxu0 0.0
      %1351 = vmatprep.subr.mxu0 0.0
      %1352 = vmatpush1.msra.mxu0 0.0
      %1353 = vmatprep.subr.mxu0 0.0
      %1354 = vmatpush1.msra.mxu0 0.0
      %1355 = vmatprep.subr.mxu0 0.0
      %1356 = vmatpush1.msra.mxu0 0.0
      %1357 = vmatprep.subr.mxu0 0.0
      %1358 = vmatpush1.msra.mxu0 0.0
      %1359 = vmatprep.subr.mxu0 0.0
      %1360 = vmatpush1.msra.mxu0 0.0
      %1361 = vmatprep.subr.mxu0 0.0
      %1362 = vmatpush1.msra.mxu0 0.0
      %1363 = vmatprep.subr.mxu0 0.0
      %1364 = vmatpush1.msra.mxu0 0.0
      %1365 = vmatprep.subr.mxu0 0.0
      %1366 = vmatpush1.msra.mxu0 0.0
      %1367 = vmatprep.subr.mxu0 0.0
      %1368 = vmatpush1.msra.mxu0 0.0
      %1369 = vmatprep.mubr.f32.mxu0 0.0
      %1370 = vmatmul.mubr.f32.gmra.mrb[0].mxu0 %v993
      %v1371 = vpop.f32.mrb[0].mxu0
      %v1372 = vadd.f32 0.0, %v1371
      %v1373 = vpop.f32.mrb[0].mxu0
      %v1374 = vadd.f32 0.0, %v1373
      %1375 = vdwg.mxu0
      %1376 = vmatprep.subr.mxu0 %v1244
      %1377 = vmatpush1.msra.mxu0 %v1243
      %1378 = vmatprep.subr.mxu0 %v1248
      %1379 = vmatpush1.msra.mxu0 %v1247
      %1380 = vmatprep.subr.mxu0 %v1252
      %1381 = vmatpush1.msra.mxu0 %v1251
      %1382 = vmatprep.subr.mxu0 %v1256
      %1383 = vmatpush1.msra.mxu0 %v1255
      %1384 = vmatprep.subr.mxu0 %v1260
      %1385 = vmatpush1.msra.mxu0 %v1259
      %1386 = vmatprep.subr.mxu0 %v1264
      %1387 = vmatpush1.msra.mxu0 %v1263
      %1388 = vmatprep.subr.mxu0 %v1268
      %1389 = vmatpush1.msra.mxu0 %v1267
      %1390 = vmatprep.subr.mxu0 %v1272
      %1391 = vmatpush1.msra.mxu0 %v1271
      %1392 = vmatprep.subr.mxu0 %v1276
      %1393 = vmatpush1.msra.mxu0 %v1275
      %1394 = vmatprep.subr.mxu0 %v1280
      %1395 = vmatpush1.msra.mxu0 %v1279
      %1396 = vmatprep.subr.mxu0 %v1284
      %1397 = vmatpush1.msra.mxu0 %v1283
      %1398 = vmatprep.subr.mxu0 %v1288
      %1399 = vmatpush1.msra.mxu0 %v1287
      %1400 = vmatprep.subr.mxu0 %v1292
      %1401 = vmatpush1.msra.mxu0 %v1291
      %1402 = vmatprep.subr.mxu0 %v1296
      %1403 = vmatpush1.msra.mxu0 %v1295
      %1404 = vmatprep.subr.mxu0 %v1300
      %1405 = vmatpush1.msra.mxu0 %v1299
      %1406 = vmatprep.subr.mxu0 %v1304
      %1407 = vmatpush1.msra.mxu0 %v1303
      %1408 = vmatprep.subr.mxu0 0.0
      %1409 = vmatpush1.msra.mxu0 0.0
      %1410 = vmatprep.subr.mxu0 0.0
      %1411 = vmatpush1.msra.mxu0 0.0
      %1412 = vmatprep.subr.mxu0 0.0
      %1413 = vmatpush1.msra.mxu0 0.0
      %1414 = vmatprep.subr.mxu0 0.0
      %1415 = vmatpush1.msra.mxu0 0.0
      %1416 = vmatprep.subr.mxu0 0.0
      %1417 = vmatpush1.msra.mxu0 0.0
      %1418 = vmatprep.subr.mxu0 0.0
      %1419 = vmatpush1.msra.mxu0 0.0
      %1420 = vmatprep.subr.mxu0 0.0
      %1421 = vmatpush1.msra.mxu0 0.0
      %1422 = vmatprep.subr.mxu0 0.0
      %1423 = vmatpush1.msra.mxu0 0.0
      %1424 = vmatprep.subr.mxu0 0.0
      %1425 = vmatpush1.msra.mxu0 0.0
      %1426 = vmatprep.subr.mxu0 0.0
      %1427 = vmatpush1.msra.mxu0 0.0
      %1428 = vmatprep.subr.mxu0 0.0
      %1429 = vmatpush1.msra.mxu0 0.0
      %1430 = vmatprep.subr.mxu0 0.0
      %1431 = vmatpush1.msra.mxu0 0.0
      %1432 = vmatprep.subr.mxu0 0.0
      %1433 = vmatpush1.msra.mxu0 0.0
      %1434 = vmatprep.subr.mxu0 0.0
      %1435 = vmatpush1.msra.mxu0 0.0
      %1436 = vmatprep.subr.mxu0 0.0
      %1437 = vmatpush1.msra.mxu0 0.0
      %1438 = vmatprep.subr.mxu0 0.0
      %1439 = vmatpush1.msra.mxu0 0.0
      %1440 = vmatprep.mubr.f32.mxu0 0.0
      %1441 = vmatmul.mubr.f32.gmra.mrb[0].mxu0 %v993
      %v1442 = vpop.f32.mrb[0].mxu0
      %v1443 = vadd.f32 0.0, %v1442
      %v1444 = vpop.f32.mrb[0].mxu0
      %v1445 = vadd.f32 0.0, %v1444
      %1446 = vdwg.mxu0
      %v1447 = vadd.f32 %v1236, %v1372
      %v1448 = vadd.f32 %v1237, %v1374
      %v1449 = vadd.f32 %v1238, %v1443
      %v1450 = vadd.f32 %v1239, %v1445
      %v1451 = vxor.u32 %v1447, 2147483648
      %v1452 = vmul.f32 %v1451, 1.442695
      %v1453 = vpow.pop %v1452
      %v1454 = vadd.f32 %v1453, 1.0
      %v1455 = vrcp.pop %v1454
      %v1456 = vmul.f32 1.0, %v1455
      %v1457 = vxor.u32 %v1448, 2147483648
      %v1458 = vmul.f32 %v1457, 1.442695
      %v1459 = vpow.pop %v1458
      %v1460 = vadd.f32 %v1459, 1.0
      %v1461 = vrcp.pop %v1460
      %v1462 = vmul.f32 1.0, %v1461
      %v1463 = vtanh.pop %v1449
      %v1464 = vxor.u32 %v1450, 2147483648
      %v1465 = vmul.f32 %v1464, 1.442695
      %v1466 = vpow.pop %v1465
      %v1467 = vadd.f32 %v1466, 1.0
      %v1468 = vrcp.pop %v1467
      %v1469 = vmul.f32 1.0, %v1468
      %v1470 = vmul.f32 %v1462, %v995
      %v1471 = vmul.f32 %v1456, %v1463
      %v1472 = vadd.f32 %v1470, %v1471
      %v1473 = vtanh.pop %v1472
      %v1474 = vmul.f32 %v1469, %v1473
      %s1475 = scalar_lea.vmem [#allocation7], 24
      %1476 = vst [vmem:[%s1475] sm:$0xff] %v1474
      %s1477 = scalar_lea.vmem [#allocation2], 32
      %v1478 = vld [vmem:[%s1477] sm:$0xff]
      %v1479 = vld [vmem:[%s1477 + $0x8] sm:$0xff]
      %v1480 = vld [vmem:[%s1477 + $0x10] sm:$0xff]
      %v1481 = vld [vmem:[%s1477 + $0x18] sm:$0xff]
      %v1482 = vld [vmem:[%s451] sm:$0xff]
      %v1483 = vld [vmem:[%s451 + $0x8] sm:$0xff]
      %v1484 = vld [vmem:[%s451 + $0x10] sm:$0xff]
      %v1485 = vld [vmem:[%s451 + $0x18] sm:$0xff]
      %v1486 = vld [vmem:[%s451 + $0x20] sm:$0xff]
      %v1487 = vld [vmem:[%s451 + $0x28] sm:$0xff]
      %v1488 = vld [vmem:[%s451 + $0x30] sm:$0xff]
      %v1489 = vld [vmem:[%s451 + $0x38] sm:$0xff]
      %v1490 = vld [vmem:[%s451 + $0x40] sm:$0xff]
      %v1491 = vld [vmem:[%s451 + $0x48] sm:$0xff]
      %v1492 = vld [vmem:[%s451 + $0x50] sm:$0xff]
      %v1493 = vld [vmem:[%s451 + $0x58] sm:$0xff]
      %v1494 = vld [vmem:[%s451 + $0x60] sm:$0xff]
      %v1495 = vld [vmem:[%s451 + $0x68] sm:$0xff]
      %v1496 = vld [vmem:[%s451 + $0x70] sm:$0xff]
      %v1497 = vld [vmem:[%s451 + $0x78] sm:$0xff]
      %v1498 = vld [vmem:[%s451 + $0x80] sm:$0xff]
      %v1499 = vld [vmem:[%s451 + $0x88] sm:$0xff]
      %v1500 = vld [vmem:[%s451 + $0x90] sm:$0xff]
      %v1501 = vld [vmem:[%s451 + $0x98] sm:$0xff]
      %v1502 = vld [vmem:[%s451 + $0xa0] sm:$0xff]
      %v1503 = vld [vmem:[%s451 + $0xa8] sm:$0xff]
      %v1504 = vld [vmem:[%s451 + $0xb0] sm:$0xff]
      %v1505 = vld [vmem:[%s451 + $0xb8] sm:$0xff]
      %v1506 = vld [vmem:[%s451 + $0xc0] sm:$0xff]
      %v1507 = vld [vmem:[%s451 + $0xc8] sm:$0xff]
      %v1508 = vld [vmem:[%s451 + $0xd0] sm:$0xff]
      %v1509 = vld [vmem:[%s451 + $0xd8] sm:$0xff]
      %v1510 = vld [vmem:[%s451 + $0xe0] sm:$0xff]
      %v1511 = vld [vmem:[%s451 + $0xe8] sm:$0xff]
      %v1512 = vld [vmem:[%s451 + $0xf0] sm:$0xff]
      %v1513 = vld [vmem:[%s451 + $0xf8] sm:$0xff]
      %v1514 = vld [vmem:[%s451 + $0x100] sm:$0xff]
      %v1515 = vld [vmem:[%s451 + $0x108] sm:$0xff]
      %v1516 = vld [vmem:[%s451 + $0x110] sm:$0xff]
      %v1517 = vld [vmem:[%s451 + $0x118] sm:$0xff]
      %v1518 = vld [vmem:[%s451 + $0x120] sm:$0xff]
      %v1519 = vld [vmem:[%s451 + $0x128] sm:$0xff]
      %v1520 = vld [vmem:[%s451 + $0x130] sm:$0xff]
      %v1521 = vld [vmem:[%s451 + $0x138] sm:$0xff]
      %v1522 = vld [vmem:[%s451 + $0x140] sm:$0xff]
      %v1523 = vld [vmem:[%s451 + $0x148] sm:$0xff]
      %v1524 = vld [vmem:[%s451 + $0x150] sm:$0xff]
      %v1525 = vld [vmem:[%s451 + $0x158] sm:$0xff]
      %v1526 = vld [vmem:[%s451 + $0x160] sm:$0xff]
      %v1527 = vld [vmem:[%s451 + $0x168] sm:$0xff]
      %v1528 = vld [vmem:[%s451 + $0x170] sm:$0xff]
      %v1529 = vld [vmem:[%s451 + $0x178] sm:$0xff]
      %v1530 = vld [vmem:[%s451 + $0x180] sm:$0xff]
      %v1531 = vld [vmem:[%s451 + $0x188] sm:$0xff]
      %v1532 = vld [vmem:[%s451 + $0x190] sm:$0xff]
      %v1533 = vld [vmem:[%s451 + $0x198] sm:$0xff]
      %v1534 = vld [vmem:[%s451 + $0x1a0] sm:$0xff]
      %v1535 = vld [vmem:[%s451 + $0x1a8] sm:$0xff]
      %v1536 = vld [vmem:[%s451 + $0x1b0] sm:$0xff]
      %v1537 = vld [vmem:[%s451 + $0x1b8] sm:$0xff]
      %v1538 = vld [vmem:[%s451 + $0x1c0] sm:$0xff]
      %v1539 = vld [vmem:[%s451 + $0x1c8] sm:$0xff]
      %v1540 = vld [vmem:[%s451 + $0x1d0] sm:$0xff]
      %v1541 = vld [vmem:[%s451 + $0x1d8] sm:$0xff]
      %v1542 = vld [vmem:[%s451 + $0x1e0] sm:$0xff]
      %v1543 = vld [vmem:[%s451 + $0x1e8] sm:$0xff]
      %v1544 = vld [vmem:[%s451 + $0x1f0] sm:$0xff]
      %v1545 = vld [vmem:[%s451 + $0x1f8] sm:$0xff]
      %1546 = vmatprep.subr.mxu0 %v1483
      %1547 = vmatpush1.msra.mxu0 %v1482
      %1548 = vmatprep.subr.mxu0 %v1487
      %1549 = vmatpush1.msra.mxu0 %v1486
      %1550 = vmatprep.subr.mxu0 %v1491
      %1551 = vmatpush1.msra.mxu0 %v1490
      %1552 = vmatprep.subr.mxu0 %v1495
      %1553 = vmatpush1.msra.mxu0 %v1494
      %1554 = vmatprep.subr.mxu0 %v1499
      %1555 = vmatpush1.msra.mxu0 %v1498
      %1556 = vmatprep.subr.mxu0 %v1503
      %1557 = vmatpush1.msra.mxu0 %v1502
      %1558 = vmatprep.subr.mxu0 %v1507
      %1559 = vmatpush1.msra.mxu0 %v1506
      %1560 = vmatprep.subr.mxu0 %v1511
      %1561 = vmatpush1.msra.mxu0 %v1510
      %1562 = vmatprep.subr.mxu0 %v1515
      %1563 = vmatpush1.msra.mxu0 %v1514
      %1564 = vmatprep.subr.mxu0 %v1519
      %1565 = vmatpush1.msra.mxu0 %v1518
      %1566 = vmatprep.subr.mxu0 %v1523
      %1567 = vmatpush1.msra.mxu0 %v1522
      %1568 = vmatprep.subr.mxu0 %v1527
      %1569 = vmatpush1.msra.mxu0 %v1526
      %1570 = vmatprep.subr.mxu0 %v1531
      %1571 = vmatpush1.msra.mxu0 %v1530
      %1572 = vmatprep.subr.mxu0 %v1535
      %1573 = vmatpush1.msra.mxu0 %v1534
      %1574 = vmatprep.subr.mxu0 %v1539
      %1575 = vmatpush1.msra.mxu0 %v1538
      %1576 = vmatprep.subr.mxu0 %v1543
      %1577 = vmatpush1.msra.mxu0 %v1542
      %1578 = vmatprep.subr.mxu0 0.0
      %1579 = vmatpush1.msra.mxu0 0.0
      %1580 = vmatprep.subr.mxu0 0.0
      %1581 = vmatpush1.msra.mxu0 0.0
      %1582 = vmatprep.subr.mxu0 0.0
      %1583 = vmatpush1.msra.mxu0 0.0
      %1584 = vmatprep.subr.mxu0 0.0
      %1585 = vmatpush1.msra.mxu0 0.0
      %1586 = vmatprep.subr.mxu0 0.0
      %1587 = vmatpush1.msra.mxu0 0.0
      %1588 = vmatprep.subr.mxu0 0.0
      %1589 = vmatpush1.msra.mxu0 0.0
      %1590 = vmatprep.subr.mxu0 0.0
      %1591 = vmatpush1.msra.mxu0 0.0
      %1592 = vmatprep.subr.mxu0 0.0
      %1593 = vmatpush1.msra.mxu0 0.0
      %1594 = vmatprep.subr.mxu0 0.0
      %1595 = vmatpush1.msra.mxu0 0.0
      %1596 = vmatprep.subr.mxu0 0.0
      %1597 = vmatpush1.msra.mxu0 0.0
      %1598 = vmatprep.subr.mxu0 0.0
      %1599 = vmatpush1.msra.mxu0 0.0
      %1600 = vmatprep.subr.mxu0 0.0
      %1601 = vmatpush1.msra.mxu0 0.0
      %1602 = vmatprep.subr.mxu0 0.0
      %1603 = vmatpush1.msra.mxu0 0.0
      %1604 = vmatprep.subr.mxu0 0.0
      %1605 = vmatpush1.msra.mxu0 0.0
      %1606 = vmatprep.subr.mxu0 0.0
      %1607 = vmatpush1.msra.mxu0 0.0
      %1608 = vmatprep.subr.mxu0 0.0
      %1609 = vmatpush1.msra.mxu0 0.0
      %1610 = vmatprep.mubr.f32.mxu0 0.0
      %1611 = vmatmul.mubr.f32.gmra.mrb[0].mxu0 %v1233
      %v1612 = vpop.f32.mrb[0].mxu0
      %v1613 = vadd.f32 0.0, %v1612
      %v1614 = vpop.f32.mrb[0].mxu0
      %v1615 = vadd.f32 0.0, %v1614
      %1616 = vdwg.mxu0
      %1617 = vmatprep.subr.mxu0 %v1485
      %1618 = vmatpush1.msra.mxu0 %v1484
      %1619 = vmatprep.subr.mxu0 %v1489
      %1620 = vmatpush1.msra.mxu0 %v1488
      %1621 = vmatprep.subr.mxu0 %v1493
      %1622 = vmatpush1.msra.mxu0 %v1492
      %1623 = vmatprep.subr.mxu0 %v1497
      %1624 = vmatpush1.msra.mxu0 %v1496
      %1625 = vmatprep.subr.mxu0 %v1501
      %1626 = vmatpush1.msra.mxu0 %v1500
      %1627 = vmatprep.subr.mxu0 %v1505
      %1628 = vmatpush1.msra.mxu0 %v1504
      %1629 = vmatprep.subr.mxu0 %v1509
      %1630 = vmatpush1.msra.mxu0 %v1508
      %1631 = vmatprep.subr.mxu0 %v1513
      %1632 = vmatpush1.msra.mxu0 %v1512
      %1633 = vmatprep.subr.mxu0 %v1517
      %1634 = vmatpush1.msra.mxu0 %v1516
      %1635 = vmatprep.subr.mxu0 %v1521
      %1636 = vmatpush1.msra.mxu0 %v1520
      %1637 = vmatprep.subr.mxu0 %v1525
      %1638 = vmatpush1.msra.mxu0 %v1524
      %1639 = vmatprep.subr.mxu0 %v1529
      %1640 = vmatpush1.msra.mxu0 %v1528
      %1641 = vmatprep.subr.mxu0 %v1533
      %1642 = vmatpush1.msra.mxu0 %v1532
      %1643 = vmatprep.subr.mxu0 %v1537
      %1644 = vmatpush1.msra.mxu0 %v1536
      %1645 = vmatprep.subr.mxu0 %v1541
      %1646 = vmatpush1.msra.mxu0 %v1540
      %1647 = vmatprep.subr.mxu0 %v1545
      %1648 = vmatpush1.msra.mxu0 %v1544
      %1649 = vmatprep.subr.mxu0 0.0
      %1650 = vmatpush1.msra.mxu0 0.0
      %1651 = vmatprep.subr.mxu0 0.0
      %1652 = vmatpush1.msra.mxu0 0.0
      %1653 = vmatprep.subr.mxu0 0.0
      %1654 = vmatpush1.msra.mxu0 0.0
      %1655 = vmatprep.subr.mxu0 0.0
      %1656 = vmatpush1.msra.mxu0 0.0
      %1657 = vmatprep.subr.mxu0 0.0
      %1658 = vmatpush1.msra.mxu0 0.0
      %1659 = vmatprep.subr.mxu0 0.0
      %1660 = vmatpush1.msra.mxu0 0.0
      %1661 = vmatprep.subr.mxu0 0.0
      %1662 = vmatpush1.msra.mxu0 0.0
      %1663 = vmatprep.subr.mxu0 0.0
      %1664 = vmatpush1.msra.mxu0 0.0
      %1665 = vmatprep.subr.mxu0 0.0
      %1666 = vmatpush1.msra.mxu0 0.0
      %1667 = vmatprep.subr.mxu0 0.0
      %1668 = vmatpush1.msra.mxu0 0.0
      %1669 = vmatprep.subr.mxu0 0.0
      %1670 = vmatpush1.msra.mxu0 0.0
      %1671 = vmatprep.subr.mxu0 0.0
      %1672 = vmatpush1.msra.mxu0 0.0
      %1673 = vmatprep.subr.mxu0 0.0
      %1674 = vmatpush1.msra.mxu0 0.0
      %1675 = vmatprep.subr.mxu0 0.0
      %1676 = vmatpush1.msra.mxu0 0.0
      %1677 = vmatprep.subr.mxu0 0.0
      %1678 = vmatpush1.msra.mxu0 0.0
      %1679 = vmatprep.subr.mxu0 0.0
      %1680 = vmatpush1.msra.mxu0 0.0
      %1681 = vmatprep.mubr.f32.mxu0 0.0
      %1682 = vmatmul.mubr.f32.gmra.mrb[0].mxu0 %v1233
      %v1683 = vpop.f32.mrb[0].mxu0
      %v1684 = vadd.f32 0.0, %v1683
      %v1685 = vpop.f32.mrb[0].mxu0
      %v1686 = vadd.f32 0.0, %v1685
      %1687 = vdwg.mxu0
      %v1688 = vadd.f32 %v1478, %v1613
      %v1689 = vadd.f32 %v1479, %v1615
      %v1690 = vadd.f32 %v1480, %v1684
      %v1691 = vadd.f32 %v1481, %v1686
      %v1692 = vxor.u32 %v1688, 2147483648
      %v1693 = vmul.f32 %v1692, 1.442695
      %v1694 = vpow.pop %v1693
      %v1695 = vadd.f32 %v1694, 1.0
      %v1696 = vrcp.pop %v1695
      %v1697 = vmul.f32 1.0, %v1696
      %v1698 = vxor.u32 %v1689, 2147483648
      %v1699 = vmul.f32 %v1698, 1.442695
      %v1700 = vpow.pop %v1699
      %v1701 = vadd.f32 %v1700, 1.0
      %v1702 = vrcp.pop %v1701
      %v1703 = vmul.f32 1.0, %v1702
      %v1704 = vtanh.pop %v1690
      %v1705 = vxor.u32 %v1691, 2147483648
      %v1706 = vmul.f32 %v1705, 1.442695
      %v1707 = vpow.pop %v1706
      %v1708 = vadd.f32 %v1707, 1.0
      %v1709 = vrcp.pop %v1708
      %v1710 = vmul.f32 1.0, %v1709
      %v1711 = vmul.f32 %v1703, %v1231
      %v1712 = vmul.f32 %v1697, %v1704
      %v1713 = vadd.f32 %v1711, %v1712
      %v1714 = vtanh.pop %v1713
      %v1715 = vmul.f32 %v1710, %v1714
      %s1716 = scalar_lea.vmem [#allocation3], 8
      %1717 = vst [vmem:[%s1716] sm:$0xff] %v1715
      %s1718 = scalar_lea.vmem [#allocation6], 64
      %v1719 = vld [vmem:[%s1718] sm:$0xff]
      %v1720 = vld [vmem:[%s1718 + $0x8] sm:$0xff]
      %v1721 = vld [vmem:[%s1718 + $0x10] sm:$0xff]
      %v1722 = vld [vmem:[%s1718 + $0x18] sm:$0xff]
      %v1723 = vld [vmem:[%s1240] sm:$0xff]
      %v1724 = vld [vmem:[%s1240 + $0x8] sm:$0xff]
      %v1725 = vld [vmem:[%s1240 + $0x10] sm:$0xff]
      %v1726 = vld [vmem:[%s1240 + $0x18] sm:$0xff]
      %v1727 = vld [vmem:[%s1240 + $0x20] sm:$0xff]
      %v1728 = vld [vmem:[%s1240 + $0x28] sm:$0xff]
      %v1729 = vld [vmem:[%s1240 + $0x30] sm:$0xff]
      %v1730 = vld [vmem:[%s1240 + $0x38] sm:$0xff]
      %v1731 = vld [vmem:[%s1240 + $0x40] sm:$0xff]
      %v1732 = vld [vmem:[%s1240 + $0x48] sm:$0xff]
      %v1733 = vld [vmem:[%s1240 + $0x50] sm:$0xff]
      %v1734 = vld [vmem:[%s1240 + $0x58] sm:$0xff]
      %v1735 = vld [vmem:[%s1240 + $0x60] sm:$0xff]
      %v1736 = vld [vmem:[%s1240 + $0x68] sm:$0xff]
      %v1737 = vld [vmem:[%s1240 + $0x70] sm:$0xff]
      %v1738 = vld [vmem:[%s1240 + $0x78] sm:$0xff]
      %v1739 = vld [vmem:[%s1240 + $0x80] sm:$0xff]
      %v1740 = vld [vmem:[%s1240 + $0x88] sm:$0xff]
      %v1741 = vld [vmem:[%s1240 + $0x90] sm:$0xff]
      %v1742 = vld [vmem:[%s1240 + $0x98] sm:$0xff]
      %v1743 = vld [vmem:[%s1240 + $0xa0] sm:$0xff]
      %v1744 = vld [vmem:[%s1240 + $0xa8] sm:$0xff]
      %v1745 = vld [vmem:[%s1240 + $0xb0] sm:$0xff]
      %v1746 = vld [vmem:[%s1240 + $0xb8] sm:$0xff]
      %v1747 = vld [vmem:[%s1240 + $0xc0] sm:$0xff]
      %v1748 = vld [vmem:[%s1240 + $0xc8] sm:$0xff]
      %v1749 = vld [vmem:[%s1240 + $0xd0] sm:$0xff]
      %v1750 = vld [vmem:[%s1240 + $0xd8] sm:$0xff]
      %v1751 = vld [vmem:[%s1240 + $0xe0] sm:$0xff]
      %v1752 = vld [vmem:[%s1240 + $0xe8] sm:$0xff]
      %v1753 = vld [vmem:[%s1240 + $0xf0] sm:$0xff]
      %v1754 = vld [vmem:[%s1240 + $0xf8] sm:$0xff]
      %v1755 = vld [vmem:[%s1240 + $0x100] sm:$0xff]
      %v1756 = vld [vmem:[%s1240 + $0x108] sm:$0xff]
      %v1757 = vld [vmem:[%s1240 + $0x110] sm:$0xff]
      %v1758 = vld [vmem:[%s1240 + $0x118] sm:$0xff]
      %v1759 = vld [vmem:[%s1240 + $0x120] sm:$0xff]
      %v1760 = vld [vmem:[%s1240 + $0x128] sm:$0xff]
      %v1761 = vld [vmem:[%s1240 + $0x130] sm:$0xff]
      %v1762 = vld [vmem:[%s1240 + $0x138] sm:$0xff]
      %v1763 = vld [vmem:[%s1240 + $0x140] sm:$0xff]
      %v1764 = vld [vmem:[%s1240 + $0x148] sm:$0xff]
      %v1765 = vld [vmem:[%s1240 + $0x150] sm:$0xff]
      %v1766 = vld [vmem:[%s1240 + $0x158] sm:$0xff]
      %v1767 = vld [vmem:[%s1240 + $0x160] sm:$0xff]
      %v1768 = vld [vmem:[%s1240 + $0x168] sm:$0xff]
      %v1769 = vld [vmem:[%s1240 + $0x170] sm:$0xff]
      %v1770 = vld [vmem:[%s1240 + $0x178] sm:$0xff]
      %v1771 = vld [vmem:[%s1240 + $0x180] sm:$0xff]
      %v1772 = vld [vmem:[%s1240 + $0x188] sm:$0xff]
      %v1773 = vld [vmem:[%s1240 + $0x190] sm:$0xff]
      %v1774 = vld [vmem:[%s1240 + $0x198] sm:$0xff]
      %v1775 = vld [vmem:[%s1240 + $0x1a0] sm:$0xff]
      %v1776 = vld [vmem:[%s1240 + $0x1a8] sm:$0xff]
      %v1777 = vld [vmem:[%s1240 + $0x1b0] sm:$0xff]
      %v1778 = vld [vmem:[%s1240 + $0x1b8] sm:$0xff]
      %v1779 = vld [vmem:[%s1240 + $0x1c0] sm:$0xff]
      %v1780 = vld [vmem:[%s1240 + $0x1c8] sm:$0xff]
      %v1781 = vld [vmem:[%s1240 + $0x1d0] sm:$0xff]
      %v1782 = vld [vmem:[%s1240 + $0x1d8] sm:$0xff]
      %v1783 = vld [vmem:[%s1240 + $0x1e0] sm:$0xff]
      %v1784 = vld [vmem:[%s1240 + $0x1e8] sm:$0xff]
      %v1785 = vld [vmem:[%s1240 + $0x1f0] sm:$0xff]
      %v1786 = vld [vmem:[%s1240 + $0x1f8] sm:$0xff]
      %1787 = vmatprep.subr.mxu0 %v1724
      %1788 = vmatpush1.msra.mxu0 %v1723
      %1789 = vmatprep.subr.mxu0 %v1728
      %1790 = vmatpush1.msra.mxu0 %v1727
      %1791 = vmatprep.subr.mxu0 %v1732
      %1792 = vmatpush1.msra.mxu0 %v1731
      %1793 = vmatprep.subr.mxu0 %v1736
      %1794 = vmatpush1.msra.mxu0 %v1735
      %1795 = vmatprep.subr.mxu0 %v1740
      %1796 = vmatpush1.msra.mxu0 %v1739
      %1797 = vmatprep.subr.mxu0 %v1744
      %1798 = vmatpush1.msra.mxu0 %v1743
      %1799 = vmatprep.subr.mxu0 %v1748
      %1800 = vmatpush1.msra.mxu0 %v1747
      %1801 = vmatprep.subr.mxu0 %v1752
      %1802 = vmatpush1.msra.mxu0 %v1751
      %1803 = vmatprep.subr.mxu0 %v1756
      %1804 = vmatpush1.msra.mxu0 %v1755
      %1805 = vmatprep.subr.mxu0 %v1760
      %1806 = vmatpush1.msra.mxu0 %v1759
      %1807 = vmatprep.subr.mxu0 %v1764
      %1808 = vmatpush1.msra.mxu0 %v1763
      %1809 = vmatprep.subr.mxu0 %v1768
      %1810 = vmatpush1.msra.mxu0 %v1767
      %1811 = vmatprep.subr.mxu0 %v1772
      %1812 = vmatpush1.msra.mxu0 %v1771
      %1813 = vmatprep.subr.mxu0 %v1776
      %1814 = vmatpush1.msra.mxu0 %v1775
      %1815 = vmatprep.subr.mxu0 %v1780
      %1816 = vmatpush1.msra.mxu0 %v1779
      %1817 = vmatprep.subr.mxu0 %v1784
      %1818 = vmatpush1.msra.mxu0 %v1783
      %1819 = vmatprep.subr.mxu0 0.0
      %1820 = vmatpush1.msra.mxu0 0.0
      %1821 = vmatprep.subr.mxu0 0.0
      %1822 = vmatpush1.msra.mxu0 0.0
      %1823 = vmatprep.subr.mxu0 0.0
      %1824 = vmatpush1.msra.mxu0 0.0
      %1825 = vmatprep.subr.mxu0 0.0
      %1826 = vmatpush1.msra.mxu0 0.0
      %1827 = vmatprep.subr.mxu0 0.0
      %1828 = vmatpush1.msra.mxu0 0.0
      %1829 = vmatprep.subr.mxu0 0.0
      %1830 = vmatpush1.msra.mxu0 0.0
      %1831 = vmatprep.subr.mxu0 0.0
      %1832 = vmatpush1.msra.mxu0 0.0
      %1833 = vmatprep.subr.mxu0 0.0
      %1834 = vmatpush1.msra.mxu0 0.0
      %1835 = vmatprep.subr.mxu0 0.0
      %1836 = vmatpush1.msra.mxu0 0.0
      %1837 = vmatprep.subr.mxu0 0.0
      %1838 = vmatpush1.msra.mxu0 0.0
      %1839 = vmatprep.subr.mxu0 0.0
      %1840 = vmatpush1.msra.mxu0 0.0
      %1841 = vmatprep.subr.mxu0 0.0
      %1842 = vmatpush1.msra.mxu0 0.0
      %1843 = vmatprep.subr.mxu0 0.0
      %1844 = vmatpush1.msra.mxu0 0.0
      %1845 = vmatprep.subr.mxu0 0.0
      %1846 = vmatpush1.msra.mxu0 0.0
      %1847 = vmatprep.subr.mxu0 0.0
      %1848 = vmatpush1.msra.mxu0 0.0
      %1849 = vmatprep.subr.mxu0 0.0
      %1850 = vmatpush1.msra.mxu0 0.0
      %1851 = vmatprep.mubr.f32.mxu0 0.0
      %1852 = vmatmul.mubr.f32.gmra.mrb[0].mxu0 %v1474
      %v1853 = vpop.f32.mrb[0].mxu0
      %v1854 = vadd.f32 0.0, %v1853
      %v1855 = vpop.f32.mrb[0].mxu0
      %v1856 = vadd.f32 0.0, %v1855
      %1857 = vdwg.mxu0
      %1858 = vmatprep.subr.mxu0 %v1726
      %1859 = vmatpush1.msra.mxu0 %v1725
      %1860 = vmatprep.subr.mxu0 %v1730
      %1861 = vmatpush1.msra.mxu0 %v1729
      %1862 = vmatprep.subr.mxu0 %v1734
      %1863 = vmatpush1.msra.mxu0 %v1733
      %1864 = vmatprep.subr.mxu0 %v1738
      %1865 = vmatpush1.msra.mxu0 %v1737
      %1866 = vmatprep.subr.mxu0 %v1742
      %1867 = vmatpush1.msra.mxu0 %v1741
      %1868 = vmatprep.subr.mxu0 %v1746
      %1869 = vmatpush1.msra.mxu0 %v1745
      %1870 = vmatprep.subr.mxu0 %v1750
      %1871 = vmatpush1.msra.mxu0 %v1749
      %1872 = vmatprep.subr.mxu0 %v1754
      %1873 = vmatpush1.msra.mxu0 %v1753
      %1874 = vmatprep.subr.mxu0 %v1758
      %1875 = vmatpush1.msra.mxu0 %v1757
      %1876 = vmatprep.subr.mxu0 %v1762
      %1877 = vmatpush1.msra.mxu0 %v1761
      %1878 = vmatprep.subr.mxu0 %v1766
      %1879 = vmatpush1.msra.mxu0 %v1765
      %1880 = vmatprep.subr.mxu0 %v1770
      %1881 = vmatpush1.msra.mxu0 %v1769
      %1882 = vmatprep.subr.mxu0 %v1774
      %1883 = vmatpush1.msra.mxu0 %v1773
      %1884 = vmatprep.subr.mxu0 %v1778
      %1885 = vmatpush1.msra.mxu0 %v1777
      %1886 = vmatprep.subr.mxu0 %v1782
      %1887 = vmatpush1.msra.mxu0 %v1781
      %1888 = vmatprep.subr.mxu0 %v1786
      %1889 = vmatpush1.msra.mxu0 %v1785
      %1890 = vmatprep.subr.mxu0 0.0
      %1891 = vmatpush1.msra.mxu0 0.0
      %1892 = vmatprep.subr.mxu0 0.0
      %1893 = vmatpush1.msra.mxu0 0.0
      %1894 = vmatprep.subr.mxu0 0.0
      %1895 = vmatpush1.msra.mxu0 0.0
      %1896 = vmatprep.subr.mxu0 0.0
      %1897 = vmatpush1.msra.mxu0 0.0
      %1898 = vmatprep.subr.mxu0 0.0
      %1899 = vmatpush1.msra.mxu0 0.0
      %1900 = vmatprep.subr.mxu0 0.0
      %1901 = vmatpush1.msra.mxu0 0.0
      %1902 = vmatprep.subr.mxu0 0.0
      %1903 = vmatpush1.msra.mxu0 0.0
      %1904 = vmatprep.subr.mxu0 0.0
      %1905 = vmatpush1.msra.mxu0 0.0
      %1906 = vmatprep.subr.mxu0 0.0
      %1907 = vmatpush1.msra.mxu0 0.0
      %1908 = vmatprep.subr.mxu0 0.0
      %1909 = vmatpush1.msra.mxu0 0.0
      %1910 = vmatprep.subr.mxu0 0.0
      %1911 = vmatpush1.msra.mxu0 0.0
      %1912 = vmatprep.subr.mxu0 0.0
      %1913 = vmatpush1.msra.mxu0 0.0
      %1914 = vmatprep.subr.mxu0 0.0
      %1915 = vmatpush1.msra.mxu0 0.0
      %1916 = vmatprep.subr.mxu0 0.0
      %1917 = vmatpush1.msra.mxu0 0.0
      %1918 = vmatprep.subr.mxu0 0.0
      %1919 = vmatpush1.msra.mxu0 0.0
      %1920 = vmatprep.subr.mxu0 0.0
      %1921 = vmatpush1.msra.mxu0 0.0
      %1922 = vmatprep.mubr.f32.mxu0 0.0
      %1923 = vmatmul.mubr.f32.gmra.mrb[0].mxu0 %v1474
      %v1924 = vpop.f32.mrb[0].mxu0
      %v1925 = vadd.f32 0.0, %v1924
      %v1926 = vpop.f32.mrb[0].mxu0
      %v1927 = vadd.f32 0.0, %v1926
      %1928 = vdwg.mxu0
      %v1929 = vadd.f32 %v1719, %v1854
      %v1930 = vadd.f32 %v1720, %v1856
      %v1931 = vadd.f32 %v1721, %v1925
      %v1932 = vadd.f32 %v1722, %v1927
      %v1933 = vxor.u32 %v1929, 2147483648
      %v1934 = vmul.f32 %v1933, 1.442695
      %v1935 = vpow.pop %v1934
      %v1936 = vadd.f32 %v1935, 1.0
      %v1937 = vrcp.pop %v1936
      %v1938 = vmul.f32 1.0, %v1937
      %v1939 = vxor.u32 %v1930, 2147483648
      %v1940 = vmul.f32 %v1939, 1.442695
      %v1941 = vpow.pop %v1940
      %v1942 = vadd.f32 %v1941, 1.0
      %v1943 = vrcp.pop %v1942
      %v1944 = vmul.f32 1.0, %v1943
      %v1945 = vtanh.pop %v1931
      %v1946 = vxor.u32 %v1932, 2147483648
      %v1947 = vmul.f32 %v1946, 1.442695
      %v1948 = vpow.pop %v1947
      %v1949 = vadd.f32 %v1948, 1.0
      %v1950 = vrcp.pop %v1949
      %v1951 = vmul.f32 1.0, %v1950
      %v1952 = vmul.f32 %v1944, %v1472
      %v1953 = vmul.f32 %v1938, %v1945
      %v1954 = vadd.f32 %v1952, %v1953
      %v1955 = vtanh.pop %v1954
      %v1956 = vmul.f32 %v1951, %v1955
      %s1957 = scalar_lea.vmem [#allocation7], 16
      %1958 = vst [vmem:[%s1957] sm:$0xff] %v1956
      %s1959 = scalar_lea.vmem [#allocation2], 64
      %v1960 = vld [vmem:[%s1959] sm:$0xff]
      %v1961 = vld [vmem:[%s1959 + $0x8] sm:$0xff]
      %v1962 = vld [vmem:[%s1959 + $0x10] sm:$0xff]
      %v1963 = vld [vmem:[%s1959 + $0x18] sm:$0xff]
      %v1964 = vld [vmem:[%s451] sm:$0xff]
      %v1965 = vld [vmem:[%s451 + $0x8] sm:$0xff]
      %v1966 = vld [vmem:[%s451 + $0x10] sm:$0xff]
      %v1967 = vld [vmem:[%s451 + $0x18] sm:$0xff]
      %v1968 = vld [vmem:[%s451 + $0x20] sm:$0xff]
      %v1969 = vld [vmem:[%s451 + $0x28] sm:$0xff]
      %v1970 = vld [vmem:[%s451 + $0x30] sm:$0xff]
      %v1971 = vld [vmem:[%s451 + $0x38] sm:$0xff]
      %v1972 = vld [vmem:[%s451 + $0x40] sm:$0xff]
      %v1973 = vld [vmem:[%s451 + $0x48] sm:$0xff]
      %v1974 = vld [vmem:[%s451 + $0x50] sm:$0xff]
      %v1975 = vld [vmem:[%s451 + $0x58] sm:$0xff]
      %v1976 = vld [vmem:[%s451 + $0x60] sm:$0xff]
      %v1977 = vld [vmem:[%s451 + $0x68] sm:$0xff]
      %v1978 = vld [vmem:[%s451 + $0x70] sm:$0xff]
      %v1979 = vld [vmem:[%s451 + $0x78] sm:$0xff]
      %v1980 = vld [vmem:[%s451 + $0x80] sm:$0xff]
      %v1981 = vld [vmem:[%s451 + $0x88] sm:$0xff]
      %v1982 = vld [vmem:[%s451 + $0x90] sm:$0xff]
      %v1983 = vld [vmem:[%s451 + $0x98] sm:$0xff]
      %v1984 = vld [vmem:[%s451 + $0xa0] sm:$0xff]
      %v1985 = vld [vmem:[%s451 + $0xa8] sm:$0xff]
      %v1986 = vld [vmem:[%s451 + $0xb0] sm:$0xff]
      %v1987 = vld [vmem:[%s451 + $0xb8] sm:$0xff]
      %v1988 = vld [vmem:[%s451 + $0xc0] sm:$0xff]
      %v1989 = vld [vmem:[%s451 + $0xc8] sm:$0xff]
      %v1990 = vld [vmem:[%s451 + $0xd0] sm:$0xff]
      %v1991 = vld [vmem:[%s451 + $0xd8] sm:$0xff]
      %v1992 = vld [vmem:[%s451 + $0xe0] sm:$0xff]
      %v1993 = vld [vmem:[%s451 + $0xe8] sm:$0xff]
      %v1994 = vld [vmem:[%s451 + $0xf0] sm:$0xff]
      %v1995 = vld [vmem:[%s451 + $0xf8] sm:$0xff]
      %v1996 = vld [vmem:[%s451 + $0x100] sm:$0xff]
      %v1997 = vld [vmem:[%s451 + $0x108] sm:$0xff]
      %v1998 = vld [vmem:[%s451 + $0x110] sm:$0xff]
      %v1999 = vld [vmem:[%s451 + $0x118] sm:$0xff]
      %v2000 = vld [vmem:[%s451 + $0x120] sm:$0xff]
      %v2001 = vld [vmem:[%s451 + $0x128] sm:$0xff]
      %v2002 = vld [vmem:[%s451 + $0x130] sm:$0xff]
      %v2003 = vld [vmem:[%s451 + $0x138] sm:$0xff]
      %v2004 = vld [vmem:[%s451 + $0x140] sm:$0xff]
      %v2005 = vld [vmem:[%s451 + $0x148] sm:$0xff]
      %v2006 = vld [vmem:[%s451 + $0x150] sm:$0xff]
      %v2007 = vld [vmem:[%s451 + $0x158] sm:$0xff]
      %v2008 = vld [vmem:[%s451 + $0x160] sm:$0xff]
      %v2009 = vld [vmem:[%s451 + $0x168] sm:$0xff]
      %v2010 = vld [vmem:[%s451 + $0x170] sm:$0xff]
      %v2011 = vld [vmem:[%s451 + $0x178] sm:$0xff]
      %v2012 = vld [vmem:[%s451 + $0x180] sm:$0xff]
      %v2013 = vld [vmem:[%s451 + $0x188] sm:$0xff]
      %v2014 = vld [vmem:[%s451 + $0x190] sm:$0xff]
      %v2015 = vld [vmem:[%s451 + $0x198] sm:$0xff]
      %v2016 = vld [vmem:[%s451 + $0x1a0] sm:$0xff]
      %v2017 = vld [vmem:[%s451 + $0x1a8] sm:$0xff]
      %v2018 = vld [vmem:[%s451 + $0x1b0] sm:$0xff]
      %v2019 = vld [vmem:[%s451 + $0x1b8] sm:$0xff]
      %v2020 = vld [vmem:[%s451 + $0x1c0] sm:$0xff]
      %v2021 = vld [vmem:[%s451 + $0x1c8] sm:$0xff]
      %v2022 = vld [vmem:[%s451 + $0x1d0] sm:$0xff]
      %v2023 = vld [vmem:[%s451 + $0x1d8] sm:$0xff]
      %v2024 = vld [vmem:[%s451 + $0x1e0] sm:$0xff]
      %v2025 = vld [vmem:[%s451 + $0x1e8] sm:$0xff]
      %v2026 = vld [vmem:[%s451 + $0x1f0] sm:$0xff]
      %v2027 = vld [vmem:[%s451 + $0x1f8] sm:$0xff]
      %2028 = vmatprep.subr.mxu0 %v1965
      %2029 = vmatpush1.msra.mxu0 %v1964
      %2030 = vmatprep.subr.mxu0 %v1969
      %2031 = vmatpush1.msra.mxu0 %v1968
      %2032 = vmatprep.subr.mxu0 %v1973
      %2033 = vmatpush1.msra.mxu0 %v1972
      %2034 = vmatprep.subr.mxu0 %v1977
      %2035 = vmatpush1.msra.mxu0 %v1976
      %2036 = vmatprep.subr.mxu0 %v1981
      %2037 = vmatpush1.msra.mxu0 %v1980
      %2038 = vmatprep.subr.mxu0 %v1985
      %2039 = vmatpush1.msra.mxu0 %v1984
      %2040 = vmatprep.subr.mxu0 %v1989
      %2041 = vmatpush1.msra.mxu0 %v1988
      %2042 = vmatprep.subr.mxu0 %v1993
      %2043 = vmatpush1.msra.mxu0 %v1992
      %2044 = vmatprep.subr.mxu0 %v1997
      %2045 = vmatpush1.msra.mxu0 %v1996
      %2046 = vmatprep.subr.mxu0 %v2001
      %2047 = vmatpush1.msra.mxu0 %v2000
      %2048 = vmatprep.subr.mxu0 %v2005
      %2049 = vmatpush1.msra.mxu0 %v2004
      %2050 = vmatprep.subr.mxu0 %v2009
      %2051 = vmatpush1.msra.mxu0 %v2008
      %2052 = vmatprep.subr.mxu0 %v2013
      %2053 = vmatpush1.msra.mxu0 %v2012
      %2054 = vmatprep.subr.mxu0 %v2017
      %2055 = vmatpush1.msra.mxu0 %v2016
      %2056 = vmatprep.subr.mxu0 %v2021
      %2057 = vmatpush1.msra.mxu0 %v2020
      %2058 = vmatprep.subr.mxu0 %v2025
      %2059 = vmatpush1.msra.mxu0 %v2024
      %2060 = vmatprep.subr.mxu0 0.0
      %2061 = vmatpush1.msra.mxu0 0.0
      %2062 = vmatprep.subr.mxu0 0.0
      %2063 = vmatpush1.msra.mxu0 0.0
      %2064 = vmatprep.subr.mxu0 0.0
      %2065 = vmatpush1.msra.mxu0 0.0
      %2066 = vmatprep.subr.mxu0 0.0
      %2067 = vmatpush1.msra.mxu0 0.0
      %2068 = vmatprep.subr.mxu0 0.0
      %2069 = vmatpush1.msra.mxu0 0.0
      %2070 = vmatprep.subr.mxu0 0.0
      %2071 = vmatpush1.msra.mxu0 0.0
      %2072 = vmatprep.subr.mxu0 0.0
      %2073 = vmatpush1.msra.mxu0 0.0
      %2074 = vmatprep.subr.mxu0 0.0
      %2075 = vmatpush1.msra.mxu0 0.0
      %2076 = vmatprep.subr.mxu0 0.0
      %2077 = vmatpush1.msra.mxu0 0.0
      %2078 = vmatprep.subr.mxu0 0.0
      %2079 = vmatpush1.msra.mxu0 0.0
      %2080 = vmatprep.subr.mxu0 0.0
      %2081 = vmatpush1.msra.mxu0 0.0
      %2082 = vmatprep.subr.mxu0 0.0
      %2083 = vmatpush1.msra.mxu0 0.0
      %2084 = vmatprep.subr.mxu0 0.0
      %2085 = vmatpush1.msra.mxu0 0.0
      %2086 = vmatprep.subr.mxu0 0.0
      %2087 = vmatpush1.msra.mxu0 0.0
      %2088 = vmatprep.subr.mxu0 0.0
      %2089 = vmatpush1.msra.mxu0 0.0
      %2090 = vmatprep.subr.mxu0 0.0
      %2091 = vmatpush1.msra.mxu0 0.0
      %2092 = vmatprep.mubr.f32.mxu0 0.0
      %2093 = vmatmul.mubr.f32.gmra.mrb[0].mxu0 %v1715
      %v2094 = vpop.f32.mrb[0].mxu0
      %v2095 = vadd.f32 0.0, %v2094
      %v2096 = vpop.f32.mrb[0].mxu0
      %v2097 = vadd.f32 0.0, %v2096
      %2098 = vdwg.mxu0
      %2099 = vmatprep.subr.mxu0 %v1967
      %2100 = vmatpush1.msra.mxu0 %v1966
      %2101 = vmatprep.subr.mxu0 %v1971
      %2102 = vmatpush1.msra.mxu0 %v1970
      %2103 = vmatprep.subr.mxu0 %v1975
      %2104 = vmatpush1.msra.mxu0 %v1974
      %2105 = vmatprep.subr.mxu0 %v1979
      %2106 = vmatpush1.msra.mxu0 %v1978
      %2107 = vmatprep.subr.mxu0 %v1983
      %2108 = vmatpush1.msra.mxu0 %v1982
      %2109 = vmatprep.subr.mxu0 %v1987
      %2110 = vmatpush1.msra.mxu0 %v1986
      %2111 = vmatprep.subr.mxu0 %v1991
      %2112 = vmatpush1.msra.mxu0 %v1990
      %2113 = vmatprep.subr.mxu0 %v1995
      %2114 = vmatpush1.msra.mxu0 %v1994
      %2115 = vmatprep.subr.mxu0 %v1999
      %2116 = vmatpush1.msra.mxu0 %v1998
      %2117 = vmatprep.subr.mxu0 %v2003
      %2118 = vmatpush1.msra.mxu0 %v2002
      %2119 = vmatprep.subr.mxu0 %v2007
      %2120 = vmatpush1.msra.mxu0 %v2006
      %2121 = vmatprep.subr.mxu0 %v2011
      %2122 = vmatpush1.msra.mxu0 %v2010
      %2123 = vmatprep.subr.mxu0 %v2015
      %2124 = vmatpush1.msra.mxu0 %v2014
      %2125 = vmatprep.subr.mxu0 %v2019
      %2126 = vmatpush1.msra.mxu0 %v2018
      %2127 = vmatprep.subr.mxu0 %v2023
      %2128 = vmatpush1.msra.mxu0 %v2022
      %2129 = vmatprep.subr.mxu0 %v2027
      %2130 = vmatpush1.msra.mxu0 %v2026
      %2131 = vmatprep.subr.mxu0 0.0
      %2132 = vmatpush1.msra.mxu0 0.0
      %2133 = vmatprep.subr.mxu0 0.0
      %2134 = vmatpush1.msra.mxu0 0.0
      %2135 = vmatprep.subr.mxu0 0.0
      %2136 = vmatpush1.msra.mxu0 0.0
      %2137 = vmatprep.subr.mxu0 0.0
      %2138 = vmatpush1.msra.mxu0 0.0
      %2139 = vmatprep.subr.mxu0 0.0
      %2140 = vmatpush1.msra.mxu0 0.0
      %2141 = vmatprep.subr.mxu0 0.0
      %2142 = vmatpush1.msra.mxu0 0.0
      %2143 = vmatprep.subr.mxu0 0.0
      %2144 = vmatpush1.msra.mxu0 0.0
      %2145 = vmatprep.subr.mxu0 0.0
      %2146 = vmatpush1.msra.mxu0 0.0
      %2147 = vmatprep.subr.mxu0 0.0
      %2148 = vmatpush1.msra.mxu0 0.0
      %2149 = vmatprep.subr.mxu0 0.0
      %2150 = vmatpush1.msra.mxu0 0.0
      %2151 = vmatprep.subr.mxu0 0.0
      %2152 = vmatpush1.msra.mxu0 0.0
      %2153 = vmatprep.subr.mxu0 0.0
      %2154 = vmatpush1.msra.mxu0 0.0
      %2155 = vmatprep.subr.mxu0 0.0
      %2156 = vmatpush1.msra.mxu0 0.0
      %2157 = vmatprep.subr.mxu0 0.0
      %2158 = vmatpush1.msra.mxu0 0.0
      %2159 = vmatprep.subr.mxu0 0.0
      %2160 = vmatpush1.msra.mxu0 0.0
      %2161 = vmatprep.subr.mxu0 0.0
      %2162 = vmatpush1.msra.mxu0 0.0
      %2163 = vmatprep.mubr.f32.mxu0 0.0
      %2164 = vmatmul.mubr.f32.gmra.mrb[0].mxu0 %v1715
      %v2165 = vpop.f32.mrb[0].mxu0
      %v2166 = vadd.f32 0.0, %v2165
      %v2167 = vpop.f32.mrb[0].mxu0
      %v2168 = vadd.f32 0.0, %v2167
      %2169 = vdwg.mxu0
      %v2170 = vadd.f32 %v1960, %v2095
      %v2171 = vadd.f32 %v1961, %v2097
      %v2172 = vadd.f32 %v1962, %v2166
      %v2173 = vadd.f32 %v1963, %v2168
      %v2174 = vxor.u32 %v2170, 2147483648
      %v2175 = vmul.f32 %v2174, 1.442695
      %v2176 = vpow.pop %v2175
      %v2177 = vadd.f32 %v2176, 1.0
      %v2178 = vrcp.pop %v2177
      %v2179 = vmul.f32 1.0, %v2178
      %v2180 = vxor.u32 %v2171, 2147483648
      %v2181 = vmul.f32 %v2180, 1.442695
      %v2182 = vpow.pop %v2181
      %v2183 = vadd.f32 %v2182, 1.0
      %v2184 = vrcp.pop %v2183
      %v2185 = vmul.f32 1.0, %v2184
      %v2186 = vtanh.pop %v2172
      %v2187 = vxor.u32 %v2173, 2147483648
      %v2188 = vmul.f32 %v2187, 1.442695
      %v2189 = vpow.pop %v2188
      %v2190 = vadd.f32 %v2189, 1.0
      %v2191 = vrcp.pop %v2190
      %v2192 = vmul.f32 1.0, %v2191
      %v2193 = vmul.f32 %v2185, %v1713
      %v2194 = vmul.f32 %v2179, %v2186
      %v2195 = vadd.f32 %v2193, %v2194
      %v2196 = vtanh.pop %v2195
      %v2197 = vmul.f32 %v2192, %v2196
      %s2198 = scalar_lea.vmem [#allocation3], 16
      %2199 = vst [vmem:[%s2198] sm:$0xff] %v2197
      %s2200 = scalar_lea.vmem [#allocation6], 32
      %v2201 = vld [vmem:[%s2200] sm:$0xff]
      %v2202 = vld [vmem:[%s2200 + $0x8] sm:$0xff]
      %v2203 = vld [vmem:[%s2200 + $0x10] sm:$0xff]
      %v2204 = vld [vmem:[%s2200 + $0x18] sm:$0xff]
      %v2205 = vld [vmem:[%s1240] sm:$0xff]
      %v2206 = vld [vmem:[%s1240 + $0x8] sm:$0xff]
      %v2207 = vld [vmem:[%s1240 + $0x10] sm:$0xff]
      %v2208 = vld [vmem:[%s1240 + $0x18] sm:$0xff]
      %v2209 = vld [vmem:[%s1240 + $0x20] sm:$0xff]
      %v2210 = vld [vmem:[%s1240 + $0x28] sm:$0xff]
      %v2211 = vld [vmem:[%s1240 + $0x30] sm:$0xff]
      %v2212 = vld [vmem:[%s1240 + $0x38] sm:$0xff]
      %v2213 = vld [vmem:[%s1240 + $0x40] sm:$0xff]
      %v2214 = vld [vmem:[%s1240 + $0x48] sm:$0xff]
      %v2215 = vld [vmem:[%s1240 + $0x50] sm:$0xff]
      %v2216 = vld [vmem:[%s1240 + $0x58] sm:$0xff]
      %v2217 = vld [vmem:[%s1240 + $0x60] sm:$0xff]
      %v2218 = vld [vmem:[%s1240 + $0x68] sm:$0xff]
      %v2219 = vld [vmem:[%s1240 + $0x70] sm:$0xff]
      %v2220 = vld [vmem:[%s1240 + $0x78] sm:$0xff]
      %v2221 = vld [vmem:[%s1240 + $0x80] sm:$0xff]
      %v2222 = vld [vmem:[%s1240 + $0x88] sm:$0xff]
      %v2223 = vld [vmem:[%s1240 + $0x90] sm:$0xff]
      %v2224 = vld [vmem:[%s1240 + $0x98] sm:$0xff]
      %v2225 = vld [vmem:[%s1240 + $0xa0] sm:$0xff]
      %v2226 = vld [vmem:[%s1240 + $0xa8] sm:$0xff]
      %v2227 = vld [vmem:[%s1240 + $0xb0] sm:$0xff]
      %v2228 = vld [vmem:[%s1240 + $0xb8] sm:$0xff]
      %v2229 = vld [vmem:[%s1240 + $0xc0] sm:$0xff]
      %v2230 = vld [vmem:[%s1240 + $0xc8] sm:$0xff]
      %v2231 = vld [vmem:[%s1240 + $0xd0] sm:$0xff]
      %v2232 = vld [vmem:[%s1240 + $0xd8] sm:$0xff]
      %v2233 = vld [vmem:[%s1240 + $0xe0] sm:$0xff]
      %v2234 = vld [vmem:[%s1240 + $0xe8] sm:$0xff]
      %v2235 = vld [vmem:[%s1240 + $0xf0] sm:$0xff]
      %v2236 = vld [vmem:[%s1240 + $0xf8] sm:$0xff]
      %v2237 = vld [vmem:[%s1240 + $0x100] sm:$0xff]
      %v2238 = vld [vmem:[%s1240 + $0x108] sm:$0xff]
      %v2239 = vld [vmem:[%s1240 + $0x110] sm:$0xff]
      %v2240 = vld [vmem:[%s1240 + $0x118] sm:$0xff]
      %v2241 = vld [vmem:[%s1240 + $0x120] sm:$0xff]
      %v2242 = vld [vmem:[%s1240 + $0x128] sm:$0xff]
      %v2243 = vld [vmem:[%s1240 + $0x130] sm:$0xff]
      %v2244 = vld [vmem:[%s1240 + $0x138] sm:$0xff]
      %v2245 = vld [vmem:[%s1240 + $0x140] sm:$0xff]
      %v2246 = vld [vmem:[%s1240 + $0x148] sm:$0xff]
      %v2247 = vld [vmem:[%s1240 + $0x150] sm:$0xff]
      %v2248 = vld [vmem:[%s1240 + $0x158] sm:$0xff]
      %v2249 = vld [vmem:[%s1240 + $0x160] sm:$0xff]
      %v2250 = vld [vmem:[%s1240 + $0x168] sm:$0xff]
      %v2251 = vld [vmem:[%s1240 + $0x170] sm:$0xff]
      %v2252 = vld [vmem:[%s1240 + $0x178] sm:$0xff]
      %v2253 = vld [vmem:[%s1240 + $0x180] sm:$0xff]
      %v2254 = vld [vmem:[%s1240 + $0x188] sm:$0xff]
      %v2255 = vld [vmem:[%s1240 + $0x190] sm:$0xff]
      %v2256 = vld [vmem:[%s1240 + $0x198] sm:$0xff]
      %v2257 = vld [vmem:[%s1240 + $0x1a0] sm:$0xff]
      %v2258 = vld [vmem:[%s1240 + $0x1a8] sm:$0xff]
      %v2259 = vld [vmem:[%s1240 + $0x1b0] sm:$0xff]
      %v2260 = vld [vmem:[%s1240 + $0x1b8] sm:$0xff]
      %v2261 = vld [vmem:[%s1240 + $0x1c0] sm:$0xff]
      %v2262 = vld [vmem:[%s1240 + $0x1c8] sm:$0xff]
      %v2263 = vld [vmem:[%s1240 + $0x1d0] sm:$0xff]
      %v2264 = vld [vmem:[%s1240 + $0x1d8] sm:$0xff]
      %v2265 = vld [vmem:[%s1240 + $0x1e0] sm:$0xff]
      %v2266 = vld [vmem:[%s1240 + $0x1e8] sm:$0xff]
      %v2267 = vld [vmem:[%s1240 + $0x1f0] sm:$0xff]
      %v2268 = vld [vmem:[%s1240 + $0x1f8] sm:$0xff]
      %2269 = vmatprep.subr.mxu0 %v2206
      %2270 = vmatpush1.msra.mxu0 %v2205
      %2271 = vmatprep.subr.mxu0 %v2210
      %2272 = vmatpush1.msra.mxu0 %v2209
      %2273 = vmatprep.subr.mxu0 %v2214
      %2274 = vmatpush1.msra.mxu0 %v2213
      %2275 = vmatprep.subr.mxu0 %v2218
      %2276 = vmatpush1.msra.mxu0 %v2217
      %2277 = vmatprep.subr.mxu0 %v2222
      %2278 = vmatpush1.msra.mxu0 %v2221
      %2279 = vmatprep.subr.mxu0 %v2226
      %2280 = vmatpush1.msra.mxu0 %v2225
      %2281 = vmatprep.subr.mxu0 %v2230
      %2282 = vmatpush1.msra.mxu0 %v2229
      %2283 = vmatprep.subr.mxu0 %v2234
      %2284 = vmatpush1.msra.mxu0 %v2233
      %2285 = vmatprep.subr.mxu0 %v2238
      %2286 = vmatpush1.msra.mxu0 %v2237
      %2287 = vmatprep.subr.mxu0 %v2242
      %2288 = vmatpush1.msra.mxu0 %v2241
      %2289 = vmatprep.subr.mxu0 %v2246
      %2290 = vmatpush1.msra.mxu0 %v2245
      %2291 = vmatprep.subr.mxu0 %v2250
      %2292 = vmatpush1.msra.mxu0 %v2249
      %2293 = vmatprep.subr.mxu0 %v2254
      %2294 = vmatpush1.msra.mxu0 %v2253
      %2295 = vmatprep.subr.mxu0 %v2258
      %2296 = vmatpush1.msra.mxu0 %v2257
      %2297 = vmatprep.subr.mxu0 %v2262
      %2298 = vmatpush1.msra.mxu0 %v2261
      %2299 = vmatprep.subr.mxu0 %v2266
      %2300 = vmatpush1.msra.mxu0 %v2265
      %2301 = vmatprep.subr.mxu0 0.0
      %2302 = vmatpush1.msra.mxu0 0.0
      %2303 = vmatprep.subr.mxu0 0.0
      %2304 = vmatpush1.msra.mxu0 0.0
      %2305 = vmatprep.subr.mxu0 0.0
      %2306 = vmatpush1.msra.mxu0 0.0
      %2307 = vmatprep.subr.mxu0 0.0
      %2308 = vmatpush1.msra.mxu0 0.0
      %2309 = vmatprep.subr.mxu0 0.0
      %2310 = vmatpush1.msra.mxu0 0.0
      %2311 = vmatprep.subr.mxu0 0.0
      %2312 = vmatpush1.msra.mxu0 0.0
      %2313 = vmatprep.subr.mxu0 0.0
      %2314 = vmatpush1.msra.mxu0 0.0
      %2315 = vmatprep.subr.mxu0 0.0
      %2316 = vmatpush1.msra.mxu0 0.0
      %2317 = vmatprep.subr.mxu0 0.0
      %2318 = vmatpush1.msra.mxu0 0.0
      %2319 = vmatprep.subr.mxu0 0.0
      %2320 = vmatpush1.msra.mxu0 0.0
      %2321 = vmatprep.subr.mxu0 0.0
      %2322 = vmatpush1.msra.mxu0 0.0
      %2323 = vmatprep.subr.mxu0 0.0
      %2324 = vmatpush1.msra.mxu0 0.0
      %2325 = vmatprep.subr.mxu0 0.0
      %2326 = vmatpush1.msra.mxu0 0.0
      %2327 = vmatprep.subr.mxu0 0.0
      %2328 = vmatpush1.msra.mxu0 0.0
      %2329 = vmatprep.subr.mxu0 0.0
      %2330 = vmatpush1.msra.mxu0 0.0
      %2331 = vmatprep.subr.mxu0 0.0
      %2332 = vmatpush1.msra.mxu0 0.0
      %2333 = vmatprep.mubr.f32.mxu0 0.0
      %2334 = vmatmul.mubr.f32.gmra.mrb[0].mxu0 %v1956
      %v2335 = vpop.f32.mrb[0].mxu0
      %v2336 = vadd.f32 0.0, %v2335
      %v2337 = vpop.f32.mrb[0].mxu0
      %v2338 = vadd.f32 0.0, %v2337
      %2339 = vdwg.mxu0
      %2340 = vmatprep.subr.mxu0 %v2208
      %2341 = vmatpush1.msra.mxu0 %v2207
      %2342 = vmatprep.subr.mxu0 %v2212
      %2343 = vmatpush1.msra.mxu0 %v2211
      %2344 = vmatprep.subr.mxu0 %v2216
      %2345 = vmatpush1.msra.mxu0 %v2215
      %2346 = vmatprep.subr.mxu0 %v2220
      %2347 = vmatpush1.msra.mxu0 %v2219
      %2348 = vmatprep.subr.mxu0 %v2224
      %2349 = vmatpush1.msra.mxu0 %v2223
      %2350 = vmatprep.subr.mxu0 %v2228
      %2351 = vmatpush1.msra.mxu0 %v2227
      %2352 = vmatprep.subr.mxu0 %v2232
      %2353 = vmatpush1.msra.mxu0 %v2231
      %2354 = vmatprep.subr.mxu0 %v2236
      %2355 = vmatpush1.msra.mxu0 %v2235
      %2356 = vmatprep.subr.mxu0 %v2240
      %2357 = vmatpush1.msra.mxu0 %v2239
      %2358 = vmatprep.subr.mxu0 %v2244
      %2359 = vmatpush1.msra.mxu0 %v2243
      %2360 = vmatprep.subr.mxu0 %v2248
      %2361 = vmatpush1.msra.mxu0 %v2247
      %2362 = vmatprep.subr.mxu0 %v2252
      %2363 = vmatpush1.msra.mxu0 %v2251
      %2364 = vmatprep.subr.mxu0 %v2256
      %2365 = vmatpush1.msra.mxu0 %v2255
      %2366 = vmatprep.subr.mxu0 %v2260
      %2367 = vmatpush1.msra.mxu0 %v2259
      %2368 = vmatprep.subr.mxu0 %v2264
      %2369 = vmatpush1.msra.mxu0 %v2263
      %2370 = vmatprep.subr.mxu0 %v2268
      %2371 = vmatpush1.msra.mxu0 %v2267
      %2372 = vmatprep.subr.mxu0 0.0
      %2373 = vmatpush1.msra.mxu0 0.0
      %2374 = vmatprep.subr.mxu0 0.0
      %2375 = vmatpush1.msra.mxu0 0.0
      %2376 = vmatprep.subr.mxu0 0.0
      %2377 = vmatpush1.msra.mxu0 0.0
      %2378 = vmatprep.subr.mxu0 0.0
      %2379 = vmatpush1.msra.mxu0 0.0
      %2380 = vmatprep.subr.mxu0 0.0
      %2381 = vmatpush1.msra.mxu0 0.0
      %2382 = vmatprep.subr.mxu0 0.0
      %2383 = vmatpush1.msra.mxu0 0.0
      %2384 = vmatprep.subr.mxu0 0.0
      %2385 = vmatpush1.msra.mxu0 0.0
      %2386 = vmatprep.subr.mxu0 0.0
      %2387 = vmatpush1.msra.mxu0 0.0
      %2388 = vmatprep.subr.mxu0 0.0
      %2389 = vmatpush1.msra.mxu0 0.0
      %2390 = vmatprep.subr.mxu0 0.0
      %2391 = vmatpush1.msra.mxu0 0.0
      %2392 = vmatprep.subr.mxu0 0.0
      %2393 = vmatpush1.msra.mxu0 0.0
      %2394 = vmatprep.subr.mxu0 0.0
      %2395 = vmatpush1.msra.mxu0 0.0
      %2396 = vmatprep.subr.mxu0 0.0
      %2397 = vmatpush1.msra.mxu0 0.0
      %2398 = vmatprep.subr.mxu0 0.0
      %2399 = vmatpush1.msra.mxu0 0.0
      %2400 = vmatprep.subr.mxu0 0.0
      %2401 = vmatpush1.msra.mxu0 0.0
      %2402 = vmatprep.subr.mxu0 0.0
      %2403 = vmatpush1.msra.mxu0 0.0
      %2404 = vmatprep.mubr.f32.mxu0 0.0
      %2405 = vmatmul.mubr.f32.gmra.mrb[0].mxu0 %v1956
      %v2406 = vpop.f32.mrb[0].mxu0
      %v2407 = vadd.f32 0.0, %v2406
      %v2408 = vpop.f32.mrb[0].mxu0
      %v2409 = vadd.f32 0.0, %v2408
      %2410 = vdwg.mxu0
      %v2411 = vadd.f32 %v2201, %v2336
      %v2412 = vadd.f32 %v2202, %v2338
      %v2413 = vadd.f32 %v2203, %v2407
      %v2414 = vadd.f32 %v2204, %v2409
      %v2415 = vxor.u32 %v2411, 2147483648
      %v2416 = vmul.f32 %v2415, 1.442695
      %v2417 = vpow.pop %v2416
      %v2418 = vadd.f32 %v2417, 1.0
      %v2419 = vrcp.pop %v2418
      %v2420 = vmul.f32 1.0, %v2419
      %v2421 = vxor.u32 %v2412, 2147483648
      %v2422 = vmul.f32 %v2421, 1.442695
      %v2423 = vpow.pop %v2422
      %v2424 = vadd.f32 %v2423, 1.0
      %v2425 = vrcp.pop %v2424
      %v2426 = vmul.f32 1.0, %v2425
      %v2427 = vtanh.pop %v2413
      %v2428 = vxor.u32 %v2414, 2147483648
      %v2429 = vmul.f32 %v2428, 1.442695
      %v2430 = vpow.pop %v2429
      %v2431 = vadd.f32 %v2430, 1.0
      %v2432 = vrcp.pop %v2431
      %v2433 = vmul.f32 1.0, %v2432
      %v2434 = vmul.f32 %v2426, %v1954
      %v2435 = vmul.f32 %v2420, %v2427
      %v2436 = vadd.f32 %v2434, %v2435
      %v2437 = vtanh.pop %v2436
      %v2438 = vmul.f32 %v2433, %v2437
      %s2439 = scalar_lea.vmem [#allocation7], 8
      %2440 = vst [vmem:[%s2439] sm:$0xff] %v2438
      %s2441 = scalar_lea.vmem [#allocation2], 96
      %v2442 = vld [vmem:[%s2441] sm:$0xff]
      %v2443 = vld [vmem:[%s2441 + $0x8] sm:$0xff]
      %v2444 = vld [vmem:[%s2441 + $0x10] sm:$0xff]
      %v2445 = vld [vmem:[%s2441 + $0x18] sm:$0xff]
      %v2446 = vld [vmem:[%s451] sm:$0xff]
      %v2447 = vld [vmem:[%s451 + $0x8] sm:$0xff]
      %v2448 = vld [vmem:[%s451 + $0x10] sm:$0xff]
      %v2449 = vld [vmem:[%s451 + $0x18] sm:$0xff]
      %v2450 = vld [vmem:[%s451 + $0x20] sm:$0xff]
      %v2451 = vld [vmem:[%s451 + $0x28] sm:$0xff]
      %v2452 = vld [vmem:[%s451 + $0x30] sm:$0xff]
      %v2453 = vld [vmem:[%s451 + $0x38] sm:$0xff]
      %v2454 = vld [vmem:[%s451 + $0x40] sm:$0xff]
      %v2455 = vld [vmem:[%s451 + $0x48] sm:$0xff]
      %v2456 = vld [vmem:[%s451 + $0x50] sm:$0xff]
      %v2457 = vld [vmem:[%s451 + $0x58] sm:$0xff]
      %v2458 = vld [vmem:[%s451 + $0x60] sm:$0xff]
      %v2459 = vld [vmem:[%s451 + $0x68] sm:$0xff]
      %v2460 = vld [vmem:[%s451 + $0x70] sm:$0xff]
      %v2461 = vld [vmem:[%s451 + $0x78] sm:$0xff]
      %v2462 = vld [vmem:[%s451 + $0x80] sm:$0xff]
      %v2463 = vld [vmem:[%s451 + $0x88] sm:$0xff]
      %v2464 = vld [vmem:[%s451 + $0x90] sm:$0xff]
      %v2465 = vld [vmem:[%s451 + $0x98] sm:$0xff]
      %v2466 = vld [vmem:[%s451 + $0xa0] sm:$0xff]
      %v2467 = vld [vmem:[%s451 + $0xa8] sm:$0xff]
      %v2468 = vld [vmem:[%s451 + $0xb0] sm:$0xff]
      %v2469 = vld [vmem:[%s451 + $0xb8] sm:$0xff]
      %v2470 = vld [vmem:[%s451 + $0xc0] sm:$0xff]
      %v2471 = vld [vmem:[%s451 + $0xc8] sm:$0xff]
      %v2472 = vld [vmem:[%s451 + $0xd0] sm:$0xff]
      %v2473 = vld [vmem:[%s451 + $0xd8] sm:$0xff]
      %v2474 = vld [vmem:[%s451 + $0xe0] sm:$0xff]
      %v2475 = vld [vmem:[%s451 + $0xe8] sm:$0xff]
      %v2476 = vld [vmem:[%s451 + $0xf0] sm:$0xff]
      %v2477 = vld [vmem:[%s451 + $0xf8] sm:$0xff]
      %v2478 = vld [vmem:[%s451 + $0x100] sm:$0xff]
      %v2479 = vld [vmem:[%s451 + $0x108] sm:$0xff]
      %v2480 = vld [vmem:[%s451 + $0x110] sm:$0xff]
      %v2481 = vld [vmem:[%s451 + $0x118] sm:$0xff]
      %v2482 = vld [vmem:[%s451 + $0x120] sm:$0xff]
      %v2483 = vld [vmem:[%s451 + $0x128] sm:$0xff]
      %v2484 = vld [vmem:[%s451 + $0x130] sm:$0xff]
      %v2485 = vld [vmem:[%s451 + $0x138] sm:$0xff]
      %v2486 = vld [vmem:[%s451 + $0x140] sm:$0xff]
      %v2487 = vld [vmem:[%s451 + $0x148] sm:$0xff]
      %v2488 = vld [vmem:[%s451 + $0x150] sm:$0xff]
      %v2489 = vld [vmem:[%s451 + $0x158] sm:$0xff]
      %v2490 = vld [vmem:[%s451 + $0x160] sm:$0xff]
      %v2491 = vld [vmem:[%s451 + $0x168] sm:$0xff]
      %v2492 = vld [vmem:[%s451 + $0x170] sm:$0xff]
      %v2493 = vld [vmem:[%s451 + $0x178] sm:$0xff]
      %v2494 = vld [vmem:[%s451 + $0x180] sm:$0xff]
      %v2495 = vld [vmem:[%s451 + $0x188] sm:$0xff]
      %v2496 = vld [vmem:[%s451 + $0x190] sm:$0xff]
      %v2497 = vld [vmem:[%s451 + $0x198] sm:$0xff]
      %v2498 = vld [vmem:[%s451 + $0x1a0] sm:$0xff]
      %v2499 = vld [vmem:[%s451 + $0x1a8] sm:$0xff]
      %v2500 = vld [vmem:[%s451 + $0x1b0] sm:$0xff]
      %v2501 = vld [vmem:[%s451 + $0x1b8] sm:$0xff]
      %v2502 = vld [vmem:[%s451 + $0x1c0] sm:$0xff]
      %v2503 = vld [vmem:[%s451 + $0x1c8] sm:$0xff]
      %v2504 = vld [vmem:[%s451 + $0x1d0] sm:$0xff]
      %v2505 = vld [vmem:[%s451 + $0x1d8] sm:$0xff]
      %v2506 = vld [vmem:[%s451 + $0x1e0] sm:$0xff]
      %v2507 = vld [vmem:[%s451 + $0x1e8] sm:$0xff]
      %v2508 = vld [vmem:[%s451 + $0x1f0] sm:$0xff]
      %v2509 = vld [vmem:[%s451 + $0x1f8] sm:$0xff]
      %2510 = vmatprep.subr.mxu0 %v2447
      %2511 = vmatpush1.msra.mxu0 %v2446
      %2512 = vmatprep.subr.mxu0 %v2451
      %2513 = vmatpush1.msra.mxu0 %v2450
      %2514 = vmatprep.subr.mxu0 %v2455
      %2515 = vmatpush1.msra.mxu0 %v2454
      %2516 = vmatprep.subr.mxu0 %v2459
      %2517 = vmatpush1.msra.mxu0 %v2458
      %2518 = vmatprep.subr.mxu0 %v2463
      %2519 = vmatpush1.msra.mxu0 %v2462
      %2520 = vmatprep.subr.mxu0 %v2467
      %2521 = vmatpush1.msra.mxu0 %v2466
      %2522 = vmatprep.subr.mxu0 %v2471
      %2523 = vmatpush1.msra.mxu0 %v2470
      %2524 = vmatprep.subr.mxu0 %v2475
      %2525 = vmatpush1.msra.mxu0 %v2474
      %2526 = vmatprep.subr.mxu0 %v2479
      %2527 = vmatpush1.msra.mxu0 %v2478
      %2528 = vmatprep.subr.mxu0 %v2483
      %2529 = vmatpush1.msra.mxu0 %v2482
      %2530 = vmatprep.subr.mxu0 %v2487
      %2531 = vmatpush1.msra.mxu0 %v2486
      %2532 = vmatprep.subr.mxu0 %v2491
      %2533 = vmatpush1.msra.mxu0 %v2490
      %2534 = vmatprep.subr.mxu0 %v2495
      %2535 = vmatpush1.msra.mxu0 %v2494
      %2536 = vmatprep.subr.mxu0 %v2499
      %2537 = vmatpush1.msra.mxu0 %v2498
      %2538 = vmatprep.subr.mxu0 %v2503
      %2539 = vmatpush1.msra.mxu0 %v2502
      %2540 = vmatprep.subr.mxu0 %v2507
      %2541 = vmatpush1.msra.mxu0 %v2506
      %2542 = vmatprep.subr.mxu0 0.0
      %2543 = vmatpush1.msra.mxu0 0.0
      %2544 = vmatprep.subr.mxu0 0.0
      %2545 = vmatpush1.msra.mxu0 0.0
      %2546 = vmatprep.subr.mxu0 0.0
      %2547 = vmatpush1.msra.mxu0 0.0
      %2548 = vmatprep.subr.mxu0 0.0
      %2549 = vmatpush1.msra.mxu0 0.0
      %2550 = vmatprep.subr.mxu0 0.0
      %2551 = vmatpush1.msra.mxu0 0.0
      %2552 = vmatprep.subr.mxu0 0.0
      %2553 = vmatpush1.msra.mxu0 0.0
      %2554 = vmatprep.subr.mxu0 0.0
      %2555 = vmatpush1.msra.mxu0 0.0
      %2556 = vmatprep.subr.mxu0 0.0
      %2557 = vmatpush1.msra.mxu0 0.0
      %2558 = vmatprep.subr.mxu0 0.0
      %2559 = vmatpush1.msra.mxu0 0.0
      %2560 = vmatprep.subr.mxu0 0.0
      %2561 = vmatpush1.msra.mxu0 0.0
      %2562 = vmatprep.subr.mxu0 0.0
      %2563 = vmatpush1.msra.mxu0 0.0
      %2564 = vmatprep.subr.mxu0 0.0
      %2565 = vmatpush1.msra.mxu0 0.0
      %2566 = vmatprep.subr.mxu0 0.0
      %2567 = vmatpush1.msra.mxu0 0.0
      %2568 = vmatprep.subr.mxu0 0.0
      %2569 = vmatpush1.msra.mxu0 0.0
      %2570 = vmatprep.subr.mxu0 0.0
      %2571 = vmatpush1.msra.mxu0 0.0
      %2572 = vmatprep.subr.mxu0 0.0
      %2573 = vmatpush1.msra.mxu0 0.0
      %2574 = vmatprep.mubr.f32.mxu0 0.0
      %2575 = vmatmul.mubr.f32.gmra.mrb[0].mxu0 %v2197
      %v2576 = vpop.f32.mrb[0].mxu0
      %v2577 = vadd.f32 0.0, %v2576
      %v2578 = vpop.f32.mrb[0].mxu0
      %v2579 = vadd.f32 0.0, %v2578
      %2580 = vdwg.mxu0
      %2581 = vmatprep.subr.mxu0 %v2449
      %2582 = vmatpush1.msra.mxu0 %v2448
      %2583 = vmatprep.subr.mxu0 %v2453
      %2584 = vmatpush1.msra.mxu0 %v2452
      %2585 = vmatprep.subr.mxu0 %v2457
      %2586 = vmatpush1.msra.mxu0 %v2456
      %2587 = vmatprep.subr.mxu0 %v2461
      %2588 = vmatpush1.msra.mxu0 %v2460
      %2589 = vmatprep.subr.mxu0 %v2465
      %2590 = vmatpush1.msra.mxu0 %v2464
      %2591 = vmatprep.subr.mxu0 %v2469
      %2592 = vmatpush1.msra.mxu0 %v2468
      %2593 = vmatprep.subr.mxu0 %v2473
      %2594 = vmatpush1.msra.mxu0 %v2472
      %2595 = vmatprep.subr.mxu0 %v2477
      %2596 = vmatpush1.msra.mxu0 %v2476
      %2597 = vmatprep.subr.mxu0 %v2481
      %2598 = vmatpush1.msra.mxu0 %v2480
      %2599 = vmatprep.subr.mxu0 %v2485
      %2600 = vmatpush1.msra.mxu0 %v2484
      %2601 = vmatprep.subr.mxu0 %v2489
      %2602 = vmatpush1.msra.mxu0 %v2488
      %2603 = vmatprep.subr.mxu0 %v2493
      %2604 = vmatpush1.msra.mxu0 %v2492
      %2605 = vmatprep.subr.mxu0 %v2497
      %2606 = vmatpush1.msra.mxu0 %v2496
      %2607 = vmatprep.subr.mxu0 %v2501
      %2608 = vmatpush1.msra.mxu0 %v2500
      %2609 = vmatprep.subr.mxu0 %v2505
      %2610 = vmatpush1.msra.mxu0 %v2504
      %2611 = vmatprep.subr.mxu0 %v2509
      %2612 = vmatpush1.msra.mxu0 %v2508
      %2613 = vmatprep.subr.mxu0 0.0
      %2614 = vmatpush1.msra.mxu0 0.0
      %2615 = vmatprep.subr.mxu0 0.0
      %2616 = vmatpush1.msra.mxu0 0.0
      %2617 = vmatprep.subr.mxu0 0.0
      %2618 = vmatpush1.msra.mxu0 0.0
      %2619 = vmatprep.subr.mxu0 0.0
      %2620 = vmatpush1.msra.mxu0 0.0
      %2621 = vmatprep.subr.mxu0 0.0
      %2622 = vmatpush1.msra.mxu0 0.0
      %2623 = vmatprep.subr.mxu0 0.0
      %2624 = vmatpush1.msra.mxu0 0.0
      %2625 = vmatprep.subr.mxu0 0.0
      %2626 = vmatpush1.msra.mxu0 0.0
      %2627 = vmatprep.subr.mxu0 0.0
      %2628 = vmatpush1.msra.mxu0 0.0
      %2629 = vmatprep.subr.mxu0 0.0
      %2630 = vmatpush1.msra.mxu0 0.0
      %2631 = vmatprep.subr.mxu0 0.0
      %2632 = vmatpush1.msra.mxu0 0.0
      %2633 = vmatprep.subr.mxu0 0.0
      %2634 = vmatpush1.msra.mxu0 0.0
      %2635 = vmatprep.subr.mxu0 0.0
      %2636 = vmatpush1.msra.mxu0 0.0
      %2637 = vmatprep.subr.mxu0 0.0
      %2638 = vmatpush1.msra.mxu0 0.0
      %2639 = vmatprep.subr.mxu0 0.0
      %2640 = vmatpush1.msra.mxu0 0.0
      %2641 = vmatprep.subr.mxu0 0.0
      %2642 = vmatpush1.msra.mxu0 0.0
      %2643 = vmatprep.subr.mxu0 0.0
      %2644 = vmatpush1.msra.mxu0 0.0
      %2645 = vmatprep.mubr.f32.mxu0 0.0
      %2646 = vmatmul.mubr.f32.gmra.mrb[0].mxu0 %v2197
      %v2647 = vpop.f32.mrb[0].mxu0
      %v2648 = vadd.f32 0.0, %v2647
      %v2649 = vpop.f32.mrb[0].mxu0
      %v2650 = vadd.f32 0.0, %v2649
      %2651 = vdwg.mxu0
      %v2652 = vadd.f32 %v2442, %v2577
      %v2653 = vadd.f32 %v2443, %v2579
      %v2654 = vadd.f32 %v2444, %v2648
      %v2655 = vadd.f32 %v2445, %v2650
      %v2656 = vxor.u32 %v2652, 2147483648
      %v2657 = vmul.f32 %v2656, 1.442695
      %v2658 = vpow.pop %v2657
      %v2659 = vadd.f32 %v2658, 1.0
      %v2660 = vrcp.pop %v2659
      %v2661 = vmul.f32 1.0, %v2660
      %v2662 = vxor.u32 %v2653, 2147483648
      %v2663 = vmul.f32 %v2662, 1.442695
      %v2664 = vpow.pop %v2663
      %v2665 = vadd.f32 %v2664, 1.0
      %v2666 = vrcp.pop %v2665
      %v2667 = vmul.f32 1.0, %v2666
      %v2668 = vtanh.pop %v2654
      %v2669 = vxor.u32 %v2655, 2147483648
      %v2670 = vmul.f32 %v2669, 1.442695
      %v2671 = vpow.pop %v2670
      %v2672 = vadd.f32 %v2671, 1.0
      %v2673 = vrcp.pop %v2672
      %v2674 = vmul.f32 1.0, %v2673
      %v2675 = vmul.f32 %v2667, %v2195
      %v2676 = vmul.f32 %v2661, %v2668
      %v2677 = vadd.f32 %v2675, %v2676
      %v2678 = vtanh.pop %v2677
      %v2679 = vmul.f32 %v2674, %v2678
      %s2680 = scalar_lea.vmem [#allocation3], 24
      %2681 = vst [vmem:[%s2680] sm:$0xff] %v2679
      %v2682 = vld [vmem:[#allocation6] sm:$0xff]
      %v2683 = vld [vmem:[#allocation6 + $0x8] sm:$0xff]
      %v2684 = vld [vmem:[#allocation6 + $0x10] sm:$0xff]
      %v2685 = vld [vmem:[#allocation6 + $0x18] sm:$0xff]
      %v2686 = vld [vmem:[%s1240] sm:$0xff]
      %v2687 = vld [vmem:[%s1240 + $0x8] sm:$0xff]
      %v2688 = vld [vmem:[%s1240 + $0x10] sm:$0xff]
      %v2689 = vld [vmem:[%s1240 + $0x18] sm:$0xff]
      %v2690 = vld [vmem:[%s1240 + $0x20] sm:$0xff]
      %v2691 = vld [vmem:[%s1240 + $0x28] sm:$0xff]
      %v2692 = vld [vmem:[%s1240 + $0x30] sm:$0xff]
      %v2693 = vld [vmem:[%s1240 + $0x38] sm:$0xff]
      %v2694 = vld [vmem:[%s1240 + $0x40] sm:$0xff]
      %v2695 = vld [vmem:[%s1240 + $0x48] sm:$0xff]
      %v2696 = vld [vmem:[%s1240 + $0x50] sm:$0xff]
      %v2697 = vld [vmem:[%s1240 + $0x58] sm:$0xff]
      %v2698 = vld [vmem:[%s1240 + $0x60] sm:$0xff]
      %v2699 = vld [vmem:[%s1240 + $0x68] sm:$0xff]
      %v2700 = vld [vmem:[%s1240 + $0x70] sm:$0xff]
      %v2701 = vld [vmem:[%s1240 + $0x78] sm:$0xff]
      %v2702 = vld [vmem:[%s1240 + $0x80] sm:$0xff]
      %v2703 = vld [vmem:[%s1240 + $0x88] sm:$0xff]
      %v2704 = vld [vmem:[%s1240 + $0x90] sm:$0xff]
      %v2705 = vld [vmem:[%s1240 + $0x98] sm:$0xff]
      %v2706 = vld [vmem:[%s1240 + $0xa0] sm:$0xff]
      %v2707 = vld [vmem:[%s1240 + $0xa8] sm:$0xff]
      %v2708 = vld [vmem:[%s1240 + $0xb0] sm:$0xff]
      %v2709 = vld [vmem:[%s1240 + $0xb8] sm:$0xff]
      %v2710 = vld [vmem:[%s1240 + $0xc0] sm:$0xff]
      %v2711 = vld [vmem:[%s1240 + $0xc8] sm:$0xff]
      %v2712 = vld [vmem:[%s1240 + $0xd0] sm:$0xff]
      %v2713 = vld [vmem:[%s1240 + $0xd8] sm:$0xff]
      %v2714 = vld [vmem:[%s1240 + $0xe0] sm:$0xff]
      %v2715 = vld [vmem:[%s1240 + $0xe8] sm:$0xff]
      %v2716 = vld [vmem:[%s1240 + $0xf0] sm:$0xff]
      %v2717 = vld [vmem:[%s1240 + $0xf8] sm:$0xff]
      %v2718 = vld [vmem:[%s1240 + $0x100] sm:$0xff]
      %v2719 = vld [vmem:[%s1240 + $0x108] sm:$0xff]
      %v2720 = vld [vmem:[%s1240 + $0x110] sm:$0xff]
      %v2721 = vld [vmem:[%s1240 + $0x118] sm:$0xff]
      %v2722 = vld [vmem:[%s1240 + $0x120] sm:$0xff]
      %v2723 = vld [vmem:[%s1240 + $0x128] sm:$0xff]
      %v2724 = vld [vmem:[%s1240 + $0x130] sm:$0xff]
      %v2725 = vld [vmem:[%s1240 + $0x138] sm:$0xff]
      %v2726 = vld [vmem:[%s1240 + $0x140] sm:$0xff]
      %v2727 = vld [vmem:[%s1240 + $0x148] sm:$0xff]
      %v2728 = vld [vmem:[%s1240 + $0x150] sm:$0xff]
      %v2729 = vld [vmem:[%s1240 + $0x158] sm:$0xff]
      %v2730 = vld [vmem:[%s1240 + $0x160] sm:$0xff]
      %v2731 = vld [vmem:[%s1240 + $0x168] sm:$0xff]
      %v2732 = vld [vmem:[%s1240 + $0x170] sm:$0xff]
      %v2733 = vld [vmem:[%s1240 + $0x178] sm:$0xff]
      %v2734 = vld [vmem:[%s1240 + $0x180] sm:$0xff]
      %v2735 = vld [vmem:[%s1240 + $0x188] sm:$0xff]
      %v2736 = vld [vmem:[%s1240 + $0x190] sm:$0xff]
      %v2737 = vld [vmem:[%s1240 + $0x198] sm:$0xff]
      %v2738 = vld [vmem:[%s1240 + $0x1a0] sm:$0xff]
      %v2739 = vld [vmem:[%s1240 + $0x1a8] sm:$0xff]
      %v2740 = vld [vmem:[%s1240 + $0x1b0] sm:$0xff]
      %v2741 = vld [vmem:[%s1240 + $0x1b8] sm:$0xff]
      %v2742 = vld [vmem:[%s1240 + $0x1c0] sm:$0xff]
      %v2743 = vld [vmem:[%s1240 + $0x1c8] sm:$0xff]
      %v2744 = vld [vmem:[%s1240 + $0x1d0] sm:$0xff]
      %v2745 = vld [vmem:[%s1240 + $0x1d8] sm:$0xff]
      %v2746 = vld [vmem:[%s1240 + $0x1e0] sm:$0xff]
      %v2747 = vld [vmem:[%s1240 + $0x1e8] sm:$0xff]
      %v2748 = vld [vmem:[%s1240 + $0x1f0] sm:$0xff]
      %v2749 = vld [vmem:[%s1240 + $0x1f8] sm:$0xff]
      %2750 = vmatprep.subr.mxu0 %v2687
      %2751 = vmatpush1.msra.mxu0 %v2686
      %2752 = vmatprep.subr.mxu0 %v2691
      %2753 = vmatpush1.msra.mxu0 %v2690
      %2754 = vmatprep.subr.mxu0 %v2695
      %2755 = vmatpush1.msra.mxu0 %v2694
      %2756 = vmatprep.subr.mxu0 %v2699
      %2757 = vmatpush1.msra.mxu0 %v2698
      %2758 = vmatprep.subr.mxu0 %v2703
      %2759 = vmatpush1.msra.mxu0 %v2702
      %2760 = vmatprep.subr.mxu0 %v2707
      %2761 = vmatpush1.msra.mxu0 %v2706
      %2762 = vmatprep.subr.mxu0 %v2711
      %2763 = vmatpush1.msra.mxu0 %v2710
      %2764 = vmatprep.subr.mxu0 %v2715
      %2765 = vmatpush1.msra.mxu0 %v2714
      %2766 = vmatprep.subr.mxu0 %v2719
      %2767 = vmatpush1.msra.mxu0 %v2718
      %2768 = vmatprep.subr.mxu0 %v2723
      %2769 = vmatpush1.msra.mxu0 %v2722
      %2770 = vmatprep.subr.mxu0 %v2727
      %2771 = vmatpush1.msra.mxu0 %v2726
      %2772 = vmatprep.subr.mxu0 %v2731
      %2773 = vmatpush1.msra.mxu0 %v2730
      %2774 = vmatprep.subr.mxu0 %v2735
      %2775 = vmatpush1.msra.mxu0 %v2734
      %2776 = vmatprep.subr.mxu0 %v2739
      %2777 = vmatpush1.msra.mxu0 %v2738
      %2778 = vmatprep.subr.mxu0 %v2743
      %2779 = vmatpush1.msra.mxu0 %v2742
      %2780 = vmatprep.subr.mxu0 %v2747
      %2781 = vmatpush1.msra.mxu0 %v2746
      %2782 = vmatprep.subr.mxu0 0.0
      %2783 = vmatpush1.msra.mxu0 0.0
      %2784 = vmatprep.subr.mxu0 0.0
      %2785 = vmatpush1.msra.mxu0 0.0
      %2786 = vmatprep.subr.mxu0 0.0
      %2787 = vmatpush1.msra.mxu0 0.0
      %2788 = vmatprep.subr.mxu0 0.0
      %2789 = vmatpush1.msra.mxu0 0.0
      %2790 = vmatprep.subr.mxu0 0.0
      %2791 = vmatpush1.msra.mxu0 0.0
      %2792 = vmatprep.subr.mxu0 0.0
      %2793 = vmatpush1.msra.mxu0 0.0
      %2794 = vmatprep.subr.mxu0 0.0
      %2795 = vmatpush1.msra.mxu0 0.0
      %2796 = vmatprep.subr.mxu0 0.0
      %2797 = vmatpush1.msra.mxu0 0.0
      %2798 = vmatprep.subr.mxu0 0.0
      %2799 = vmatpush1.msra.mxu0 0.0
      %2800 = vmatprep.subr.mxu0 0.0
      %2801 = vmatpush1.msra.mxu0 0.0
      %2802 = vmatprep.subr.mxu0 0.0
      %2803 = vmatpush1.msra.mxu0 0.0
      %2804 = vmatprep.subr.mxu0 0.0
      %2805 = vmatpush1.msra.mxu0 0.0
      %2806 = vmatprep.subr.mxu0 0.0
      %2807 = vmatpush1.msra.mxu0 0.0
      %2808 = vmatprep.subr.mxu0 0.0
      %2809 = vmatpush1.msra.mxu0 0.0
      %2810 = vmatprep.subr.mxu0 0.0
      %2811 = vmatpush1.msra.mxu0 0.0
      %2812 = vmatprep.subr.mxu0 0.0
      %2813 = vmatpush1.msra.mxu0 0.0
      %2814 = vmatprep.mubr.f32.mxu0 0.0
      %2815 = vmatmul.mubr.f32.gmra.mrb[0].mxu0 %v2438
      %v2816 = vpop.f32.mrb[0].mxu0
      %v2817 = vadd.f32 0.0, %v2816
      %v2818 = vpop.f32.mrb[0].mxu0
      %v2819 = vadd.f32 0.0, %v2818
      %2820 = vdwg.mxu0
      %2821 = vmatprep.subr.mxu0 %v2689
      %2822 = vmatpush1.msra.mxu0 %v2688
      %2823 = vmatprep.subr.mxu0 %v2693
      %2824 = vmatpush1.msra.mxu0 %v2692
      %2825 = vmatprep.subr.mxu0 %v2697
      %2826 = vmatpush1.msra.mxu0 %v2696
      %2827 = vmatprep.subr.mxu0 %v2701
      %2828 = vmatpush1.msra.mxu0 %v2700
      %2829 = vmatprep.subr.mxu0 %v2705
      %2830 = vmatpush1.msra.mxu0 %v2704
      %2831 = vmatprep.subr.mxu0 %v2709
      %2832 = vmatpush1.msra.mxu0 %v2708
      %2833 = vmatprep.subr.mxu0 %v2713
      %2834 = vmatpush1.msra.mxu0 %v2712
      %2835 = vmatprep.subr.mxu0 %v2717
      %2836 = vmatpush1.msra.mxu0 %v2716
      %2837 = vmatprep.subr.mxu0 %v2721
      %2838 = vmatpush1.msra.mxu0 %v2720
      %2839 = vmatprep.subr.mxu0 %v2725
      %2840 = vmatpush1.msra.mxu0 %v2724
      %2841 = vmatprep.subr.mxu0 %v2729
      %2842 = vmatpush1.msra.mxu0 %v2728
      %2843 = vmatprep.subr.mxu0 %v2733
      %2844 = vmatpush1.msra.mxu0 %v2732
      %2845 = vmatprep.subr.mxu0 %v2737
      %2846 = vmatpush1.msra.mxu0 %v2736
      %2847 = vmatprep.subr.mxu0 %v2741
      %2848 = vmatpush1.msra.mxu0 %v2740
      %2849 = vmatprep.subr.mxu0 %v2745
      %2850 = vmatpush1.msra.mxu0 %v2744
      %2851 = vmatprep.subr.mxu0 %v2749
      %2852 = vmatpush1.msra.mxu0 %v2748
      %2853 = vmatprep.subr.mxu0 0.0
      %2854 = vmatpush1.msra.mxu0 0.0
      %2855 = vmatprep.subr.mxu0 0.0
      %2856 = vmatpush1.msra.mxu0 0.0
      %2857 = vmatprep.subr.mxu0 0.0
      %2858 = vmatpush1.msra.mxu0 0.0
      %2859 = vmatprep.subr.mxu0 0.0
      %2860 = vmatpush1.msra.mxu0 0.0
      %2861 = vmatprep.subr.mxu0 0.0
      %2862 = vmatpush1.msra.mxu0 0.0
      %2863 = vmatprep.subr.mxu0 0.0
      %2864 = vmatpush1.msra.mxu0 0.0
      %2865 = vmatprep.subr.mxu0 0.0
      %2866 = vmatpush1.msra.mxu0 0.0
      %2867 = vmatprep.subr.mxu0 0.0
      %2868 = vmatpush1.msra.mxu0 0.0
      %2869 = vmatprep.subr.mxu0 0.0
      %2870 = vmatpush1.msra.mxu0 0.0
      %2871 = vmatprep.subr.mxu0 0.0
      %2872 = vmatpush1.msra.mxu0 0.0
      %2873 = vmatprep.subr.mxu0 0.0
      %2874 = vmatpush1.msra.mxu0 0.0
      %2875 = vmatprep.subr.mxu0 0.0
      %2876 = vmatpush1.msra.mxu0 0.0
      %2877 = vmatprep.subr.mxu0 0.0
      %2878 = vmatpush1.msra.mxu0 0.0
      %2879 = vmatprep.subr.mxu0 0.0
      %2880 = vmatpush1.msra.mxu0 0.0
      %2881 = vmatprep.subr.mxu0 0.0
      %2882 = vmatpush1.msra.mxu0 0.0
      %2883 = vmatprep.subr.mxu0 0.0
      %2884 = vmatpush1.msra.mxu0 0.0
      %2885 = vmatprep.mubr.f32.mxu0 0.0
      %2886 = vmatmul.mubr.f32.gmra.mrb[0].mxu0 %v2438
      %v2887 = vpop.f32.mrb[0].mxu0
      %v2888 = vadd.f32 0.0, %v2887
      %v2889 = vpop.f32.mrb[0].mxu0
      %v2890 = vadd.f32 0.0, %v2889
      %2891 = vdwg.mxu0
      %v2892 = vadd.f32 %v2682, %v2817
      %v2893 = vadd.f32 %v2683, %v2819
      %v2894 = vadd.f32 %v2684, %v2888
      %v2895 = vadd.f32 %v2685, %v2890
      %v2896 = vxor.u32 %v2892, 2147483648
      %v2897 = vmul.f32 %v2896, 1.442695
      %v2898 = vpow.pop %v2897
      %v2899 = vadd.f32 %v2898, 1.0
      %v2900 = vrcp.pop %v2899
      %v2901 = vmul.f32 1.0, %v2900
      %v2902 = vxor.u32 %v2893, 2147483648
      %v2903 = vmul.f32 %v2902, 1.442695
      %v2904 = vpow.pop %v2903
      %v2905 = vadd.f32 %v2904, 1.0
      %v2906 = vrcp.pop %v2905
      %v2907 = vmul.f32 1.0, %v2906
      %v2908 = vtanh.pop %v2894
      %v2909 = vxor.u32 %v2895, 2147483648
      %v2910 = vmul.f32 %v2909, 1.442695
      %v2911 = vpow.pop %v2910
      %v2912 = vadd.f32 %v2911, 1.0
      %v2913 = vrcp.pop %v2912
      %v2914 = vmul.f32 1.0, %v2913
      %v2915 = vmul.f32 %v2907, %v2436
      %v2916 = vmul.f32 %v2901, %v2908
      %v2917 = vadd.f32 %v2915, %v2916
      %v2918 = vtanh.pop %v2917
      %v2919 = vmul.f32 %v2914, %v2918
      %2920 = vst [vmem:[#allocation7] sm:$0xff] %v2919
      %2921 = vst [vmem:[#allocation4] sm:$0xff] %v2679
      %2922 = vst [vmem:[#allocation5] sm:$0xff] %v2677
      %2923 = vst [vmem:[#allocation8] sm:$0xff] %v2919
      %2924 = vst [vmem:[#allocation9] sm:$0xff] %v2917
      %v2925 = vld [vmem:[#allocation3] sm:$0xff]
      %v2926 = vld [vmem:[#allocation3 + $0x8] sm:$0xff]
      %v2927 = vld [vmem:[#allocation3 + $0x10] sm:$0xff]
      %v2928 = vld [vmem:[#allocation3 + $0x18] sm:$0xff]
      %v2929 = vld [vmem:[%s464] sm:$0xff]
      %v2930 = vld [vmem:[%s464 + $0x8] sm:$0xff]
      %v2931 = vld [vmem:[%s464 + $0x10] sm:$0xff]
      %v2932 = vld [vmem:[%s464 + $0x18] sm:$0xff]
      %v2933 = vld [vmem:[%s464 + $0x20] sm:$0xff]
      %v2934 = vld [vmem:[%s464 + $0x28] sm:$0xff]
      %v2935 = vld [vmem:[%s464 + $0x30] sm:$0xff]
      %v2936 = vld [vmem:[%s464 + $0x38] sm:$0xff]
      %v2937 = vld [vmem:[%s464 + $0x40] sm:$0xff]
      %v2938 = vld [vmem:[%s464 + $0x48] sm:$0xff]
      %v2939 = vld [vmem:[%s464 + $0x50] sm:$0xff]
      %v2940 = vld [vmem:[%s464 + $0x58] sm:$0xff]
      %v2941 = vld [vmem:[%s464 + $0x60] sm:$0xff]
      %v2942 = vld [vmem:[%s464 + $0x68] sm:$0xff]
      %v2943 = vld [vmem:[%s464 + $0x70] sm:$0xff]
      %v2944 = vld [vmem:[%s464 + $0x78] sm:$0xff]
      %v2945 = vld [vmem:[%s469] sm:$0x1]
      %v2947 = vlaneseq
      %v2948 = vshrl.u32 %v2947, 7
      %v2949 = vsub.s32 0, %v2948
      %v2950 = vrot.slane %v2945, %v2949
      %2952 = vmatprep.subr.mxu0 0.0
      %2953 = vmatpush1.msra.mxu0 %v2929
      %2954 = vmatprep.subr.mxu0 0.0
      %2955 = vmatpush1.msra.mxu0 %v2930
      %2956 = vmatprep.subr.mxu0 0.0
      %2957 = vmatpush1.msra.mxu0 %v2931
      %2958 = vmatprep.subr.mxu0 0.0
      %2959 = vmatpush1.msra.mxu0 %v2932
      %2960 = vmatprep.subr.mxu0 0.0
      %2961 = vmatpush1.msra.mxu0 %v2933
      %2962 = vmatprep.subr.mxu0 0.0
      %2963 = vmatpush1.msra.mxu0 %v2934
      %2964 = vmatprep.subr.mxu0 0.0
      %2965 = vmatpush1.msra.mxu0 %v2935
      %2966 = vmatprep.subr.mxu0 0.0
      %2967 = vmatpush1.msra.mxu0 %v2936
      %2968 = vmatprep.subr.mxu0 0.0
      %2969 = vmatpush1.msra.mxu0 %v2937
      %2970 = vmatprep.subr.mxu0 0.0
      %2971 = vmatpush1.msra.mxu0 %v2938
      %2972 = vmatprep.subr.mxu0 0.0
      %2973 = vmatpush1.msra.mxu0 %v2939
      %2974 = vmatprep.subr.mxu0 0.0
      %2975 = vmatpush1.msra.mxu0 %v2940
      %2976 = vmatprep.subr.mxu0 0.0
      %2977 = vmatpush1.msra.mxu0 %v2941
      %2978 = vmatprep.subr.mxu0 0.0
      %2979 = vmatpush1.msra.mxu0 %v2942
      %2980 = vmatprep.subr.mxu0 0.0
      %2981 = vmatpush1.msra.mxu0 %v2943
      %2982 = vmatprep.subr.mxu0 0.0
      %2983 = vmatpush1.msra.mxu0 %v2944
      %2984 = vmatprep.subr.mxu0 0.0
      %2985 = vmatpush1.msra.mxu0 0.0
      %2986 = vmatprep.subr.mxu0 0.0
      %2987 = vmatpush1.msra.mxu0 0.0
      %2988 = vmatprep.subr.mxu0 0.0
      %2989 = vmatpush1.msra.mxu0 0.0
      %2990 = vmatprep.subr.mxu0 0.0
      %2991 = vmatpush1.msra.mxu0 0.0
      %2992 = vmatprep.subr.mxu0 0.0
      %2993 = vmatpush1.msra.mxu0 0.0
      %2994 = vmatprep.subr.mxu0 0.0
      %2995 = vmatpush1.msra.mxu0 0.0
      %2996 = vmatprep.subr.mxu0 0.0
      %2997 = vmatpush1.msra.mxu0 0.0
      %2998 = vmatprep.subr.mxu0 0.0
      %2999 = vmatpush1.msra.mxu0 0.0
      %3000 = vmatprep.subr.mxu0 0.0
      %3001 = vmatpush1.msra.mxu0 0.0
      %3002 = vmatprep.subr.mxu0 0.0
      %3003 = vmatpush1.msra.mxu0 0.0
      %3004 = vmatprep.subr.mxu0 0.0
      %3005 = vmatpush1.msra.mxu0 0.0
      %3006 = vmatprep.subr.mxu0 0.0
      %3007 = vmatpush1.msra.mxu0 0.0
      %3008 = vmatprep.subr.mxu0 0.0
      %3009 = vmatpush1.msra.mxu0 0.0
      %3010 = vmatprep.subr.mxu0 0.0
      %3011 = vmatpush1.msra.mxu0 0.0
      %3012 = vmatprep.subr.mxu0 0.0
      %3013 = vmatpush1.msra.mxu0 0.0
      %3014 = vmatprep.subr.mxu0 0.0
      %3015 = vmatpush1.msra.mxu0 0.0
      %3016 = vmatprep.mubr.f32.mxu0 0.0
      %3017 = vmatmul.mubr.f32.gmra.mrb[0].mxu0 %v2925
      %v3018 = vpop.f32.mrb[0].mxu0
      %v3019 = vadd.f32 %v2950, %v3018
      %v3020 = vpop.f32.mrb[0].mxu0
      %3021 = vmatprep.mubr.f32.mxu0 0.0
      %3022 = vmatmul.mubr.f32.gmra.mrb[0].mxu0 %v2926
      %v3023 = vpop.f32.mrb[0].mxu0
      %v3024 = vadd.f32 %v2950, %v3023
      %v3025 = vpop.f32.mrb[0].mxu0
      %3026 = vmatprep.mubr.f32.mxu0 0.0
      %3027 = vmatmul.mubr.f32.gmra.mrb[0].mxu0 %v2927
      %v3028 = vpop.f32.mrb[0].mxu0
      %v3029 = vadd.f32 %v2950, %v3028
      %v3030 = vpop.f32.mrb[0].mxu0
      %3031 = vmatprep.mubr.f32.mxu0 0.0
      %3032 = vmatmul.mubr.f32.gmra.mrb[0].mxu0 %v2928
      %v3033 = vpop.f32.mrb[0].mxu0
      %v3034 = vadd.f32 %v2950, %v3033
      %v3035 = vpop.f32.mrb[0].mxu0
      %3036 = vdwg.mxu0
      %3037 = vst [vmem:[%s475] sm:$0xff] %v3019
      %3038 = vst [vmem:[%s475 + $0x8] sm:$0xff] %v3024
      %3039 = vst [vmem:[%s475 + $0x10] sm:$0xff] %v3029
      %3040 = vst [vmem:[%s475 + $0x18] sm:$0xff] %v3034
      %v3041 = vld [vmem:[#allocation7] sm:$0xff]
      %v3042 = vld [vmem:[#allocation7 + $0x8] sm:$0xff]
      %v3043 = vld [vmem:[#allocation7 + $0x10] sm:$0xff]
      %v3044 = vld [vmem:[#allocation7 + $0x18] sm:$0xff]
      %s3045 = scalar_lea.vmem %s464, 128
      %v3046 = vld [vmem:[%s3045] sm:$0xff]
      %v3047 = vld [vmem:[%s3045 + $0x8] sm:$0xff]
      %v3048 = vld [vmem:[%s3045 + $0x10] sm:$0xff]
      %v3049 = vld [vmem:[%s3045 + $0x18] sm:$0xff]
      %v3050 = vld [vmem:[%s3045 + $0x20] sm:$0xff]
      %v3051 = vld [vmem:[%s3045 + $0x28] sm:$0xff]
      %v3052 = vld [vmem:[%s3045 + $0x30] sm:$0xff]
      %v3053 = vld [vmem:[%s3045 + $0x38] sm:$0xff]
      %v3054 = vld [vmem:[%s3045 + $0x40] sm:$0xff]
      %v3055 = vld [vmem:[%s3045 + $0x48] sm:$0xff]
      %v3056 = vld [vmem:[%s3045 + $0x50] sm:$0xff]
      %v3057 = vld [vmem:[%s3045 + $0x58] sm:$0xff]
      %v3058 = vld [vmem:[%s3045 + $0x60] sm:$0xff]
      %v3059 = vld [vmem:[%s3045 + $0x68] sm:$0xff]
      %v3060 = vld [vmem:[%s3045 + $0x70] sm:$0xff]
      %v3061 = vld [vmem:[%s3045 + $0x78] sm:$0xff]
      %s3062 = scalar_lea.vmem %s469, 1
      %v3063 = vld [vmem:[%s3062] sm:$0x1]
      %v3065 = vlaneseq
      %v3066 = vshrl.u32 %v3065, 7
      %v3067 = vsub.s32 0, %v3066
      %v3068 = vrot.slane %v3063, %v3067
      %3070 = vmatprep.subr.mxu0 0.0
      %3071 = vmatpush1.msra.mxu0 %v3046
      %3072 = vmatprep.subr.mxu0 0.0
      %3073 = vmatpush1.msra.mxu0 %v3047
      %3074 = vmatprep.subr.mxu0 0.0
      %3075 = vmatpush1.msra.mxu0 %v3048
      %3076 = vmatprep.subr.mxu0 0.0
      %3077 = vmatpush1.msra.mxu0 %v3049
      %3078 = vmatprep.subr.mxu0 0.0
      %3079 = vmatpush1.msra.mxu0 %v3050
      %3080 = vmatprep.subr.mxu0 0.0
      %3081 = vmatpush1.msra.mxu0 %v3051
      %3082 = vmatprep.subr.mxu0 0.0
      %3083 = vmatpush1.msra.mxu0 %v3052
      %3084 = vmatprep.subr.mxu0 0.0
      %3085 = vmatpush1.msra.mxu0 %v3053
      %3086 = vmatprep.subr.mxu0 0.0
      %3087 = vmatpush1.msra.mxu0 %v3054
      %3088 = vmatprep.subr.mxu0 0.0
      %3089 = vmatpush1.msra.mxu0 %v3055
      %3090 = vmatprep.subr.mxu0 0.0
      %3091 = vmatpush1.msra.mxu0 %v3056
      %3092 = vmatprep.subr.mxu0 0.0
      %3093 = vmatpush1.msra.mxu0 %v3057
      %3094 = vmatprep.subr.mxu0 0.0
      %3095 = vmatpush1.msra.mxu0 %v3058
      %3096 = vmatprep.subr.mxu0 0.0
      %3097 = vmatpush1.msra.mxu0 %v3059
      %3098 = vmatprep.subr.mxu0 0.0
      %3099 = vmatpush1.msra.mxu0 %v3060
      %3100 = vmatprep.subr.mxu0 0.0
      %3101 = vmatpush1.msra.mxu0 %v3061
      %3102 = vmatprep.subr.mxu0 0.0
      %3103 = vmatpush1.msra.mxu0 0.0
      %3104 = vmatprep.subr.mxu0 0.0
      %3105 = vmatpush1.msra.mxu0 0.0
      %3106 = vmatprep.subr.mxu0 0.0
      %3107 = vmatpush1.msra.mxu0 0.0
      %3108 = vmatprep.subr.mxu0 0.0
      %3109 = vmatpush1.msra.mxu0 0.0
      %3110 = vmatprep.subr.mxu0 0.0
      %3111 = vmatpush1.msra.mxu0 0.0
      %3112 = vmatprep.subr.mxu0 0.0
      %3113 = vmatpush1.msra.mxu0 0.0
      %3114 = vmatprep.subr.mxu0 0.0
      %3115 = vmatpush1.msra.mxu0 0.0
      %3116 = vmatprep.subr.mxu0 0.0
      %3117 = vmatpush1.msra.mxu0 0.0
      %3118 = vmatprep.subr.mxu0 0.0
      %3119 = vmatpush1.msra.mxu0 0.0
      %3120 = vmatprep.subr.mxu0 0.0
      %3121 = vmatpush1.msra.mxu0 0.0
      %3122 = vmatprep.subr.mxu0 0.0
      %3123 = vmatpush1.msra.mxu0 0.0
      %3124 = vmatprep.subr.mxu0 0.0
      %3125 = vmatpush1.msra.mxu0 0.0
      %3126 = vmatprep.subr.mxu0 0.0
      %3127 = vmatpush1.msra.mxu0 0.0
      %3128 = vmatprep.subr.mxu0 0.0
      %3129 = vmatpush1.msra.mxu0 0.0
      %3130 = vmatprep.subr.mxu0 0.0
      %3131 = vmatpush1.msra.mxu0 0.0
      %3132 = vmatprep.subr.mxu0 0.0
      %3133 = vmatpush1.msra.mxu0 0.0
      %3134 = vmatprep.mubr.f32.mxu0 0.0
      %3135 = vmatmul.mubr.f32.gmra.mrb[0].mxu0 %v3041
      %v3136 = vpop.f32.mrb[0].mxu0
      %v3137 = vadd.f32 %v3068, %v3136
      %v3138 = vpop.f32.mrb[0].mxu0
      %3139 = vmatprep.mubr.f32.mxu0 0.0
      %3140 = vmatmul.mubr.f32.gmra.mrb[0].mxu0 %v3042
      %v3141 = vpop.f32.mrb[0].mxu0
      %v3142 = vadd.f32 %v3068, %v3141
      %v3143 = vpop.f32.mrb[0].mxu0
      %3144 = vmatprep.mubr.f32.mxu0 0.0
      %3145 = vmatmul.mubr.f32.gmra.mrb[0].mxu0 %v3043
      %v3146 = vpop.f32.mrb[0].mxu0
      %v3147 = vadd.f32 %v3068, %v3146
      %v3148 = vpop.f32.mrb[0].mxu0
      %3149 = vmatprep.mubr.f32.mxu0 0.0
      %3150 = vmatmul.mubr.f32.gmra.mrb[0].mxu0 %v3044
      %v3151 = vpop.f32.mrb[0].mxu0
      %v3152 = vadd.f32 %v3068, %v3151
      %v3153 = vpop.f32.mrb[0].mxu0
      %3154 = vdwg.mxu0
      %3155 = vst [vmem:[%s482] sm:$0xff] %v3137
      %3156 = vst [vmem:[%s482 + $0x8] sm:$0xff] %v3142
      %3157 = vst [vmem:[%s482 + $0x10] sm:$0xff] %v3147
      %3158 = vst [vmem:[%s482 + $0x18] sm:$0xff] %v3152
      %s3159 = smul.u32 4, %s25
      %p3160 = scmp.lt.s32.totalorder %s3159, 15
      %s3161 = scalar_select %p3160, %s3159, 15
      %s3162 = smul.addr %s3161, 8
      %s3163 = scalar_lea.vmem %s7, %s3162
      %s3164 = ssub.s32 3, %s25
      %s3165 = smul.u32 4, %s3164
      %p3166 = scmp.lt.s32.totalorder %s3165, 15
      %s3167 = scalar_select %p3166, %s3165, 15
      %s3168 = smul.addr %s3167, 8
      %s3169 = scalar_lea.vmem %s8, %s3168
      // Predicated region
      $region53: #{bidirectional_lstm.1} parent=47 // pred_check
        %p3170 = pneg %p234
      $region54: #{bidirectional_lstm.1} parent=47 // pred_check_branch
        %3172 = sbr.rel (%p3170) target = $region56
      $region55: #{bidirectional_lstm.1} parent=47 // pred_region
        %s3173 = smul.u32 4, %s25
      $region56: #{bidirectional_lstm.1} parent=47 // pred_fallthru
        _
      // Predicated region
      $region57: #{bidirectional_lstm.1} parent=47 // pred_check
        %p3174 = pneg %p262
      $region58: #{bidirectional_lstm.1} parent=47 // pred_check_branch
        %3176 = sbr.rel (%p3174) target = $region60
      $region59: #{bidirectional_lstm.1} parent=47 // pred_region
        %s3177 = ssub.s32 3, %s25
        %s3178 = smul.u32 4, %s3177
      $region60: #{bidirectional_lstm.1} parent=47 // pred_fallthru
        _
    $region48: #{bidirectional_lstm.1} parent=5 // pred_fallthru
      _
    %p3179 = scmp.le.s32.totalorder 2, %s15
    // Predicated region
    $region61: #{bidirectional_lstm.1} parent=5 // pred_check
      %p3180 = pneg %p3179
    $region62: #{bidirectional_lstm.1} parent=5 // pred_check_branch
      %3182 = sbr.rel (%p3180) target = $region64
    $region63: #{bidirectional_lstm.1} parent=5 // pred_region
      %s3183 = ssub.s32 %s15, 2
      // Predicated region
      $region65: #{bidirectional_lstm.1} parent=63 // pred_check
        %p3184 = pneg %p240
      $region66: #{bidirectional_lstm.1} parent=63 // pred_check_branch
        %3186 = sbr.rel (%p3184) target = $region68
      $region67: #{bidirectional_lstm.1} parent=63 // pred_region
        %s3187 = smul.u32 4, %s27
        %p3188 = scmp.lt.s32.totalorder %s3187, 15
        %s3189 = scalar_select %p3188, %s3187, 15
        %s3190 = smul.addr %s3189, 8
        %s3191 = scalar_lea.vmem %s7, %s3190
      $region68: #{bidirectional_lstm.1} parent=63 // pred_fallthru
        _
      // Predicated region
      $region69: #{bidirectional_lstm.1} parent=63 // pred_check
        %p3192 = pneg %p268
      $region70: #{bidirectional_lstm.1} parent=63 // pred_check_branch
        %3194 = sbr.rel (%p3192) target = $region72
      $region71: #{bidirectional_lstm.1} parent=63 // pred_region
        %s3195 = ssub.s32 3, %s27
        %s3196 = smul.u32 4, %s3195
        %p3197 = scmp.lt.s32.totalorder %s3196, 15
        %s3198 = scalar_select %p3197, %s3196, 15
        %s3199 = smul.addr %s3198, 8
        %s3200 = scalar_lea.vmem %s8, %s3199
      $region72: #{bidirectional_lstm.1} parent=63 // pred_fallthru
        _
    $region64: #{bidirectional_lstm.1} parent=5 // pred_fallthru
      _
  $region6: #{bidirectional_lstm.1} parent=0 // loop_footer
    %s19 = sadd.s32 1, %s15
  $region7: #{bidirectional_lstm.1} parent=0 // loop_footer_branch
    %14 = sbr.rel target = $region3
  $region8: #{bidirectional_lstm.1} parent=0 // loop_exit
    _

</llo_original>
